<compile_context>
chip_gen: v5e
topology: v5e:2x2
jax: 0.10.0
libtpu: 0.0.40
codegen_flags: <defaults>
</compile_context>

<pallas_src>
import functools

import jax
import jax.numpy as jnp
import numpy as np
from jax.experimental import pallas as pl
from jax.experimental.pallas import tpu as pltpu


def _npi_core_kernel(n_layers, hidden,
                     x_ref, hc0_ref, w_ref, b_ref, hw_ref, hb_ref,
                     heads_ref, hc_ref):
    """One call processes T timesteps.

    x_ref     : (T, 4H)        per-step input, concat([state, prog]) zero-padded to 4H lanes
    hc0_ref   : (2L, 4H)       rows [0:L] = h0 (padded), rows [L:2L] = c0 (padded)
    w_ref     : (L, 2*4H, 4H)  fused [wih ; whh] per layer (zero-padded rows)
    b_ref     : (L, 4H)        b_ih + b_hh
    hw_ref    : (4H, 4H)       fused [w_ret | w_pkey | w_args | 0] head weight (rows >= H are 0)
    hb_ref    : (1, 4H)        fused head bias
    heads_ref : (T, 4H)        lane 0 = ret, lanes [1:1+pk] = pkey, next = args
    hc_ref    : (2L, 4H)       final h (rows 0:L) and c (rows L:2L), zero-padded
    """
    L, H = n_layers, hidden
    LANE = 4 * H
    T = x_ref.shape[0]

    lane = jax.lax.broadcasted_iota(jnp.int32, (1, LANE), 1)
    zpad = jnp.zeros((1, LANE - H), jnp.float32)

    def step(t, carry):
        hs, cs = carry                                   # hs[l]: (1, LANE); cs[l]: (1, H)
        inp = x_ref[pl.ds(t, 1), :]                      # (1, LANE), zeros past in_dim
        new_hs, new_cs = [], []
        for l in range(L):                               # statically unrolled layers
            xh = jnp.concatenate([inp, hs[l]], axis=-1)  # (1, 2*LANE)
            z = (jnp.dot(xh, w_ref[l], preferred_element_type=jnp.float32)
                 + b_ref[pl.ds(l, 1), :])                # (1, LANE) = [i | f | g | o]
            sg = jax.nn.sigmoid(z)                       # full-vreg EUP
            th = jnp.tanh(z)
            i = sg[:, 0:H]
            f = sg[:, H:2 * H]
            g = th[:, 2 * H:3 * H]
            o = sg[:, 3 * H:4 * H]
            c_new = f * cs[l] + i * g                    # (1, H)
            h_new = jnp.concatenate([o * jnp.tanh(c_new), zpad], axis=-1)  # (1, LANE)
            new_hs.append(h_new)
            new_cs.append(c_new)
            inp = h_new                                  # input to next layer

        # Fused 3-head projection: one MXU push, one lane-dense (1, 128) store.
        zh = (jnp.dot(inp, hw_ref[...], preferred_element_type=jnp.float32)
              + hb_ref[...])                             # (1, LANE)
        heads_ref[pl.ds(t, 1), :] = jnp.where(lane < 1, jax.nn.sigmoid(zh), jnp.tanh(zh))
        return tuple(new_hs), tuple(new_cs)

    init_hs = tuple(hc0_ref[pl.ds(l, 1), :] for l in range(L))
    init_cs = tuple(hc0_ref[pl.ds(L + l, 1), 0:H] for l in range(L))
    hs, cs = jax.lax.fori_loop(0, T, step, (init_hs, init_cs),
                               unroll=True if T <= 16 else False)

    for l in range(L):
        hc_ref[pl.ds(l, 1), :] = hs[l]
        hc_ref[pl.ds(L + l, 1), :] = jnp.concatenate([cs[l], zpad], axis=-1)


def npi_core_sequence(x_seq, params, h0, c0, pkey_dim, args_dim):
    """Run T NPICore timesteps in ONE Pallas kernel call.

    x_seq : (T, in_dim) rows = concat([state, prog]) for each step.
    Returns (ret (T,), pkey (T, pkey_dim), args (T, args_dim), (h_T, c_T)).
    """
    L, LANE = params["b"].shape
    H = LANE // 4
    T, in_dim = x_seq.shape
    assert in_dim <= LANE

    x_pad = jnp.zeros((T, LANE), jnp.float32).at[:, :in_dim].set(x_seq.astype(jnp.float32))
    hc0 = jnp.zeros((2 * L, LANE), jnp.float32)
    hc0 = hc0.at[:L, :H].set(h0.reshape(L, H))
    hc0 = hc0.at[L:, :H].set(c0.reshape(L, H))

    kernel = functools.partial(_npi_core_kernel, L, H)
    vmem = pl.BlockSpec(memory_space=pltpu.MemorySpace.VMEM)

    heads, hc = pl.pallas_call(
        kernel,
        out_shape=(jax.ShapeDtypeStruct((T, LANE), jnp.float32),
                   jax.ShapeDtypeStruct((2 * L, LANE), jnp.float32)),
        in_specs=[vmem] * 6,
        out_specs=(vmem, vmem),
    )(x_pad, hc0, params["w"], params["b"], params["head_w"], params["head_b"])

    ret = heads[:, 0]
    pkey = heads[:, 1:1 + pkey_dim]
    args = heads[:, 1 + pkey_dim:1 + pkey_dim + args_dim]
    h_new = hc[:L, :H].reshape(L, 1, H)
    c_new = hc[L:, :H].reshape(L, 1, H)
    return ret, pkey, args, (h_new, c_new)


def npi_core_forward(state, prog, params, h0, c0, pkey_dim, args_dim):
    """Single-step API mirroring NPICore.forward(state, prog)."""
    x = jnp.concatenate([state, prog], axis=-1)[None, :]         # (1, in_dim)
    ret, pkey, args, hc = npi_core_sequence(x, params, h0, c0, pkey_dim, args_dim)
    return ret.reshape(-1), pkey[0], args[0], hc


def init_params(key, state_dim, prog_dim, hidden_dim, n_layers, pkey_dim, args_dim):
    """Deterministic synthetic params (PyTorch-style uniform(-1/sqrt(H), 1/sqrt(H))).

    Returns (packed, raw): `packed` = lane-dense slabs consumed by the kernel,
    `raw` = torch-layout weights used by the pure-JAX reference.
    Invariant relied upon by the kernel: all padding rows/cols in `packed` are zero.
    """
    in_dim = state_dim + prog_dim
    H = hidden_dim
    LANE = 4 * H
    assert in_dim <= LANE and H <= LANE
    assert 1 + pkey_dim + args_dim <= LANE
    bound = 1.0 / np.sqrt(H)

    keys = jax.random.split(key, 4 * n_layers + 6)
    it = iter(keys)

    def u(shape):
        return jax.random.uniform(next(it), shape, jnp.float32, -bound, bound)

    raw = {"w_ih": [], "w_hh": [], "b_ih": [], "b_hh": []}
    w_slab = np.zeros((n_layers, 2 * LANE, LANE), np.float32)
    b_slab = np.zeros((n_layers, LANE), np.float32)
    for l in range(n_layers):
        d = in_dim if l == 0 else H
        w_ih = u((4 * H, d))                 # torch layout (4H, d), gate order [i,f,g,o]
        w_hh = u((4 * H, H))
        b_ih = u((4 * H,))
        b_hh = u((4 * H,))
        raw["w_ih"].append(w_ih)
        raw["w_hh"].append(w_hh)
        raw["b_ih"].append(b_ih)
        raw["b_hh"].append(b_hh)
        w_slab[l, :d, :] = np.asarray(w_ih).T            # rows [0:d]        : input weights
        w_slab[l, LANE:LANE + H, :] = np.asarray(w_hh).T  # rows [LANE:LANE+H]: recurrent weights
        b_slab[l, :] = np.asarray(b_ih + b_hh)

    w_ret = u((1, H));        b_ret = u((1,))
    w_pkey = u((pkey_dim, H)); b_pkey = u((pkey_dim,))
    w_args = u((args_dim, H)); b_args = u((args_dim,))
    raw.update(w_ret=w_ret, b_ret=b_ret, w_pkey=w_pkey, b_pkey=b_pkey,
               w_args=w_args, b_args=b_args)

    head_w = np.zeros((LANE, LANE), np.float32)
    head_b = np.zeros((1, LANE), np.float32)
    head_w[:H, 0] = np.asarray(w_ret)[0]
    head_w[:H, 1:1 + pkey_dim] = np.asarray(w_pkey).T
    head_w[:H, 1 + pkey_dim:1 + pkey_dim + args_dim] = np.asarray(w_args).T
    head_b[0, 0] = np.asarray(b_ret)[0]
    head_b[0, 1:1 + pkey_dim] = np.asarray(b_pkey)
    head_b[0, 1 + pkey_dim:1 + pkey_dim + args_dim] = np.asarray(b_args)

    packed = {
        "w": jnp.asarray(w_slab),          # (L, 2*4H, 4H)
        "b": jnp.asarray(b_slab),          # (L, 4H)
        "head_w": jnp.asarray(head_w),     # (4H, 4H)
        "head_b": jnp.asarray(head_b),     # (1, 4H)
    }
    return packed, raw


def _reference_step(x, raw, h, c):
    """Pure-JAX reference of one NPICore.forward step (torch-layout weights)."""
    H = h.shape[1]
    L = h.shape[0]
    inp = x
    h_out, c_out = [], []
    for l in range(L):
        gates = (raw["w_ih"][l] @ inp + raw["b_ih"][l]
                 + raw["w_hh"][l] @ h[l] + raw["b_hh"][l])
        i = jax.nn.sigmoid(gates[0:H])
        f = jax.nn.sigmoid(gates[H:2 * H])
        g = jnp.tanh(gates[2 * H:3 * H])
        o = jax.nn.sigmoid(gates[3 * H:4 * H])
        c_l = f * c[l] + i * g
        h_l = o * jnp.tanh(c_l)
        h_out.append(h_l)
        c_out.append(c_l)
        inp = h_l
    ret = jax.nn.sigmoid(raw["w_ret"] @ inp + raw["b_ret"])
    pkey = jnp.tanh(raw["w_pkey"] @ inp + raw["b_pkey"])
    args = jnp.tanh(raw["w_args"] @ inp + raw["b_args"])
    return ret, pkey, args, jnp.stack(h_out), jnp.stack(c_out)


if __name__ == "__main__":
    state_dim, prog_dim = 16, 8
    hidden_dim, n_lstm_layers = 32, 2
    pkey_dim, args_dim = 8, 8
    T = 8

    key = jax.random.PRNGKey(0)
    k_params, k_state, k_prog = jax.random.split(key, 3)
    packed, raw = init_params(k_params, state_dim, prog_dim, hidden_dim,
                              n_lstm_layers, pkey_dim, args_dim)

    states = jax.random.normal(k_state, (T, state_dim), jnp.float32)
    progs = jax.random.normal(k_prog, (T, prog_dim), jnp.float32)
    x_seq = jnp.concatenate([states, progs], axis=-1)             # (T, in_dim)

    # Module constructor / reset(): zero initial LSTM state.
    h0 = jnp.zeros((n_lstm_layers, 1, hidden_dim), jnp.float32)
    c0 = jnp.zeros((n_lstm_layers, 1, hidden_dim), jnp.float32)

    # --- multi-step: whole T-step time loop inside ONE Pallas kernel ---
    ret_s, pkey_s, args_s, (h_T, c_T) = npi_core_sequence(
        x_seq, packed, h0, c0, pkey_dim, args_dim)
    jax.block_until_ready((ret_s, pkey_s, args_s, h_T, c_T))

    # Pure-JAX reference: step the module T times.
    h = jnp.zeros((n_lstm_layers, hidden_dim), jnp.float32)
    c = jnp.zeros((n_lstm_layers, hidden_dim), jnp.float32)
    ret_r, pkey_r, args_r = [], [], []
    for t in range(T):
        r, p, a, h, c = _reference_step(x_seq[t], raw, h, c)
        ret_r.append(r)
        pkey_r.append(p)
        args_r.append(a)
    ret_r = jnp.stack(ret_r)[:, 0]
    pkey_r = jnp.stack(pkey_r)
    args_r = jnp.stack(args_r)

    np.testing.assert_allclose(np.asarray(ret_s), np.asarray(ret_r), rtol=1e-4, atol=1e-4)
    np.testing.assert_allclose(np.asarray(pkey_s), np.asarray(pkey_r), rtol=1e-4, atol=1e-4)
    np.testing.assert_allclose(np.asarray(args_s), np.asarray(args_r), rtol=1e-4, atol=1e-4)
    np.testing.assert_allclose(np.asarray(h_T[:, 0]), np.asarray(h), rtol=1e-4, atol=1e-4)
    np.testing.assert_allclose(np.asarray(c_T[:, 0]), np.asarray(c), rtol=1e-4, atol=1e-4)

    # --- single-step API (matches NPICore.forward after reset()) ---
    ret1, pkey1, args1, (h1, c1) = npi_core_forward(
        states[0], progs[0], packed, h0, c0, pkey_dim, args_dim)
    jax.block_until_ready((ret1, pkey1, args1, h1, c1))
    np.testing.assert_allclose(np.asarray(ret1), np.asarray(ret_r[0:1]), rtol=1e-4, atol=1e-4)
    np.testing.assert_allclose(np.asarray(pkey1), np.asarray(pkey_r[0]), rtol=1e-4, atol=1e-4)
    np.testing.assert_allclose(np.asarray(args1), np.asarray(args_r[0]), rtol=1e-4, atol=1e-4)

    print("KERNEL_OK")
</pallas_src>

<mosaic_0001>
module attributes {stable_mosaic.version = 11 : i64} {
  func.func @_npi_core_kernel(%arg0: memref<8x128xf32, #tpu.memory_space<vmem>>, %arg1: memref<4x128xf32, #tpu.memory_space<vmem>>, %arg2: memref<2x256x128xf32, #tpu.memory_space<vmem>>, %arg3: memref<2x128xf32, #tpu.memory_space<vmem>>, %arg4: memref<128x128xf32, #tpu.memory_space<vmem>>, %arg5: memref<1x128xf32, #tpu.memory_space<vmem>>, %arg6: memref<8x128xf32, #tpu.memory_space<vmem>>, %arg7: memref<4x128xf32, #tpu.memory_space<vmem>>) attributes {dimension_semantics = [], scalar_prefetch = 0 : i64, scratch_operands = 0 : i64, tpu.core_type = #tpu.core_type<tc>} {
    %0 = tpu.iota {dimensions = array<i32: 1>} : vector<1x128xi32>
    %cst = arith.constant 0.000000e+00 : f32
    %1 = vector.broadcast %cst : f32 to vector<1x96xf32>
    %c0 = arith.constant 0 : index
    %c0_0 = arith.constant 0 : index
    %2 = vector.load %arg1[%c0, %c0_0] : memref<4x128xf32, #tpu.memory_space<vmem>>, vector<1x128xf32>
    %c1 = arith.constant 1 : index
    %c0_1 = arith.constant 0 : index
    %3 = vector.load %arg1[%c1, %c0_1] : memref<4x128xf32, #tpu.memory_space<vmem>>, vector<1x128xf32>
    %c2 = arith.constant 2 : index
    %c0_2 = arith.constant 0 : index
    %4 = vector.load %arg1[%c2, %c0_2] : memref<4x128xf32, #tpu.memory_space<vmem>>, vector<1x32xf32>
    %c3 = arith.constant 3 : index
    %c0_3 = arith.constant 0 : index
    %5 = vector.load %arg1[%c3, %c0_3] : memref<4x128xf32, #tpu.memory_space<vmem>>, vector<1x32xf32>
    %c0_i32 = arith.constant 0 : i32
    %6 = arith.index_cast %c0_i32 : i32 to index
    %c0_4 = arith.constant 0 : index
    %7 = vector.load %arg0[%6, %c0_4] : memref<8x128xf32, #tpu.memory_space<vmem>>, vector<1x128xf32>
    %8 = tpu.concatenate %7, %2 in 1 : vector<1x128xf32>, vector<1x128xf32> -> vector<1x256xf32>
    %c0_5 = arith.constant 0 : index
    %c0_6 = arith.constant 0 : index
    %c0_7 = arith.constant 0 : index
    %9 = vector.load %arg2[%c0_5, %c0_6, %c0_7] : memref<2x256x128xf32, #tpu.memory_space<vmem>>, vector<1x256x128xf32>
    %10 = vector.shape_cast %9 : vector<1x256x128xf32> to vector<256x128xf32>
    %cst_8 = arith.constant dense<0.000000e+00> : vector<1x128xf32>
    %11 = tpu.matmul %8, %10, %cst_8 {dimension_numbers = #tpu.dot_dimension_numbers<[1], [0], [0], [1], [0, 0, 1, 1], [], []>} : vector<1x256xf32>, vector<256x128xf32>, vector<1x128xf32> -> vector<1x128xf32>
    %c0_9 = arith.constant 0 : index
    %c0_10 = arith.constant 0 : index
    %12 = vector.load %arg3[%c0_9, %c0_10] : memref<2x128xf32, #tpu.memory_space<vmem>>, vector<1x128xf32>
    %13 = arith.addf %11, %12 : vector<1x128xf32>
    %14 = arith.negf %13 : vector<1x128xf32>
    %15 = math.exp %14 : vector<1x128xf32>
    %cst_11 = arith.constant 1.000000e+00 : f32
    %16 = vector.broadcast %cst_11 : f32 to vector<1x128xf32>
    %17 = arith.addf %16, %15 : vector<1x128xf32>
    %18 = arith.divf %16, %17 : vector<1x128xf32>
    %19 = math.tanh %13 : vector<1x128xf32>
    %20 = vector.extract_strided_slice %18 {offsets = [0, 0], sizes = [1, 32], strides = [1, 1]} : vector<1x128xf32> to vector<1x32xf32>
    %21 = vector.extract_strided_slice %18 {offsets = [0, 32], sizes = [1, 32], strides = [1, 1]} : vector<1x128xf32> to vector<1x32xf32>
    %22 = vector.extract_strided_slice %19 {offsets = [0, 64], sizes = [1, 32], strides = [1, 1]} : vector<1x128xf32> to vector<1x32xf32>
    %23 = vector.extract_strided_slice %18 {offsets = [0, 96], sizes = [1, 32], strides = [1, 1]} : vector<1x128xf32> to vector<1x32xf32>
    %24 = arith.mulf %21, %4 : vector<1x32xf32>
    %25 = arith.mulf %20, %22 : vector<1x32xf32>
    %26 = arith.addf %24, %25 : vector<1x32xf32>
    %27 = math.tanh %26 : vector<1x32xf32>
    %28 = arith.mulf %23, %27 : vector<1x32xf32>
    %29 = tpu.concatenate %28, %1 in 1 : vector<1x32xf32>, vector<1x96xf32> -> vector<1x128xf32>
    %30 = tpu.concatenate %29, %3 in 1 : vector<1x128xf32>, vector<1x128xf32> -> vector<1x256xf32>
    %c1_12 = arith.constant 1 : index
    %c0_13 = arith.constant 0 : index
    %c0_14 = arith.constant 0 : index
    %31 = vector.load %arg2[%c1_12, %c0_13, %c0_14] : memref<2x256x128xf32, #tpu.memory_space<vmem>>, vector<1x256x128xf32>
    %32 = vector.shape_cast %31 : vector<1x256x128xf32> to vector<256x128xf32>
    %cst_15 = arith.constant dense<0.000000e+00> : vector<1x128xf32>
    %33 = tpu.matmul %30, %32, %cst_15 {dimension_numbers = #tpu.dot_dimension_numbers<[1], [0], [0], [1], [0, 0, 1, 1], [], []>} : vector<1x256xf32>, vector<256x128xf32>, vector<1x128xf32> -> vector<1x128xf32>
    %c1_16 = arith.constant 1 : index
    %c0_17 = arith.constant 0 : index
    %34 = vector.load %arg3[%c1_16, %c0_17] : memref<2x128xf32, #tpu.memory_space<vmem>>, vector<1x128xf32>
    %35 = arith.addf %33, %34 : vector<1x128xf32>
    %36 = arith.negf %35 : vector<1x128xf32>
    %37 = math.exp %36 : vector<1x128xf32>
    %cst_18 = arith.constant 1.000000e+00 : f32
    %38 = vector.broadcast %cst_18 : f32 to vector<1x128xf32>
    %39 = arith.addf %38, %37 : vector<1x128xf32>
    %40 = arith.divf %38, %39 : vector<1x128xf32>
    %41 = math.tanh %35 : vector<1x128xf32>
    %42 = vector.extract_strided_slice %40 {offsets = [0, 0], sizes = [1, 32], strides = [1, 1]} : vector<1x128xf32> to vector<1x32xf32>
    %43 = vector.extract_strided_slice %40 {offsets = [0, 32], sizes = [1, 32], strides = [1, 1]} : vector<1x128xf32> to vector<1x32xf32>
    %44 = vector.extract_strided_slice %41 {offsets = [0, 64], sizes = [1, 32], strides = [1, 1]} : vector<1x128xf32> to vector<1x32xf32>
    %45 = vector.extract_strided_slice %40 {offsets = [0, 96], sizes = [1, 32], strides = [1, 1]} : vector<1x128xf32> to vector<1x32xf32>
    %46 = arith.mulf %43, %5 : vector<1x32xf32>
    %47 = arith.mulf %42, %44 : vector<1x32xf32>
    %48 = arith.addf %46, %47 : vector<1x32xf32>
    %49 = math.tanh %48 : vector<1x32xf32>
    %50 = arith.mulf %45, %49 : vector<1x32xf32>
    %51 = tpu.concatenate %50, %1 in 1 : vector<1x32xf32>, vector<1x96xf32> -> vector<1x128xf32>
    %c0_19 = arith.constant 0 : index
    %c0_20 = arith.constant 0 : index
    %52 = vector.load %arg4[%c0_19, %c0_20] : memref<128x128xf32, #tpu.memory_space<vmem>>, vector<128x128xf32>
    %cst_21 = arith.constant dense<0.000000e+00> : vector<1x128xf32>
    %53 = tpu.matmul %51, %52, %cst_21 {dimension_numbers = #tpu.dot_dimension_numbers<[1], [0], [0], [1], [0, 0, 1, 1], [], []>} : vector<1x128xf32>, vector<128x128xf32>, vector<1x128xf32> -> vector<1x128xf32>
    %c0_22 = arith.constant 0 : index
    %c0_23 = arith.constant 0 : index
    %54 = vector.load %arg5[%c0_22, %c0_23] : memref<1x128xf32, #tpu.memory_space<vmem>>, vector<1x128xf32>
    %55 = arith.addf %53, %54 : vector<1x128xf32>
    %c1_i32 = arith.constant 1 : i32
    %56 = vector.broadcast %c1_i32 : i32 to vector<1x128xi32>
    %57 = arith.cmpi slt, %0, %56 : vector<1x128xi32>
    %58 = arith.negf %55 : vector<1x128xf32>
    %59 = math.exp %58 : vector<1x128xf32>
    %cst_24 = arith.constant 1.000000e+00 : f32
    %60 = vector.broadcast %cst_24 : f32 to vector<1x128xf32>
    %61 = arith.addf %60, %59 : vector<1x128xf32>
    %62 = arith.divf %60, %61 : vector<1x128xf32>
    %63 = math.tanh %55 : vector<1x128xf32>
    %64 = arith.select %57, %62, %63 : vector<1x128xi1>, vector<1x128xf32>
    %65 = arith.index_cast %c0_i32 : i32 to index
    %c0_25 = arith.constant 0 : index
    %66 = vector.load %arg6[%65, %c0_25] : memref<8x128xf32, #tpu.memory_space<vmem>>, vector<1x128xf32>
    tpu.vector_store %arg6[%65, %c0_25], %64 {strides = array<i32>} : memref<8x128xf32, #tpu.memory_space<vmem>>, vector<1x128xf32>,
    %c1_i32_26 = arith.constant 1 : i32
    %67 = arith.index_cast %c1_i32_26 : i32 to index
    %c0_27 = arith.constant 0 : index
    %68 = vector.load %arg0[%67, %c0_27] : memref<8x128xf32, #tpu.memory_space<vmem>>, vector<1x128xf32>
    %69 = tpu.concatenate %68, %29 in 1 : vector<1x128xf32>, vector<1x128xf32> -> vector<1x256xf32>
    %c0_28 = arith.constant 0 : index
    %c0_29 = arith.constant 0 : index
    %c0_30 = arith.constant 0 : index
    %70 = vector.load %arg2[%c0_28, %c0_29, %c0_30] : memref<2x256x128xf32, #tpu.memory_space<vmem>>, vector<1x256x128xf32>
    %71 = vector.shape_cast %70 : vector<1x256x128xf32> to vector<256x128xf32>
    %cst_31 = arith.constant dense<0.000000e+00> : vector<1x128xf32>
    %72 = tpu.matmul %69, %71, %cst_31 {dimension_numbers = #tpu.dot_dimension_numbers<[1], [0], [0], [1], [0, 0, 1, 1], [], []>} : vector<1x256xf32>, vector<256x128xf32>, vector<1x128xf32> -> vector<1x128xf32>
    %c0_32 = arith.constant 0 : index
    %c0_33 = arith.constant 0 : index
    %73 = vector.load %arg3[%c0_32, %c0_33] : memref<2x128xf32, #tpu.memory_space<vmem>>, vector<1x128xf32>
    %74 = arith.addf %72, %73 : vector<1x128xf32>
    %75 = arith.negf %74 : vector<1x128xf32>
    %76 = math.exp %75 : vector<1x128xf32>
    %cst_34 = arith.constant 1.000000e+00 : f32
    %77 = vector.broadcast %cst_34 : f32 to vector<1x128xf32>
    %78 = arith.addf %77, %76 : vector<1x128xf32>
    %79 = arith.divf %77, %78 : vector<1x128xf32>
    %80 = math.tanh %74 : vector<1x128xf32>
    %81 = vector.extract_strided_slice %79 {offsets = [0, 0], sizes = [1, 32], strides = [1, 1]} : vector<1x128xf32> to vector<1x32xf32>
    %82 = vector.extract_strided_slice %79 {offsets = [0, 32], sizes = [1, 32], strides = [1, 1]} : vector<1x128xf32> to vector<1x32xf32>
    %83 = vector.extract_strided_slice %80 {offsets = [0, 64], sizes = [1, 32], strides = [1, 1]} : vector<1x128xf32> to vector<1x32xf32>
    %84 = vector.extract_strided_slice %79 {offsets = [0, 96], sizes = [1, 32], strides = [1, 1]} : vector<1x128xf32> to vector<1x32xf32>
    %85 = arith.mulf %82, %26 : vector<1x32xf32>
    %86 = arith.mulf %81, %83 : vector<1x32xf32>
    %87 = arith.addf %85, %86 : vector<1x32xf32>
    %88 = math.tanh %87 : vector<1x32xf32>
    %89 = arith.mulf %84, %88 : vector<1x32xf32>
    %90 = tpu.concatenate %89, %1 in 1 : vector<1x32xf32>, vector<1x96xf32> -> vector<1x128xf32>
    %91 = tpu.concatenate %90, %51 in 1 : vector<1x128xf32>, vector<1x128xf32> -> vector<1x256xf32>
    %c1_35 = arith.constant 1 : index
    %c0_36 = arith.constant 0 : index
    %c0_37 = arith.constant 0 : index
    %92 = vector.load %arg2[%c1_35, %c0_36, %c0_37] : memref<2x256x128xf32, #tpu.memory_space<vmem>>, vector<1x256x128xf32>
    %93 = vector.shape_cast %92 : vector<1x256x128xf32> to vector<256x128xf32>
    %cst_38 = arith.constant dense<0.000000e+00> : vector<1x128xf32>
    %94 = tpu.matmul %91, %93, %cst_38 {dimension_numbers = #tpu.dot_dimension_numbers<[1], [0], [0], [1], [0, 0, 1, 1], [], []>} : vector<1x256xf32>, vector<256x128xf32>, vector<1x128xf32> -> vector<1x128xf32>
    %c1_39 = arith.constant 1 : index
    %c0_40 = arith.constant 0 : index
    %95 = vector.load %arg3[%c1_39, %c0_40] : memref<2x128xf32, #tpu.memory_space<vmem>>, vector<1x128xf32>
    %96 = arith.addf %94, %95 : vector<1x128xf32>
    %97 = arith.negf %96 : vector<1x128xf32>
    %98 = math.exp %97 : vector<1x128xf32>
    %cst_41 = arith.constant 1.000000e+00 : f32
    %99 = vector.broadcast %cst_41 : f32 to vector<1x128xf32>
    %100 = arith.addf %99, %98 : vector<1x128xf32>
    %101 = arith.divf %99, %100 : vector<1x128xf32>
    %102 = math.tanh %96 : vector<1x128xf32>
    %103 = vector.extract_strided_slice %101 {offsets = [0, 0], sizes = [1, 32], strides = [1, 1]} : vector<1x128xf32> to vector<1x32xf32>
    %104 = vector.extract_strided_slice %101 {offsets = [0, 32], sizes = [1, 32], strides = [1, 1]} : vector<1x128xf32> to vector<1x32xf32>
    %105 = vector.extract_strided_slice %102 {offsets = [0, 64], sizes = [1, 32], strides = [1, 1]} : vector<1x128xf32> to vector<1x32xf32>
    %106 = vector.extract_strided_slice %101 {offsets = [0, 96], sizes = [1, 32], strides = [1, 1]} : vector<1x128xf32> to vector<1x32xf32>
    %107 = arith.mulf %104, %48 : vector<1x32xf32>
    %108 = arith.mulf %103, %105 : vector<1x32xf32>
    %109 = arith.addf %107, %108 : vector<1x32xf32>
    %110 = math.tanh %109 : vector<1x32xf32>
    %111 = arith.mulf %106, %110 : vector<1x32xf32>
    %112 = tpu.concatenate %111, %1 in 1 : vector<1x32xf32>, vector<1x96xf32> -> vector<1x128xf32>
    %c0_42 = arith.constant 0 : index
    %c0_43 = arith.constant 0 : index
    %113 = vector.load %arg4[%c0_42, %c0_43] : memref<128x128xf32, #tpu.memory_space<vmem>>, vector<128x128xf32>
    %cst_44 = arith.constant dense<0.000000e+00> : vector<1x128xf32>
    %114 = tpu.matmul %112, %113, %cst_44 {dimension_numbers = #tpu.dot_dimension_numbers<[1], [0], [0], [1], [0, 0, 1, 1], [], []>} : vector<1x128xf32>, vector<128x128xf32>, vector<1x128xf32> -> vector<1x128xf32>
    %c0_45 = arith.constant 0 : index
    %c0_46 = arith.constant 0 : index
    %115 = vector.load %arg5[%c0_45, %c0_46] : memref<1x128xf32, #tpu.memory_space<vmem>>, vector<1x128xf32>
    %116 = arith.addf %114, %115 : vector<1x128xf32>
    %c1_i32_47 = arith.constant 1 : i32
    %117 = vector.broadcast %c1_i32_47 : i32 to vector<1x128xi32>
    %118 = arith.cmpi slt, %0, %117 : vector<1x128xi32>
    %119 = arith.negf %116 : vector<1x128xf32>
    %120 = math.exp %119 : vector<1x128xf32>
    %cst_48 = arith.constant 1.000000e+00 : f32
    %121 = vector.broadcast %cst_48 : f32 to vector<1x128xf32>
    %122 = arith.addf %121, %120 : vector<1x128xf32>
    %123 = arith.divf %121, %122 : vector<1x128xf32>
    %124 = math.tanh %116 : vector<1x128xf32>
    %125 = arith.select %118, %123, %124 : vector<1x128xi1>, vector<1x128xf32>
    %126 = arith.index_cast %c1_i32_26 : i32 to index
    %c0_49 = arith.constant 0 : index
    %127 = vector.load %arg6[%126, %c0_49] : memref<8x128xf32, #tpu.memory_space<vmem>>, vector<1x128xf32>
    tpu.vector_store %arg6[%126, %c0_49], %125 {strides = array<i32>} : memref<8x128xf32, #tpu.memory_space<vmem>>, vector<1x128xf32>,
    %c2_i32 = arith.constant 2 : i32
    %128 = arith.index_cast %c2_i32 : i32 to index
    %c0_50 = arith.constant 0 : index
    %129 = vector.load %arg0[%128, %c0_50] : memref<8x128xf32, #tpu.memory_space<vmem>>, vector<1x128xf32>
    %130 = tpu.concatenate %129, %90 in 1 : vector<1x128xf32>, vector<1x128xf32> -> vector<1x256xf32>
    %c0_51 = arith.constant 0 : index
    %c0_52 = arith.constant 0 : index
    %c0_53 = arith.constant 0 : index
    %131 = vector.load %arg2[%c0_51, %c0_52, %c0_53] : memref<2x256x128xf32, #tpu.memory_space<vmem>>, vector<1x256x128xf32>
    %132 = vector.shape_cast %131 : vector<1x256x128xf32> to vector<256x128xf32>
    %cst_54 = arith.constant dense<0.000000e+00> : vector<1x128xf32>
    %133 = tpu.matmul %130, %132, %cst_54 {dimension_numbers = #tpu.dot_dimension_numbers<[1], [0], [0], [1], [0, 0, 1, 1], [], []>} : vector<1x256xf32>, vector<256x128xf32>, vector<1x128xf32> -> vector<1x128xf32>
    %c0_55 = arith.constant 0 : index
    %c0_56 = arith.constant 0 : index
    %134 = vector.load %arg3[%c0_55, %c0_56] : memref<2x128xf32, #tpu.memory_space<vmem>>, vector<1x128xf32>
    %135 = arith.addf %133, %134 : vector<1x128xf32>
    %136 = arith.negf %135 : vector<1x128xf32>
    %137 = math.exp %136 : vector<1x128xf32>
    %cst_57 = arith.constant 1.000000e+00 : f32
    %138 = vector.broadcast %cst_57 : f32 to vector<1x128xf32>
    %139 = arith.addf %138, %137 : vector<1x128xf32>
    %140 = arith.divf %138, %139 : vector<1x128xf32>
    %141 = math.tanh %135 : vector<1x128xf32>
    %142 = vector.extract_strided_slice %140 {offsets = [0, 0], sizes = [1, 32], strides = [1, 1]} : vector<1x128xf32> to vector<1x32xf32>
    %143 = vector.extract_strided_slice %140 {offsets = [0, 32], sizes = [1, 32], strides = [1, 1]} : vector<1x128xf32> to vector<1x32xf32>
    %144 = vector.extract_strided_slice %141 {offsets = [0, 64], sizes = [1, 32], strides = [1, 1]} : vector<1x128xf32> to vector<1x32xf32>
    %145 = vector.extract_strided_slice %140 {offsets = [0, 96], sizes = [1, 32], strides = [1, 1]} : vector<1x128xf32> to vector<1x32xf32>
    %146 = arith.mulf %143, %87 : vector<1x32xf32>
    %147 = arith.mulf %142, %144 : vector<1x32xf32>
    %148 = arith.addf %146, %147 : vector<1x32xf32>
    %149 = math.tanh %148 : vector<1x32xf32>
    %150 = arith.mulf %145, %149 : vector<1x32xf32>
    %151 = tpu.concatenate %150, %1 in 1 : vector<1x32xf32>, vector<1x96xf32> -> vector<1x128xf32>
    %152 = tpu.concatenate %151, %112 in 1 : vector<1x128xf32>, vector<1x128xf32> -> vector<1x256xf32>
    %c1_58 = arith.constant 1 : index
    %c0_59 = arith.constant 0 : index
    %c0_60 = arith.constant 0 : index
    %153 = vector.load %arg2[%c1_58, %c0_59, %c0_60] : memref<2x256x128xf32, #tpu.memory_space<vmem>>, vector<1x256x128xf32>
    %154 = vector.shape_cast %153 : vector<1x256x128xf32> to vector<256x128xf32>
    %cst_61 = arith.constant dense<0.000000e+00> : vector<1x128xf32>
    %155 = tpu.matmul %152, %154, %cst_61 {dimension_numbers = #tpu.dot_dimension_numbers<[1], [0], [0], [1], [0, 0, 1, 1], [], []>} : vector<1x256xf32>, vector<256x128xf32>, vector<1x128xf32> -> vector<1x128xf32>
    %c1_62 = arith.constant 1 : index
    %c0_63 = arith.constant 0 : index
    %156 = vector.load %arg3[%c1_62, %c0_63] : memref<2x128xf32, #tpu.memory_space<vmem>>, vector<1x128xf32>
    %157 = arith.addf %155, %156 : vector<1x128xf32>
    %158 = arith.negf %157 : vector<1x128xf32>
    %159 = math.exp %158 : vector<1x128xf32>
    %cst_64 = arith.constant 1.000000e+00 : f32
    %160 = vector.broadcast %cst_64 : f32 to vector<1x128xf32>
    %161 = arith.addf %160, %159 : vector<1x128xf32>
    %162 = arith.divf %160, %161 : vector<1x128xf32>
    %163 = math.tanh %157 : vector<1x128xf32>
    %164 = vector.extract_strided_slice %162 {offsets = [0, 0], sizes = [1, 32], strides = [1, 1]} : vector<1x128xf32> to vector<1x32xf32>
    %165 = vector.extract_strided_slice %162 {offsets = [0, 32], sizes = [1, 32], strides = [1, 1]} : vector<1x128xf32> to vector<1x32xf32>
    %166 = vector.extract_strided_slice %163 {offsets = [0, 64], sizes = [1, 32], strides = [1, 1]} : vector<1x128xf32> to vector<1x32xf32>
    %167 = vector.extract_strided_slice %162 {offsets = [0, 96], sizes = [1, 32], strides = [1, 1]} : vector<1x128xf32> to vector<1x32xf32>
    %168 = arith.mulf %165, %109 : vector<1x32xf32>
    %169 = arith.mulf %164, %166 : vector<1x32xf32>
    %170 = arith.addf %168, %169 : vector<1x32xf32>
    %171 = math.tanh %170 : vector<1x32xf32>
    %172 = arith.mulf %167, %171 : vector<1x32xf32>
    %173 = tpu.concatenate %172, %1 in 1 : vector<1x32xf32>, vector<1x96xf32> -> vector<1x128xf32>
    %c0_65 = arith.constant 0 : index
    %c0_66 = arith.constant 0 : index
    %174 = vector.load %arg4[%c0_65, %c0_66] : memref<128x128xf32, #tpu.memory_space<vmem>>, vector<128x128xf32>
    %cst_67 = arith.constant dense<0.000000e+00> : vector<1x128xf32>
    %175 = tpu.matmul %173, %174, %cst_67 {dimension_numbers = #tpu.dot_dimension_numbers<[1], [0], [0], [1], [0, 0, 1, 1], [], []>} : vector<1x128xf32>, vector<128x128xf32>, vector<1x128xf32> -> vector<1x128xf32>
    %c0_68 = arith.constant 0 : index
    %c0_69 = arith.constant 0 : index
    %176 = vector.load %arg5[%c0_68, %c0_69] : memref<1x128xf32, #tpu.memory_space<vmem>>, vector<1x128xf32>
    %177 = arith.addf %175, %176 : vector<1x128xf32>
    %c1_i32_70 = arith.constant 1 : i32
    %178 = vector.broadcast %c1_i32_70 : i32 to vector<1x128xi32>
    %179 = arith.cmpi slt, %0, %178 : vector<1x128xi32>
    %180 = arith.negf %177 : vector<1x128xf32>
    %181 = math.exp %180 : vector<1x128xf32>
    %cst_71 = arith.constant 1.000000e+00 : f32
    %182 = vector.broadcast %cst_71 : f32 to vector<1x128xf32>
    %183 = arith.addf %182, %181 : vector<1x128xf32>
    %184 = arith.divf %182, %183 : vector<1x128xf32>
    %185 = math.tanh %177 : vector<1x128xf32>
    %186 = arith.select %179, %184, %185 : vector<1x128xi1>, vector<1x128xf32>
    %187 = arith.index_cast %c2_i32 : i32 to index
    %c0_72 = arith.constant 0 : index
    %188 = vector.load %arg6[%187, %c0_72] : memref<8x128xf32, #tpu.memory_space<vmem>>, vector<1x128xf32>
    tpu.vector_store %arg6[%187, %c0_72], %186 {strides = array<i32>} : memref<8x128xf32, #tpu.memory_space<vmem>>, vector<1x128xf32>,
    %c3_i32 = arith.constant 3 : i32
    %189 = arith.index_cast %c3_i32 : i32 to index
    %c0_73 = arith.constant 0 : index
    %190 = vector.load %arg0[%189, %c0_73] : memref<8x128xf32, #tpu.memory_space<vmem>>, vector<1x128xf32>
    %191 = tpu.concatenate %190, %151 in 1 : vector<1x128xf32>, vector<1x128xf32> -> vector<1x256xf32>
    %c0_74 = arith.constant 0 : index
    %c0_75 = arith.constant 0 : index
    %c0_76 = arith.constant 0 : index
    %192 = vector.load %arg2[%c0_74, %c0_75, %c0_76] : memref<2x256x128xf32, #tpu.memory_space<vmem>>, vector<1x256x128xf32>
    %193 = vector.shape_cast %192 : vector<1x256x128xf32> to vector<256x128xf32>
    %cst_77 = arith.constant dense<0.000000e+00> : vector<1x128xf32>
    %194 = tpu.matmul %191, %193, %cst_77 {dimension_numbers = #tpu.dot_dimension_numbers<[1], [0], [0], [1], [0, 0, 1, 1], [], []>} : vector<1x256xf32>, vector<256x128xf32>, vector<1x128xf32> -> vector<1x128xf32>
    %c0_78 = arith.constant 0 : index
    %c0_79 = arith.constant 0 : index
    %195 = vector.load %arg3[%c0_78, %c0_79] : memref<2x128xf32, #tpu.memory_space<vmem>>, vector<1x128xf32>
    %196 = arith.addf %194, %195 : vector<1x128xf32>
    %197 = arith.negf %196 : vector<1x128xf32>
    %198 = math.exp %197 : vector<1x128xf32>
    %cst_80 = arith.constant 1.000000e+00 : f32
    %199 = vector.broadcast %cst_80 : f32 to vector<1x128xf32>
    %200 = arith.addf %199, %198 : vector<1x128xf32>
    %201 = arith.divf %199, %200 : vector<1x128xf32>
    %202 = math.tanh %196 : vector<1x128xf32>
    %203 = vector.extract_strided_slice %201 {offsets = [0, 0], sizes = [1, 32], strides = [1, 1]} : vector<1x128xf32> to vector<1x32xf32>
    %204 = vector.extract_strided_slice %201 {offsets = [0, 32], sizes = [1, 32], strides = [1, 1]} : vector<1x128xf32> to vector<1x32xf32>
    %205 = vector.extract_strided_slice %202 {offsets = [0, 64], sizes = [1, 32], strides = [1, 1]} : vector<1x128xf32> to vector<1x32xf32>
    %206 = vector.extract_strided_slice %201 {offsets = [0, 96], sizes = [1, 32], strides = [1, 1]} : vector<1x128xf32> to vector<1x32xf32>
    %207 = arith.mulf %204, %148 : vector<1x32xf32>
    %208 = arith.mulf %203, %205 : vector<1x32xf32>
    %209 = arith.addf %207, %208 : vector<1x32xf32>
    %210 = math.tanh %209 : vector<1x32xf32>
    %211 = arith.mulf %206, %210 : vector<1x32xf32>
    %212 = tpu.concatenate %211, %1 in 1 : vector<1x32xf32>, vector<1x96xf32> -> vector<1x128xf32>
    %213 = tpu.concatenate %212, %173 in 1 : vector<1x128xf32>, vector<1x128xf32> -> vector<1x256xf32>
    %c1_81 = arith.constant 1 : index
    %c0_82 = arith.constant 0 : index
    %c0_83 = arith.constant 0 : index
    %214 = vector.load %arg2[%c1_81, %c0_82, %c0_83] : memref<2x256x128xf32, #tpu.memory_space<vmem>>, vector<1x256x128xf32>
    %215 = vector.shape_cast %214 : vector<1x256x128xf32> to vector<256x128xf32>
    %cst_84 = arith.constant dense<0.000000e+00> : vector<1x128xf32>
    %216 = tpu.matmul %213, %215, %cst_84 {dimension_numbers = #tpu.dot_dimension_numbers<[1], [0], [0], [1], [0, 0, 1, 1], [], []>} : vector<1x256xf32>, vector<256x128xf32>, vector<1x128xf32> -> vector<1x128xf32>
    %c1_85 = arith.constant 1 : index
    %c0_86 = arith.constant 0 : index
    %217 = vector.load %arg3[%c1_85, %c0_86] : memref<2x128xf32, #tpu.memory_space<vmem>>, vector<1x128xf32>
    %218 = arith.addf %216, %217 : vector<1x128xf32>
    %219 = arith.negf %218 : vector<1x128xf32>
    %220 = math.exp %219 : vector<1x128xf32>
    %cst_87 = arith.constant 1.000000e+00 : f32
    %221 = vector.broadcast %cst_87 : f32 to vector<1x128xf32>
    %222 = arith.addf %221, %220 : vector<1x128xf32>
    %223 = arith.divf %221, %222 : vector<1x128xf32>
    %224 = math.tanh %218 : vector<1x128xf32>
    %225 = vector.extract_strided_slice %223 {offsets = [0, 0], sizes = [1, 32], strides = [1, 1]} : vector<1x128xf32> to vector<1x32xf32>
    %226 = vector.extract_strided_slice %223 {offsets = [0, 32], sizes = [1, 32], strides = [1, 1]} : vector<1x128xf32> to vector<1x32xf32>
    %227 = vector.extract_strided_slice %224 {offsets = [0, 64], sizes = [1, 32], strides = [1, 1]} : vector<1x128xf32> to vector<1x32xf32>
    %228 = vector.extract_strided_slice %223 {offsets = [0, 96], sizes = [1, 32], strides = [1, 1]} : vector<1x128xf32> to vector<1x32xf32>
    %229 = arith.mulf %226, %170 : vector<1x32xf32>
    %230 = arith.mulf %225, %227 : vector<1x32xf32>
    %231 = arith.addf %229, %230 : vector<1x32xf32>
    %232 = math.tanh %231 : vector<1x32xf32>
    %233 = arith.mulf %228, %232 : vector<1x32xf32>
    %234 = tpu.concatenate %233, %1 in 1 : vector<1x32xf32>, vector<1x96xf32> -> vector<1x128xf32>
    %c0_88 = arith.constant 0 : index
    %c0_89 = arith.constant 0 : index
    %235 = vector.load %arg4[%c0_88, %c0_89] : memref<128x128xf32, #tpu.memory_space<vmem>>, vector<128x128xf32>
    %cst_90 = arith.constant dense<0.000000e+00> : vector<1x128xf32>
    %236 = tpu.matmul %234, %235, %cst_90 {dimension_numbers = #tpu.dot_dimension_numbers<[1], [0], [0], [1], [0, 0, 1, 1], [], []>} : vector<1x128xf32>, vector<128x128xf32>, vector<1x128xf32> -> vector<1x128xf32>
    %c0_91 = arith.constant 0 : index
    %c0_92 = arith.constant 0 : index
    %237 = vector.load %arg5[%c0_91, %c0_92] : memref<1x128xf32, #tpu.memory_space<vmem>>, vector<1x128xf32>
    %238 = arith.addf %236, %237 : vector<1x128xf32>
    %c1_i32_93 = arith.constant 1 : i32
    %239 = vector.broadcast %c1_i32_93 : i32 to vector<1x128xi32>
    %240 = arith.cmpi slt, %0, %239 : vector<1x128xi32>
    %241 = arith.negf %238 : vector<1x128xf32>
    %242 = math.exp %241 : vector<1x128xf32>
    %cst_94 = arith.constant 1.000000e+00 : f32
    %243 = vector.broadcast %cst_94 : f32 to vector<1x128xf32>
    %244 = arith.addf %243, %242 : vector<1x128xf32>
    %245 = arith.divf %243, %244 : vector<1x128xf32>
    %246 = math.tanh %238 : vector<1x128xf32>
    %247 = arith.select %240, %245, %246 : vector<1x128xi1>, vector<1x128xf32>
    %248 = arith.index_cast %c3_i32 : i32 to index
    %c0_95 = arith.constant 0 : index
    %249 = vector.load %arg6[%248, %c0_95] : memref<8x128xf32, #tpu.memory_space<vmem>>, vector<1x128xf32>
    tpu.vector_store %arg6[%248, %c0_95], %247 {strides = array<i32>} : memref<8x128xf32, #tpu.memory_space<vmem>>, vector<1x128xf32>,
    %c4_i32 = arith.constant 4 : i32
    %250 = arith.index_cast %c4_i32 : i32 to index
    %c0_96 = arith.constant 0 : index
    %251 = vector.load %arg0[%250, %c0_96] : memref<8x128xf32, #tpu.memory_space<vmem>>, vector<1x128xf32>
    %252 = tpu.concatenate %251, %212 in 1 : vector<1x128xf32>, vector<1x128xf32> -> vector<1x256xf32>
    %c0_97 = arith.constant 0 : index
    %c0_98 = arith.constant 0 : index
    %c0_99 = arith.constant 0 : index
    %253 = vector.load %arg2[%c0_97, %c0_98, %c0_99] : memref<2x256x128xf32, #tpu.memory_space<vmem>>, vector<1x256x128xf32>
    %254 = vector.shape_cast %253 : vector<1x256x128xf32> to vector<256x128xf32>
    %cst_100 = arith.constant dense<0.000000e+00> : vector<1x128xf32>
    %255 = tpu.matmul %252, %254, %cst_100 {dimension_numbers = #tpu.dot_dimension_numbers<[1], [0], [0], [1], [0, 0, 1, 1], [], []>} : vector<1x256xf32>, vector<256x128xf32>, vector<1x128xf32> -> vector<1x128xf32>
    %c0_101 = arith.constant 0 : index
    %c0_102 = arith.constant 0 : index
    %256 = vector.load %arg3[%c0_101, %c0_102] : memref<2x128xf32, #tpu.memory_space<vmem>>, vector<1x128xf32>
    %257 = arith.addf %255, %256 : vector<1x128xf32>
    %258 = arith.negf %257 : vector<1x128xf32>
    %259 = math.exp %258 : vector<1x128xf32>
    %cst_103 = arith.constant 1.000000e+00 : f32
    %260 = vector.broadcast %cst_103 : f32 to vector<1x128xf32>
    %261 = arith.addf %260, %259 : vector<1x128xf32>
    %262 = arith.divf %260, %261 : vector<1x128xf32>
    %263 = math.tanh %257 : vector<1x128xf32>
    %264 = vector.extract_strided_slice %262 {offsets = [0, 0], sizes = [1, 32], strides = [1, 1]} : vector<1x128xf32> to vector<1x32xf32>
    %265 = vector.extract_strided_slice %262 {offsets = [0, 32], sizes = [1, 32], strides = [1, 1]} : vector<1x128xf32> to vector<1x32xf32>
    %266 = vector.extract_strided_slice %263 {offsets = [0, 64], sizes = [1, 32], strides = [1, 1]} : vector<1x128xf32> to vector<1x32xf32>
    %267 = vector.extract_strided_slice %262 {offsets = [0, 96], sizes = [1, 32], strides = [1, 1]} : vector<1x128xf32> to vector<1x32xf32>
    %268 = arith.mulf %265, %209 : vector<1x32xf32>
    %269 = arith.mulf %264, %266 : vector<1x32xf32>
    %270 = arith.addf %268, %269 : vector<1x32xf32>
    %271 = math.tanh %270 : vector<1x32xf32>
    %272 = arith.mulf %267, %271 : vector<1x32xf32>
    %273 = tpu.concatenate %272, %1 in 1 : vector<1x32xf32>, vector<1x96xf32> -> vector<1x128xf32>
    %274 = tpu.concatenate %273, %234 in 1 : vector<1x128xf32>, vector<1x128xf32> -> vector<1x256xf32>
    %c1_104 = arith.constant 1 : index
    %c0_105 = arith.constant 0 : index
    %c0_106 = arith.constant 0 : index
    %275 = vector.load %arg2[%c1_104, %c0_105, %c0_106] : memref<2x256x128xf32, #tpu.memory_space<vmem>>, vector<1x256x128xf32>
    %276 = vector.shape_cast %275 : vector<1x256x128xf32> to vector<256x128xf32>
    %cst_107 = arith.constant dense<0.000000e+00> : vector<1x128xf32>
    %277 = tpu.matmul %274, %276, %cst_107 {dimension_numbers = #tpu.dot_dimension_numbers<[1], [0], [0], [1], [0, 0, 1, 1], [], []>} : vector<1x256xf32>, vector<256x128xf32>, vector<1x128xf32> -> vector<1x128xf32>
    %c1_108 = arith.constant 1 : index
    %c0_109 = arith.constant 0 : index
    %278 = vector.load %arg3[%c1_108, %c0_109] : memref<2x128xf32, #tpu.memory_space<vmem>>, vector<1x128xf32>
    %279 = arith.addf %277, %278 : vector<1x128xf32>
    %280 = arith.negf %279 : vector<1x128xf32>
    %281 = math.exp %280 : vector<1x128xf32>
    %cst_110 = arith.constant 1.000000e+00 : f32
    %282 = vector.broadcast %cst_110 : f32 to vector<1x128xf32>
    %283 = arith.addf %282, %281 : vector<1x128xf32>
    %284 = arith.divf %282, %283 : vector<1x128xf32>
    %285 = math.tanh %279 : vector<1x128xf32>
    %286 = vector.extract_strided_slice %284 {offsets = [0, 0], sizes = [1, 32], strides = [1, 1]} : vector<1x128xf32> to vector<1x32xf32>
    %287 = vector.extract_strided_slice %284 {offsets = [0, 32], sizes = [1, 32], strides = [1, 1]} : vector<1x128xf32> to vector<1x32xf32>
    %288 = vector.extract_strided_slice %285 {offsets = [0, 64], sizes = [1, 32], strides = [1, 1]} : vector<1x128xf32> to vector<1x32xf32>
    %289 = vector.extract_strided_slice %284 {offsets = [0, 96], sizes = [1, 32], strides = [1, 1]} : vector<1x128xf32> to vector<1x32xf32>
    %290 = arith.mulf %287, %231 : vector<1x32xf32>
    %291 = arith.mulf %286, %288 : vector<1x32xf32>
    %292 = arith.addf %290, %291 : vector<1x32xf32>
    %293 = math.tanh %292 : vector<1x32xf32>
    %294 = arith.mulf %289, %293 : vector<1x32xf32>
    %295 = tpu.concatenate %294, %1 in 1 : vector<1x32xf32>, vector<1x96xf32> -> vector<1x128xf32>
    %c0_111 = arith.constant 0 : index
    %c0_112 = arith.constant 0 : index
    %296 = vector.load %arg4[%c0_111, %c0_112] : memref<128x128xf32, #tpu.memory_space<vmem>>, vector<128x128xf32>
    %cst_113 = arith.constant dense<0.000000e+00> : vector<1x128xf32>
    %297 = tpu.matmul %295, %296, %cst_113 {dimension_numbers = #tpu.dot_dimension_numbers<[1], [0], [0], [1], [0, 0, 1, 1], [], []>} : vector<1x128xf32>, vector<128x128xf32>, vector<1x128xf32> -> vector<1x128xf32>
    %c0_114 = arith.constant 0 : index
    %c0_115 = arith.constant 0 : index
    %298 = vector.load %arg5[%c0_114, %c0_115] : memref<1x128xf32, #tpu.memory_space<vmem>>, vector<1x128xf32>
    %299 = arith.addf %297, %298 : vector<1x128xf32>
    %c1_i32_116 = arith.constant 1 : i32
    %300 = vector.broadcast %c1_i32_116 : i32 to vector<1x128xi32>
    %301 = arith.cmpi slt, %0, %300 : vector<1x128xi32>
    %302 = arith.negf %299 : vector<1x128xf32>
    %303 = math.exp %302 : vector<1x128xf32>
    %cst_117 = arith.constant 1.000000e+00 : f32
    %304 = vector.broadcast %cst_117 : f32 to vector<1x128xf32>
    %305 = arith.addf %304, %303 : vector<1x128xf32>
    %306 = arith.divf %304, %305 : vector<1x128xf32>
    %307 = math.tanh %299 : vector<1x128xf32>
    %308 = arith.select %301, %306, %307 : vector<1x128xi1>, vector<1x128xf32>
    %309 = arith.index_cast %c4_i32 : i32 to index
    %c0_118 = arith.constant 0 : index
    %310 = vector.load %arg6[%309, %c0_118] : memref<8x128xf32, #tpu.memory_space<vmem>>, vector<1x128xf32>
    tpu.vector_store %arg6[%309, %c0_118], %308 {strides = array<i32>} : memref<8x128xf32, #tpu.memory_space<vmem>>, vector<1x128xf32>,
    %c5_i32 = arith.constant 5 : i32
    %311 = arith.index_cast %c5_i32 : i32 to index
    %c0_119 = arith.constant 0 : index
    %312 = vector.load %arg0[%311, %c0_119] : memref<8x128xf32, #tpu.memory_space<vmem>>, vector<1x128xf32>
    %313 = tpu.concatenate %312, %273 in 1 : vector<1x128xf32>, vector<1x128xf32> -> vector<1x256xf32>
    %c0_120 = arith.constant 0 : index
    %c0_121 = arith.constant 0 : index
    %c0_122 = arith.constant 0 : index
    %314 = vector.load %arg2[%c0_120, %c0_121, %c0_122] : memref<2x256x128xf32, #tpu.memory_space<vmem>>, vector<1x256x128xf32>
    %315 = vector.shape_cast %314 : vector<1x256x128xf32> to vector<256x128xf32>
    %cst_123 = arith.constant dense<0.000000e+00> : vector<1x128xf32>
    %316 = tpu.matmul %313, %315, %cst_123 {dimension_numbers = #tpu.dot_dimension_numbers<[1], [0], [0], [1], [0, 0, 1, 1], [], []>} : vector<1x256xf32>, vector<256x128xf32>, vector<1x128xf32> -> vector<1x128xf32>
    %c0_124 = arith.constant 0 : index
    %c0_125 = arith.constant 0 : index
    %317 = vector.load %arg3[%c0_124, %c0_125] : memref<2x128xf32, #tpu.memory_space<vmem>>, vector<1x128xf32>
    %318 = arith.addf %316, %317 : vector<1x128xf32>
    %319 = arith.negf %318 : vector<1x128xf32>
    %320 = math.exp %319 : vector<1x128xf32>
    %cst_126 = arith.constant 1.000000e+00 : f32
    %321 = vector.broadcast %cst_126 : f32 to vector<1x128xf32>
    %322 = arith.addf %321, %320 : vector<1x128xf32>
    %323 = arith.divf %321, %322 : vector<1x128xf32>
    %324 = math.tanh %318 : vector<1x128xf32>
    %325 = vector.extract_strided_slice %323 {offsets = [0, 0], sizes = [1, 32], strides = [1, 1]} : vector<1x128xf32> to vector<1x32xf32>
    %326 = vector.extract_strided_slice %323 {offsets = [0, 32], sizes = [1, 32], strides = [1, 1]} : vector<1x128xf32> to vector<1x32xf32>
    %327 = vector.extract_strided_slice %324 {offsets = [0, 64], sizes = [1, 32], strides = [1, 1]} : vector<1x128xf32> to vector<1x32xf32>
    %328 = vector.extract_strided_slice %323 {offsets = [0, 96], sizes = [1, 32], strides = [1, 1]} : vector<1x128xf32> to vector<1x32xf32>
    %329 = arith.mulf %326, %270 : vector<1x32xf32>
    %330 = arith.mulf %325, %327 : vector<1x32xf32>
    %331 = arith.addf %329, %330 : vector<1x32xf32>
    %332 = math.tanh %331 : vector<1x32xf32>
    %333 = arith.mulf %328, %332 : vector<1x32xf32>
    %334 = tpu.concatenate %333, %1 in 1 : vector<1x32xf32>, vector<1x96xf32> -> vector<1x128xf32>
    %335 = tpu.concatenate %334, %295 in 1 : vector<1x128xf32>, vector<1x128xf32> -> vector<1x256xf32>
    %c1_127 = arith.constant 1 : index
    %c0_128 = arith.constant 0 : index
    %c0_129 = arith.constant 0 : index
    %336 = vector.load %arg2[%c1_127, %c0_128, %c0_129] : memref<2x256x128xf32, #tpu.memory_space<vmem>>, vector<1x256x128xf32>
    %337 = vector.shape_cast %336 : vector<1x256x128xf32> to vector<256x128xf32>
    %cst_130 = arith.constant dense<0.000000e+00> : vector<1x128xf32>
    %338 = tpu.matmul %335, %337, %cst_130 {dimension_numbers = #tpu.dot_dimension_numbers<[1], [0], [0], [1], [0, 0, 1, 1], [], []>} : vector<1x256xf32>, vector<256x128xf32>, vector<1x128xf32> -> vector<1x128xf32>
    %c1_131 = arith.constant 1 : index
    %c0_132 = arith.constant 0 : index
    %339 = vector.load %arg3[%c1_131, %c0_132] : memref<2x128xf32, #tpu.memory_space<vmem>>, vector<1x128xf32>
    %340 = arith.addf %338, %339 : vector<1x128xf32>
    %341 = arith.negf %340 : vector<1x128xf32>
    %342 = math.exp %341 : vector<1x128xf32>
    %cst_133 = arith.constant 1.000000e+00 : f32
    %343 = vector.broadcast %cst_133 : f32 to vector<1x128xf32>
    %344 = arith.addf %343, %342 : vector<1x128xf32>
    %345 = arith.divf %343, %344 : vector<1x128xf32>
    %346 = math.tanh %340 : vector<1x128xf32>
    %347 = vector.extract_strided_slice %345 {offsets = [0, 0], sizes = [1, 32], strides = [1, 1]} : vector<1x128xf32> to vector<1x32xf32>
    %348 = vector.extract_strided_slice %345 {offsets = [0, 32], sizes = [1, 32], strides = [1, 1]} : vector<1x128xf32> to vector<1x32xf32>
    %349 = vector.extract_strided_slice %346 {offsets = [0, 64], sizes = [1, 32], strides = [1, 1]} : vector<1x128xf32> to vector<1x32xf32>
    %350 = vector.extract_strided_slice %345 {offsets = [0, 96], sizes = [1, 32], strides = [1, 1]} : vector<1x128xf32> to vector<1x32xf32>
    %351 = arith.mulf %348, %292 : vector<1x32xf32>
    %352 = arith.mulf %347, %349 : vector<1x32xf32>
    %353 = arith.addf %351, %352 : vector<1x32xf32>
    %354 = math.tanh %353 : vector<1x32xf32>
    %355 = arith.mulf %350, %354 : vector<1x32xf32>
    %356 = tpu.concatenate %355, %1 in 1 : vector<1x32xf32>, vector<1x96xf32> -> vector<1x128xf32>
    %c0_134 = arith.constant 0 : index
    %c0_135 = arith.constant 0 : index
    %357 = vector.load %arg4[%c0_134, %c0_135] : memref<128x128xf32, #tpu.memory_space<vmem>>, vector<128x128xf32>
    %cst_136 = arith.constant dense<0.000000e+00> : vector<1x128xf32>
    %358 = tpu.matmul %356, %357, %cst_136 {dimension_numbers = #tpu.dot_dimension_numbers<[1], [0], [0], [1], [0, 0, 1, 1], [], []>} : vector<1x128xf32>, vector<128x128xf32>, vector<1x128xf32> -> vector<1x128xf32>
    %c0_137 = arith.constant 0 : index
    %c0_138 = arith.constant 0 : index
    %359 = vector.load %arg5[%c0_137, %c0_138] : memref<1x128xf32, #tpu.memory_space<vmem>>, vector<1x128xf32>
    %360 = arith.addf %358, %359 : vector<1x128xf32>
    %c1_i32_139 = arith.constant 1 : i32
    %361 = vector.broadcast %c1_i32_139 : i32 to vector<1x128xi32>
    %362 = arith.cmpi slt, %0, %361 : vector<1x128xi32>
    %363 = arith.negf %360 : vector<1x128xf32>
    %364 = math.exp %363 : vector<1x128xf32>
    %cst_140 = arith.constant 1.000000e+00 : f32
    %365 = vector.broadcast %cst_140 : f32 to vector<1x128xf32>
    %366 = arith.addf %365, %364 : vector<1x128xf32>
    %367 = arith.divf %365, %366 : vector<1x128xf32>
    %368 = math.tanh %360 : vector<1x128xf32>
    %369 = arith.select %362, %367, %368 : vector<1x128xi1>, vector<1x128xf32>
    %370 = arith.index_cast %c5_i32 : i32 to index
    %c0_141 = arith.constant 0 : index
    %371 = vector.load %arg6[%370, %c0_141] : memref<8x128xf32, #tpu.memory_space<vmem>>, vector<1x128xf32>
    tpu.vector_store %arg6[%370, %c0_141], %369 {strides = array<i32>} : memref<8x128xf32, #tpu.memory_space<vmem>>, vector<1x128xf32>,
    %c6_i32 = arith.constant 6 : i32
    %372 = arith.index_cast %c6_i32 : i32 to index
    %c0_142 = arith.constant 0 : index
    %373 = vector.load %arg0[%372, %c0_142] : memref<8x128xf32, #tpu.memory_space<vmem>>, vector<1x128xf32>
    %374 = tpu.concatenate %373, %334 in 1 : vector<1x128xf32>, vector<1x128xf32> -> vector<1x256xf32>
    %c0_143 = arith.constant 0 : index
    %c0_144 = arith.constant 0 : index
    %c0_145 = arith.constant 0 : index
    %375 = vector.load %arg2[%c0_143, %c0_144, %c0_145] : memref<2x256x128xf32, #tpu.memory_space<vmem>>, vector<1x256x128xf32>
    %376 = vector.shape_cast %375 : vector<1x256x128xf32> to vector<256x128xf32>
    %cst_146 = arith.constant dense<0.000000e+00> : vector<1x128xf32>
    %377 = tpu.matmul %374, %376, %cst_146 {dimension_numbers = #tpu.dot_dimension_numbers<[1], [0], [0], [1], [0, 0, 1, 1], [], []>} : vector<1x256xf32>, vector<256x128xf32>, vector<1x128xf32> -> vector<1x128xf32>
    %c0_147 = arith.constant 0 : index
    %c0_148 = arith.constant 0 : index
    %378 = vector.load %arg3[%c0_147, %c0_148] : memref<2x128xf32, #tpu.memory_space<vmem>>, vector<1x128xf32>
    %379 = arith.addf %377, %378 : vector<1x128xf32>
    %380 = arith.negf %379 : vector<1x128xf32>
    %381 = math.exp %380 : vector<1x128xf32>
    %cst_149 = arith.constant 1.000000e+00 : f32
    %382 = vector.broadcast %cst_149 : f32 to vector<1x128xf32>
    %383 = arith.addf %382, %381 : vector<1x128xf32>
    %384 = arith.divf %382, %383 : vector<1x128xf32>
    %385 = math.tanh %379 : vector<1x128xf32>
    %386 = vector.extract_strided_slice %384 {offsets = [0, 0], sizes = [1, 32], strides = [1, 1]} : vector<1x128xf32> to vector<1x32xf32>
    %387 = vector.extract_strided_slice %384 {offsets = [0, 32], sizes = [1, 32], strides = [1, 1]} : vector<1x128xf32> to vector<1x32xf32>
    %388 = vector.extract_strided_slice %385 {offsets = [0, 64], sizes = [1, 32], strides = [1, 1]} : vector<1x128xf32> to vector<1x32xf32>
    %389 = vector.extract_strided_slice %384 {offsets = [0, 96], sizes = [1, 32], strides = [1, 1]} : vector<1x128xf32> to vector<1x32xf32>
    %390 = arith.mulf %387, %331 : vector<1x32xf32>
    %391 = arith.mulf %386, %388 : vector<1x32xf32>
    %392 = arith.addf %390, %391 : vector<1x32xf32>
    %393 = math.tanh %392 : vector<1x32xf32>
    %394 = arith.mulf %389, %393 : vector<1x32xf32>
    %395 = tpu.concatenate %394, %1 in 1 : vector<1x32xf32>, vector<1x96xf32> -> vector<1x128xf32>
    %396 = tpu.concatenate %395, %356 in 1 : vector<1x128xf32>, vector<1x128xf32> -> vector<1x256xf32>
    %c1_150 = arith.constant 1 : index
    %c0_151 = arith.constant 0 : index
    %c0_152 = arith.constant 0 : index
    %397 = vector.load %arg2[%c1_150, %c0_151, %c0_152] : memref<2x256x128xf32, #tpu.memory_space<vmem>>, vector<1x256x128xf32>
    %398 = vector.shape_cast %397 : vector<1x256x128xf32> to vector<256x128xf32>
    %cst_153 = arith.constant dense<0.000000e+00> : vector<1x128xf32>
    %399 = tpu.matmul %396, %398, %cst_153 {dimension_numbers = #tpu.dot_dimension_numbers<[1], [0], [0], [1], [0, 0, 1, 1], [], []>} : vector<1x256xf32>, vector<256x128xf32>, vector<1x128xf32> -> vector<1x128xf32>
    %c1_154 = arith.constant 1 : index
    %c0_155 = arith.constant 0 : index
    %400 = vector.load %arg3[%c1_154, %c0_155] : memref<2x128xf32, #tpu.memory_space<vmem>>, vector<1x128xf32>
    %401 = arith.addf %399, %400 : vector<1x128xf32>
    %402 = arith.negf %401 : vector<1x128xf32>
    %403 = math.exp %402 : vector<1x128xf32>
    %cst_156 = arith.constant 1.000000e+00 : f32
    %404 = vector.broadcast %cst_156 : f32 to vector<1x128xf32>
    %405 = arith.addf %404, %403 : vector<1x128xf32>
    %406 = arith.divf %404, %405 : vector<1x128xf32>
    %407 = math.tanh %401 : vector<1x128xf32>
    %408 = vector.extract_strided_slice %406 {offsets = [0, 0], sizes = [1, 32], strides = [1, 1]} : vector<1x128xf32> to vector<1x32xf32>
    %409 = vector.extract_strided_slice %406 {offsets = [0, 32], sizes = [1, 32], strides = [1, 1]} : vector<1x128xf32> to vector<1x32xf32>
    %410 = vector.extract_strided_slice %407 {offsets = [0, 64], sizes = [1, 32], strides = [1, 1]} : vector<1x128xf32> to vector<1x32xf32>
    %411 = vector.extract_strided_slice %406 {offsets = [0, 96], sizes = [1, 32], strides = [1, 1]} : vector<1x128xf32> to vector<1x32xf32>
    %412 = arith.mulf %409, %353 : vector<1x32xf32>
    %413 = arith.mulf %408, %410 : vector<1x32xf32>
    %414 = arith.addf %412, %413 : vector<1x32xf32>
    %415 = math.tanh %414 : vector<1x32xf32>
    %416 = arith.mulf %411, %415 : vector<1x32xf32>
    %417 = tpu.concatenate %416, %1 in 1 : vector<1x32xf32>, vector<1x96xf32> -> vector<1x128xf32>
    %c0_157 = arith.constant 0 : index
    %c0_158 = arith.constant 0 : index
    %418 = vector.load %arg4[%c0_157, %c0_158] : memref<128x128xf32, #tpu.memory_space<vmem>>, vector<128x128xf32>
    %cst_159 = arith.constant dense<0.000000e+00> : vector<1x128xf32>
    %419 = tpu.matmul %417, %418, %cst_159 {dimension_numbers = #tpu.dot_dimension_numbers<[1], [0], [0], [1], [0, 0, 1, 1], [], []>} : vector<1x128xf32>, vector<128x128xf32>, vector<1x128xf32> -> vector<1x128xf32>
    %c0_160 = arith.constant 0 : index
    %c0_161 = arith.constant 0 : index
    %420 = vector.load %arg5[%c0_160, %c0_161] : memref<1x128xf32, #tpu.memory_space<vmem>>, vector<1x128xf32>
    %421 = arith.addf %419, %420 : vector<1x128xf32>
    %c1_i32_162 = arith.constant 1 : i32
    %422 = vector.broadcast %c1_i32_162 : i32 to vector<1x128xi32>
    %423 = arith.cmpi slt, %0, %422 : vector<1x128xi32>
    %424 = arith.negf %421 : vector<1x128xf32>
    %425 = math.exp %424 : vector<1x128xf32>
    %cst_163 = arith.constant 1.000000e+00 : f32
    %426 = vector.broadcast %cst_163 : f32 to vector<1x128xf32>
    %427 = arith.addf %426, %425 : vector<1x128xf32>
    %428 = arith.divf %426, %427 : vector<1x128xf32>
    %429 = math.tanh %421 : vector<1x128xf32>
    %430 = arith.select %423, %428, %429 : vector<1x128xi1>, vector<1x128xf32>
    %431 = arith.index_cast %c6_i32 : i32 to index
    %c0_164 = arith.constant 0 : index
    %432 = vector.load %arg6[%431, %c0_164] : memref<8x128xf32, #tpu.memory_space<vmem>>, vector<1x128xf32>
    tpu.vector_store %arg6[%431, %c0_164], %430 {strides = array<i32>} : memref<8x128xf32, #tpu.memory_space<vmem>>, vector<1x128xf32>,
    %c7_i32 = arith.constant 7 : i32
    %433 = arith.index_cast %c7_i32 : i32 to index
    %c0_165 = arith.constant 0 : index
    %434 = vector.load %arg0[%433, %c0_165] : memref<8x128xf32, #tpu.memory_space<vmem>>, vector<1x128xf32>
    %435 = tpu.concatenate %434, %395 in 1 : vector<1x128xf32>, vector<1x128xf32> -> vector<1x256xf32>
    %c0_166 = arith.constant 0 : index
    %c0_167 = arith.constant 0 : index
    %c0_168 = arith.constant 0 : index
    %436 = vector.load %arg2[%c0_166, %c0_167, %c0_168] : memref<2x256x128xf32, #tpu.memory_space<vmem>>, vector<1x256x128xf32>
    %437 = vector.shape_cast %436 : vector<1x256x128xf32> to vector<256x128xf32>
    %cst_169 = arith.constant dense<0.000000e+00> : vector<1x128xf32>
    %438 = tpu.matmul %435, %437, %cst_169 {dimension_numbers = #tpu.dot_dimension_numbers<[1], [0], [0], [1], [0, 0, 1, 1], [], []>} : vector<1x256xf32>, vector<256x128xf32>, vector<1x128xf32> -> vector<1x128xf32>
    %c0_170 = arith.constant 0 : index
    %c0_171 = arith.constant 0 : index
    %439 = vector.load %arg3[%c0_170, %c0_171] : memref<2x128xf32, #tpu.memory_space<vmem>>, vector<1x128xf32>
    %440 = arith.addf %438, %439 : vector<1x128xf32>
    %441 = arith.negf %440 : vector<1x128xf32>
    %442 = math.exp %441 : vector<1x128xf32>
    %cst_172 = arith.constant 1.000000e+00 : f32
    %443 = vector.broadcast %cst_172 : f32 to vector<1x128xf32>
    %444 = arith.addf %443, %442 : vector<1x128xf32>
    %445 = arith.divf %443, %444 : vector<1x128xf32>
    %446 = math.tanh %440 : vector<1x128xf32>
    %447 = vector.extract_strided_slice %445 {offsets = [0, 0], sizes = [1, 32], strides = [1, 1]} : vector<1x128xf32> to vector<1x32xf32>
    %448 = vector.extract_strided_slice %445 {offsets = [0, 32], sizes = [1, 32], strides = [1, 1]} : vector<1x128xf32> to vector<1x32xf32>
    %449 = vector.extract_strided_slice %446 {offsets = [0, 64], sizes = [1, 32], strides = [1, 1]} : vector<1x128xf32> to vector<1x32xf32>
    %450 = vector.extract_strided_slice %445 {offsets = [0, 96], sizes = [1, 32], strides = [1, 1]} : vector<1x128xf32> to vector<1x32xf32>
    %451 = arith.mulf %448, %392 : vector<1x32xf32>
    %452 = arith.mulf %447, %449 : vector<1x32xf32>
    %453 = arith.addf %451, %452 : vector<1x32xf32>
    %454 = math.tanh %453 : vector<1x32xf32>
    %455 = arith.mulf %450, %454 : vector<1x32xf32>
    %456 = tpu.concatenate %455, %1 in 1 : vector<1x32xf32>, vector<1x96xf32> -> vector<1x128xf32>
    %457 = tpu.concatenate %456, %417 in 1 : vector<1x128xf32>, vector<1x128xf32> -> vector<1x256xf32>
    %c1_173 = arith.constant 1 : index
    %c0_174 = arith.constant 0 : index
    %c0_175 = arith.constant 0 : index
    %458 = vector.load %arg2[%c1_173, %c0_174, %c0_175] : memref<2x256x128xf32, #tpu.memory_space<vmem>>, vector<1x256x128xf32>
    %459 = vector.shape_cast %458 : vector<1x256x128xf32> to vector<256x128xf32>
    %cst_176 = arith.constant dense<0.000000e+00> : vector<1x128xf32>
    %460 = tpu.matmul %457, %459, %cst_176 {dimension_numbers = #tpu.dot_dimension_numbers<[1], [0], [0], [1], [0, 0, 1, 1], [], []>} : vector<1x256xf32>, vector<256x128xf32>, vector<1x128xf32> -> vector<1x128xf32>
    %c1_177 = arith.constant 1 : index
    %c0_178 = arith.constant 0 : index
    %461 = vector.load %arg3[%c1_177, %c0_178] : memref<2x128xf32, #tpu.memory_space<vmem>>, vector<1x128xf32>
    %462 = arith.addf %460, %461 : vector<1x128xf32>
    %463 = arith.negf %462 : vector<1x128xf32>
    %464 = math.exp %463 : vector<1x128xf32>
    %cst_179 = arith.constant 1.000000e+00 : f32
    %465 = vector.broadcast %cst_179 : f32 to vector<1x128xf32>
    %466 = arith.addf %465, %464 : vector<1x128xf32>
    %467 = arith.divf %465, %466 : vector<1x128xf32>
    %468 = math.tanh %462 : vector<1x128xf32>
    %469 = vector.extract_strided_slice %467 {offsets = [0, 0], sizes = [1, 32], strides = [1, 1]} : vector<1x128xf32> to vector<1x32xf32>
    %470 = vector.extract_strided_slice %467 {offsets = [0, 32], sizes = [1, 32], strides = [1, 1]} : vector<1x128xf32> to vector<1x32xf32>
    %471 = vector.extract_strided_slice %468 {offsets = [0, 64], sizes = [1, 32], strides = [1, 1]} : vector<1x128xf32> to vector<1x32xf32>
    %472 = vector.extract_strided_slice %467 {offsets = [0, 96], sizes = [1, 32], strides = [1, 1]} : vector<1x128xf32> to vector<1x32xf32>
    %473 = arith.mulf %470, %414 : vector<1x32xf32>
    %474 = arith.mulf %469, %471 : vector<1x32xf32>
    %475 = arith.addf %473, %474 : vector<1x32xf32>
    %476 = math.tanh %475 : vector<1x32xf32>
    %477 = arith.mulf %472, %476 : vector<1x32xf32>
    %478 = tpu.concatenate %477, %1 in 1 : vector<1x32xf32>, vector<1x96xf32> -> vector<1x128xf32>
    %c0_180 = arith.constant 0 : index
    %c0_181 = arith.constant 0 : index
    %479 = vector.load %arg4[%c0_180, %c0_181] : memref<128x128xf32, #tpu.memory_space<vmem>>, vector<128x128xf32>
    %cst_182 = arith.constant dense<0.000000e+00> : vector<1x128xf32>
    %480 = tpu.matmul %478, %479, %cst_182 {dimension_numbers = #tpu.dot_dimension_numbers<[1], [0], [0], [1], [0, 0, 1, 1], [], []>} : vector<1x128xf32>, vector<128x128xf32>, vector<1x128xf32> -> vector<1x128xf32>
    %c0_183 = arith.constant 0 : index
    %c0_184 = arith.constant 0 : index
    %481 = vector.load %arg5[%c0_183, %c0_184] : memref<1x128xf32, #tpu.memory_space<vmem>>, vector<1x128xf32>
    %482 = arith.addf %480, %481 : vector<1x128xf32>
    %c1_i32_185 = arith.constant 1 : i32
    %483 = vector.broadcast %c1_i32_185 : i32 to vector<1x128xi32>
    %484 = arith.cmpi slt, %0, %483 : vector<1x128xi32>
    %485 = arith.negf %482 : vector<1x128xf32>
    %486 = math.exp %485 : vector<1x128xf32>
    %cst_186 = arith.constant 1.000000e+00 : f32
    %487 = vector.broadcast %cst_186 : f32 to vector<1x128xf32>
    %488 = arith.addf %487, %486 : vector<1x128xf32>
    %489 = arith.divf %487, %488 : vector<1x128xf32>
    %490 = math.tanh %482 : vector<1x128xf32>
    %491 = arith.select %484, %489, %490 : vector<1x128xi1>, vector<1x128xf32>
    %492 = arith.index_cast %c7_i32 : i32 to index
    %c0_187 = arith.constant 0 : index
    %493 = vector.load %arg6[%492, %c0_187] : memref<8x128xf32, #tpu.memory_space<vmem>>, vector<1x128xf32>
    tpu.vector_store %arg6[%492, %c0_187], %491 {strides = array<i32>} : memref<8x128xf32, #tpu.memory_space<vmem>>, vector<1x128xf32>,
    %c8_i32 = arith.constant 8 : i32
    %c0_188 = arith.constant 0 : index
    %c0_189 = arith.constant 0 : index
    %494 = vector.load %arg7[%c0_188, %c0_189] : memref<4x128xf32, #tpu.memory_space<vmem>>, vector<1x128xf32>
    tpu.vector_store %arg7[%c0_188, %c0_189], %456 {strides = array<i32>} : memref<4x128xf32, #tpu.memory_space<vmem>>, vector<1x128xf32>,
    %495 = tpu.concatenate %453, %1 in 1 : vector<1x32xf32>, vector<1x96xf32> -> vector<1x128xf32>
    %c2_190 = arith.constant 2 : index
    %c0_191 = arith.constant 0 : index
    %496 = vector.load %arg7[%c2_190, %c0_191] : memref<4x128xf32, #tpu.memory_space<vmem>>, vector<1x128xf32>
    tpu.vector_store %arg7[%c2_190, %c0_191], %495 {strides = array<i32>} : memref<4x128xf32, #tpu.memory_space<vmem>>, vector<1x128xf32>,
    %c1_192 = arith.constant 1 : index
    %c0_193 = arith.constant 0 : index
    %497 = vector.load %arg7[%c1_192, %c0_193] : memref<4x128xf32, #tpu.memory_space<vmem>>, vector<1x128xf32>
    tpu.vector_store %arg7[%c1_192, %c0_193], %478 {strides = array<i32>} : memref<4x128xf32, #tpu.memory_space<vmem>>, vector<1x128xf32>,
    %498 = tpu.concatenate %475, %1 in 1 : vector<1x32xf32>, vector<1x96xf32> -> vector<1x128xf32>
    %c3_194 = arith.constant 3 : index
    %c0_195 = arith.constant 0 : index
    %499 = vector.load %arg7[%c3_194, %c0_195] : memref<4x128xf32, #tpu.memory_space<vmem>>, vector<1x128xf32>
    tpu.vector_store %arg7[%c3_194, %c0_195], %498 {strides = array<i32>} : memref<4x128xf32, #tpu.memory_space<vmem>>, vector<1x128xf32>,
    return
  }
}

</mosaic_0001>

<llo_original>
// kernel: tpu_custom_call.1
$region0: #{tpu_custom_call.1}
  #allocation0 [shape = 'u32[]', space=smem, size = 0x4, offset = 0x4, fixed_abs, tag = 'smem constant byte address 0x4 - core index']
  #allocation1 [shape = 'u32[72,128]{1,0:T(1,128)}', space=vmem, size = 0x9000, scoped, tag = 'internal scratch']
  %s0 = inlined_call_operand.hbm [shape: f32[8,128], index: 0, kind: input, shape index: {}]
  %s1 = inlined_call_operand.hbm [shape: f32[4,128], index: 1, kind: input, shape index: {}]
  %s2 = inlined_call_operand.hbm [shape: f32[2,256,128], index: 2, kind: input, shape index: {}]
  %s3 = inlined_call_operand.vmem [shape: f32[2,128], index: 3, kind: input, shape index: {}]
  %s4 = inlined_call_operand.hbm [shape: f32[128,128], index: 4, kind: input, shape index: {}]
  %s5 = inlined_call_operand.vmem [shape: f32[1,128], index: 5, kind: input, shape index: {}]
  %s6 = inlined_call_operand.hbm [shape: f32[8,128], index: 6, kind: output, shape index: {0}]
  %s7 = inlined_call_operand.hbm [shape: f32[4,128], index: 7, kind: output, shape index: {1}]
  %8 = xla_tuple %s6, %s7
  %s9 = sld [smem:[#allocation0]]
  $region58: #{tpu_custom_call.1} parent=0
    _
  %s11 = ssub.s32 1, %s9
  %s12 = scalar_select 0, %s11, %s9
  $region1: #{tpu_custom_call.1} parent=0
    #allocation2 [shape = 'u8[4096]{0}', space=vmem, size = 0x1000, scoped, tag = 'input window, operand 0, single buffered']
    #allocation3 [shape = 's32[1]{0}', space=sflag, size = 0x4, scoped, tag = 'scoped memory for tpu_custom_call.1']
    #allocation4 [shape = 's32[1]{0}', space=sflag, size = 0x4, scoped, tag = 'scoped memory for tpu_custom_call.1']
    #allocation5 [shape = 'u8[2048]{0}', space=vmem, size = 0x800, scoped, tag = 'input window, operand 1, single buffered']
    #allocation6 [shape = 's32[1]{0}', space=sflag, size = 0x4, scoped, tag = 'scoped memory for tpu_custom_call.1']
    #allocation7 [shape = 'u8[262144]{0}', space=vmem, size = 0x40000, scoped, tag = 'input window, operand 2, single buffered']
    #allocation8 [shape = 'u8[65536]{0}', space=vmem, size = 0x10000, scoped, tag = 'input window, operand 4, single buffered']
    #allocation9 [shape = 's32[1]{0}', space=sflag, size = 0x4, scoped, tag = 'scoped memory for tpu_custom_call.1']
    #allocation10 [shape = 'u8[4096]{0}', space=vmem, size = 0x1000, scoped, tag = 'output window, operand 0, single buffered']
    #allocation11 [shape = 'u8[2048]{0}', space=vmem, size = 0x800, scoped, tag = 'output window, operand 1, single buffered']
    #allocation12 [shape = 's32[1]{0}', space=sflag, size = 0x4, scoped, tag = 'scoped memory for tpu_custom_call.1']
    %13 = vsyncpa [#allocation3], 0
    %14 = vsyncpa [#allocation6], 0
    %15 = vsyncpa [#allocation9], 0
    %16 = vsyncpa [#allocation4], 0
    %17 = vsyncpa [#allocation12], 0
    // Predicated region
    $region2: #{tpu_custom_call.1} parent=1 // pred_check
      _
    $region3: #{tpu_custom_call.1} parent=1 // pred_check_branch
      %19 = sbr.rel (0) target = $region5
    $region4: #{tpu_custom_call.1} parent=1 // pred_region
      %21 = vsyncadd [#allocation3], 0
      %s23 = sshll.u32 %s0, 4
      %s24 = int_to_ptr.hbm [resolvable:$true] %s23
      %s25 = sshll.u32 [#allocation2], 4
      %s26 = int_to_ptr.vmem [resolvable:$true] %s25
      %28 = dma.hbm_to_vmem [thread:$0]  %s24, 128, %s26, [#allocation3]
    $region5: #{tpu_custom_call.1} parent=1 // pred_fallthru
      _
    // Predicated region
    $region6: #{tpu_custom_call.1} parent=1 // pred_check
      _
    $region7: #{tpu_custom_call.1} parent=1 // pred_check_branch
      %30 = sbr.rel (0) target = $region9
    $region8: #{tpu_custom_call.1} parent=1 // pred_region
      %32 = vsyncadd [#allocation6], 0
      %s34 = sshll.u32 %s1, 4
      %s35 = int_to_ptr.hbm [resolvable:$true] %s34
      %s36 = sshll.u32 [#allocation5], 4
      %s37 = int_to_ptr.vmem [resolvable:$true] %s36
      %39 = dma.hbm_to_vmem [thread:$0]  %s35, 64, %s37, [#allocation6]
    $region9: #{tpu_custom_call.1} parent=1 // pred_fallthru
      _
    // Predicated region
    $region10: #{tpu_custom_call.1} parent=1 // pred_check
      _
    $region11: #{tpu_custom_call.1} parent=1 // pred_check_branch
      %41 = sbr.rel (0) target = $region13
    $region12: #{tpu_custom_call.1} parent=1 // pred_region
      %43 = vsyncadd [#allocation6], 0
      %s44 = sshll.u32 %s2, 4
      %s45 = int_to_ptr.hbm [resolvable:$true] %s44
      %s46 = sshll.u32 [#allocation7], 4
      %s47 = int_to_ptr.vmem [resolvable:$true] %s46
      %52 = dma.hbm_to_vmem [thread:$0]  %s45, 8192, %s47, [#allocation6], 128, 128, 8
    $region13: #{tpu_custom_call.1} parent=1 // pred_fallthru
      _
    // Predicated region
    $region14: #{tpu_custom_call.1} parent=1 // pred_check
      _
    $region15: #{tpu_custom_call.1} parent=1 // pred_check_branch
      %54 = sbr.rel (0) target = $region17
    $region16: #{tpu_custom_call.1} parent=1 // pred_region
      _
    $region17: #{tpu_custom_call.1} parent=1 // pred_fallthru
      _
    // Predicated region
    $region18: #{tpu_custom_call.1} parent=1 // pred_check
      _
    $region19: #{tpu_custom_call.1} parent=1 // pred_check_branch
      %56 = sbr.rel (0) target = $region21
    $region20: #{tpu_custom_call.1} parent=1 // pred_region
      %58 = vsyncadd [#allocation9], 0
      %s59 = sshll.u32 %s4, 4
      %s60 = int_to_ptr.hbm [resolvable:$true] %s59
      %s61 = sshll.u32 [#allocation8], 4
      %s62 = int_to_ptr.vmem [resolvable:$true] %s61
      %67 = dma.hbm_to_vmem [thread:$0]  %s60, 2048, %s62, [#allocation9], 128, 128, 8
    $region21: #{tpu_custom_call.1} parent=1 // pred_fallthru
      _
    // Predicated region
    $region22: #{tpu_custom_call.1} parent=1 // pred_check
      _
    $region23: #{tpu_custom_call.1} parent=1 // pred_check_branch
      %69 = sbr.rel (0) target = $region25
    $region24: #{tpu_custom_call.1} parent=1 // pred_region
      _
    $region25: #{tpu_custom_call.1} parent=1 // pred_fallthru
      _
    // Predicated region
    $region26: #{tpu_custom_call.1} parent=1 // pred_check
      _
    $region27: #{tpu_custom_call.1} parent=1 // pred_check_branch
      %71 = sbr.rel (0) target = $region29
    $region28: #{tpu_custom_call.1} parent=1 // pred_region
      %73 = dma.done [#allocation3], 128
    $region29: #{tpu_custom_call.1} parent=1 // pred_fallthru
      _
    // Predicated region
    $region30: #{tpu_custom_call.1} parent=1 // pred_check
      _
    $region31: #{tpu_custom_call.1} parent=1 // pred_check_branch
      %75 = sbr.rel (0) target = $region33
    $region32: #{tpu_custom_call.1} parent=1 // pred_region
      %77 = dma.done [#allocation6], 64
    $region33: #{tpu_custom_call.1} parent=1 // pred_fallthru
      _
    // Predicated region
    $region34: #{tpu_custom_call.1} parent=1 // pred_check
      _
    $region35: #{tpu_custom_call.1} parent=1 // pred_check_branch
      %79 = sbr.rel (0) target = $region37
    $region36: #{tpu_custom_call.1} parent=1 // pred_region
      %81 = dma.done [#allocation6], 8192
    $region37: #{tpu_custom_call.1} parent=1 // pred_fallthru
      _
    // Predicated region
    $region38: #{tpu_custom_call.1} parent=1 // pred_check
      _
    $region39: #{tpu_custom_call.1} parent=1 // pred_check_branch
      %83 = sbr.rel (0) target = $region41
    $region40: #{tpu_custom_call.1} parent=1 // pred_region
      %85 = dma.done [#allocation9], 2048
    $region41: #{tpu_custom_call.1} parent=1 // pred_fallthru
      _
    %v86 = vlaneseq
    %v87 = vand.u32 %v86, 127
    %v88 = vld [vmem:[#allocation5] sm:$0x1]
    %v89 = vld [vmem:[#allocation5 + $0x1] sm:$0x1]
    %v90 = vld [vmem:[#allocation5 + $0x2] sm:$0x1]
    %v91 = vld [vmem:[#allocation5 + $0x3] sm:$0x1]
    %v92 = vld [vmem:[#allocation2] sm:$0x1]
    %v93 = vld [vmem:[#allocation7] sm:$0xff]
    %v94 = vld [vmem:[#allocation7 + $0x8] sm:$0xff]
    %v95 = vld [vmem:[#allocation7 + $0x10] sm:$0xff]
    %v96 = vld [vmem:[#allocation7 + $0x18] sm:$0xff]
    %v97 = vld [vmem:[#allocation7 + $0x20] sm:$0xff]
    %v98 = vld [vmem:[#allocation7 + $0x28] sm:$0xff]
    %v99 = vld [vmem:[#allocation7 + $0x30] sm:$0xff]
    %v100 = vld [vmem:[#allocation7 + $0x38] sm:$0xff]
    %v101 = vld [vmem:[#allocation7 + $0x40] sm:$0xff]
    %v102 = vld [vmem:[#allocation7 + $0x48] sm:$0xff]
    %v103 = vld [vmem:[#allocation7 + $0x50] sm:$0xff]
    %v104 = vld [vmem:[#allocation7 + $0x58] sm:$0xff]
    %v105 = vld [vmem:[#allocation7 + $0x60] sm:$0xff]
    %v106 = vld [vmem:[#allocation7 + $0x68] sm:$0xff]
    %v107 = vld [vmem:[#allocation7 + $0x70] sm:$0xff]
    %v108 = vld [vmem:[#allocation7 + $0x78] sm:$0xff]
    %v109 = vld [vmem:[#allocation7 + $0x80] sm:$0xff]
    %v110 = vld [vmem:[#allocation7 + $0x88] sm:$0xff]
    %v111 = vld [vmem:[#allocation7 + $0x90] sm:$0xff]
    %v112 = vld [vmem:[#allocation7 + $0x98] sm:$0xff]
    %v113 = vld [vmem:[#allocation7 + $0xa0] sm:$0xff]
    %v114 = vld [vmem:[#allocation7 + $0xa8] sm:$0xff]
    %v115 = vld [vmem:[#allocation7 + $0xb0] sm:$0xff]
    %v116 = vld [vmem:[#allocation7 + $0xb8] sm:$0xff]
    %v117 = vld [vmem:[#allocation7 + $0xc0] sm:$0xff]
    %v118 = vld [vmem:[#allocation7 + $0xc8] sm:$0xff]
    %v119 = vld [vmem:[#allocation7 + $0xd0] sm:$0xff]
    %v120 = vld [vmem:[#allocation7 + $0xd8] sm:$0xff]
    %v121 = vld [vmem:[#allocation7 + $0xe0] sm:$0xff]
    %v122 = vld [vmem:[#allocation7 + $0xe8] sm:$0xff]
    %v123 = vld [vmem:[#allocation7 + $0xf0] sm:$0xff]
    %v124 = vld [vmem:[#allocation7 + $0xf8] sm:$0xff]
    %v125 = vld [vmem:[%s3] sm:$0x1]
    %126 = vmatpush.msra.mxu0 %v108
    %127 = vmatpush.msra.mxu0 %v107
    %128 = vmatpush.msra.mxu0 %v106
    %129 = vmatpush.msra.mxu0 %v105
    %130 = vmatpush.msra.mxu0 %v104
    %131 = vmatpush.msra.mxu0 %v103
    %132 = vmatpush.msra.mxu0 %v102
    %133 = vmatpush.msra.mxu0 %v101
    %134 = vmatpush.msra.mxu0 %v100
    %135 = vmatpush.msra.mxu0 %v99
    %136 = vmatpush.msra.mxu0 %v98
    %137 = vmatpush.msra.mxu0 %v97
    %138 = vmatpush.msra.mxu0 %v96
    %139 = vmatpush.msra.mxu0 %v95
    %140 = vmatpush.msra.mxu0 %v94
    %141 = vmatpush.msra.mxu0 %v93
    %142 = vmatmul.f32.gmra.mxu0 %v92
    %v143 = vpop.f32.mrf.mxu0
    %v144 = vadd.f32 %v125, %v143
    %145 = vdwg.mxu0
    %146 = vmatpush.msra.mxu0 %v124
    %147 = vmatpush.msra.mxu0 %v123
    %148 = vmatpush.msra.mxu0 %v122
    %149 = vmatpush.msra.mxu0 %v121
    %150 = vmatpush.msra.mxu0 %v120
    %151 = vmatpush.msra.mxu0 %v119
    %152 = vmatpush.msra.mxu0 %v118
    %153 = vmatpush.msra.mxu0 %v117
    %154 = vmatpush.msra.mxu0 %v116
    %155 = vmatpush.msra.mxu0 %v115
    %156 = vmatpush.msra.mxu0 %v114
    %157 = vmatpush.msra.mxu0 %v113
    %158 = vmatpush.msra.mxu0 %v112
    %159 = vmatpush.msra.mxu0 %v111
    %160 = vmatpush.msra.mxu0 %v110
    %161 = vmatpush.msra.mxu0 %v109
    %162 = vmatmul.f32.gmra.mxu0 %v88
    %v163 = vpop.f32.mrf.mxu0
    %v164 = vadd.f32 %v144, %v163
    %165 = vdwg.mxu0
    %v166 = vxor.u32 %v164, 2147483648
    %v167 = vmul.f32 %v166, 1.442695
    %v168 = vpow.pop %v167
    %v169 = vadd.f32 %v168, 1.0
    %v170 = vrcp.pop %v169
    %v171 = vmul.f32 %v169, %v170
    %v172 = vsub.f32 1.0, %v171
    %v173 = vmul.f32 %v170, %v172
    %v174 = vadd.f32 %v170, %v173
    %vm175 = vweird.f32 %v169
    %vm176 = vweird.f32 %v170
    %vm177 = vmor %vm175, %vm176
    %v178 = vsel %vm177, %v170, %v174
    %v179 = vand.u32 2147483647, %v169
    %vm180 = vcmp.eq.f32.partialorder %v179, 8.507059e+37
    %v181 = vand.u32 %v169, 2147483648
    %v182 = vor.u32 1.1754944e-38, %v181
    %v183 = vsel %vm180, %v182, %v178
    %v184 = vmul.f32 1.0, %v183
    %v185 = vtanh.pop %v164
    %187 = vrot.lane.b32.xlu0 %v90, 32
    %v188 = vpop.permute.xlu0 %187
    %v190 = vmul.f32 %v184, %v188
    %192 = vrot.lane.b32.xlu0 %v185, 64
    %v193 = vpop.permute.xlu0 %192
    %v195 = vmul.f32 %v184, %v193
    %197 = vrot.lane.b32.xlu0 %v195, 32
    %v198 = vpop.permute.xlu0 %197
    %v200 = vadd.f32 %v190, %v198
    %v201 = vtanh.pop %v200
    %203 = vrot.lane.b32.xlu0 %v201, 64
    %v204 = vpop.permute.xlu0 %203
    %v206 = vmul.f32 %v184, %v204
    %208 = vrot.lane.b32.xlu0 %v206, 32
    %v209 = vpop.permute.xlu0 %208
    %vm211 = vcmask 261120
    %v212 = vsel %vm211, %v209, 0.0
    %s213 = scalar_lea.vmem [#allocation7], 256
    %v214 = vld [vmem:[%s213] sm:$0xff]
    %v215 = vld [vmem:[%s213 + $0x8] sm:$0xff]
    %v216 = vld [vmem:[%s213 + $0x10] sm:$0xff]
    %v217 = vld [vmem:[%s213 + $0x18] sm:$0xff]
    %v218 = vld [vmem:[%s213 + $0x20] sm:$0xff]
    %v219 = vld [vmem:[%s213 + $0x28] sm:$0xff]
    %v220 = vld [vmem:[%s213 + $0x30] sm:$0xff]
    %v221 = vld [vmem:[%s213 + $0x38] sm:$0xff]
    %v222 = vld [vmem:[%s213 + $0x40] sm:$0xff]
    %v223 = vld [vmem:[%s213 + $0x48] sm:$0xff]
    %v224 = vld [vmem:[%s213 + $0x50] sm:$0xff]
    %v225 = vld [vmem:[%s213 + $0x58] sm:$0xff]
    %v226 = vld [vmem:[%s213 + $0x60] sm:$0xff]
    %v227 = vld [vmem:[%s213 + $0x68] sm:$0xff]
    %v228 = vld [vmem:[%s213 + $0x70] sm:$0xff]
    %v229 = vld [vmem:[%s213 + $0x78] sm:$0xff]
    %v230 = vld [vmem:[%s213 + $0x80] sm:$0xff]
    %v231 = vld [vmem:[%s213 + $0x88] sm:$0xff]
    %v232 = vld [vmem:[%s213 + $0x90] sm:$0xff]
    %v233 = vld [vmem:[%s213 + $0x98] sm:$0xff]
    %v234 = vld [vmem:[%s213 + $0xa0] sm:$0xff]
    %v235 = vld [vmem:[%s213 + $0xa8] sm:$0xff]
    %v236 = vld [vmem:[%s213 + $0xb0] sm:$0xff]
    %v237 = vld [vmem:[%s213 + $0xb8] sm:$0xff]
    %v238 = vld [vmem:[%s213 + $0xc0] sm:$0xff]
    %v239 = vld [vmem:[%s213 + $0xc8] sm:$0xff]
    %v240 = vld [vmem:[%s213 + $0xd0] sm:$0xff]
    %v241 = vld [vmem:[%s213 + $0xd8] sm:$0xff]
    %v242 = vld [vmem:[%s213 + $0xe0] sm:$0xff]
    %v243 = vld [vmem:[%s213 + $0xe8] sm:$0xff]
    %v244 = vld [vmem:[%s213 + $0xf0] sm:$0xff]
    %v245 = vld [vmem:[%s213 + $0xf8] sm:$0xff]
    %v246 = vld [vmem:[%s3 + $0x1] sm:$0x1]
    %247 = vmatpush.msra.mxu0 %v229
    %248 = vmatpush.msra.mxu0 %v228
    %249 = vmatpush.msra.mxu0 %v227
    %250 = vmatpush.msra.mxu0 %v226
    %251 = vmatpush.msra.mxu0 %v225
    %252 = vmatpush.msra.mxu0 %v224
    %253 = vmatpush.msra.mxu0 %v223
    %254 = vmatpush.msra.mxu0 %v222
    %255 = vmatpush.msra.mxu0 %v221
    %256 = vmatpush.msra.mxu0 %v220
    %257 = vmatpush.msra.mxu0 %v219
    %258 = vmatpush.msra.mxu0 %v218
    %259 = vmatpush.msra.mxu0 %v217
    %260 = vmatpush.msra.mxu0 %v216
    %261 = vmatpush.msra.mxu0 %v215
    %262 = vmatpush.msra.mxu0 %v214
    %263 = vmatmul.f32.gmra.mxu0 %v212
    %v264 = vpop.f32.mrf.mxu0
    %v265 = vadd.f32 %v246, %v264
    %266 = vdwg.mxu0
    %267 = vmatpush.msra.mxu0 %v245
    %268 = vmatpush.msra.mxu0 %v244
    %269 = vmatpush.msra.mxu0 %v243
    %270 = vmatpush.msra.mxu0 %v242
    %271 = vmatpush.msra.mxu0 %v241
    %272 = vmatpush.msra.mxu0 %v240
    %273 = vmatpush.msra.mxu0 %v239
    %274 = vmatpush.msra.mxu0 %v238
    %275 = vmatpush.msra.mxu0 %v237
    %276 = vmatpush.msra.mxu0 %v236
    %277 = vmatpush.msra.mxu0 %v235
    %278 = vmatpush.msra.mxu0 %v234
    %279 = vmatpush.msra.mxu0 %v233
    %280 = vmatpush.msra.mxu0 %v232
    %281 = vmatpush.msra.mxu0 %v231
    %282 = vmatpush.msra.mxu0 %v230
    %283 = vmatmul.f32.gmra.mxu0 %v89
    %v284 = vpop.f32.mrf.mxu0
    %v285 = vadd.f32 %v265, %v284
    %286 = vdwg.mxu0
    %v287 = vxor.u32 %v285, 2147483648
    %v288 = vmul.f32 %v287, 1.442695
    %v289 = vpow.pop %v288
    %v290 = vadd.f32 %v289, 1.0
    %v291 = vrcp.pop %v290
    %v292 = vmul.f32 %v290, %v291
    %v293 = vsub.f32 1.0, %v292
    %v294 = vmul.f32 %v291, %v293
    %v295 = vadd.f32 %v291, %v294
    %vm296 = vweird.f32 %v290
    %vm297 = vweird.f32 %v291
    %vm298 = vmor %vm296, %vm297
    %v299 = vsel %vm298, %v291, %v295
    %v300 = vand.u32 2147483647, %v290
    %vm301 = vcmp.eq.f32.partialorder %v300, 8.507059e+37
    %v302 = vand.u32 %v290, 2147483648
    %v303 = vor.u32 1.1754944e-38, %v302
    %v304 = vsel %vm301, %v303, %v299
    %v305 = vmul.f32 1.0, %v304
    %v306 = vtanh.pop %v285
    %308 = vrot.lane.b32.xlu0 %v91, 32
    %v309 = vpop.permute.xlu0 %308
    %v311 = vmul.f32 %v305, %v309
    %313 = vrot.lane.b32.xlu0 %v306, 64
    %v314 = vpop.permute.xlu0 %313
    %v316 = vmul.f32 %v305, %v314
    %318 = vrot.lane.b32.xlu0 %v316, 32
    %v319 = vpop.permute.xlu0 %318
    %v321 = vadd.f32 %v311, %v319
    %v322 = vtanh.pop %v321
    %324 = vrot.lane.b32.xlu0 %v322, 64
    %v325 = vpop.permute.xlu0 %324
    %v327 = vmul.f32 %v305, %v325
    %329 = vrot.lane.b32.xlu0 %v327, 32
    %v330 = vpop.permute.xlu0 %329
    %v332 = vsel %vm211, %v330, 0.0
    %v333 = vld [vmem:[#allocation8] sm:$0xff]
    %v334 = vld [vmem:[#allocation8 + $0x8] sm:$0xff]
    %v335 = vld [vmem:[#allocation8 + $0x10] sm:$0xff]
    %v336 = vld [vmem:[#allocation8 + $0x18] sm:$0xff]
    %v337 = vld [vmem:[#allocation8 + $0x20] sm:$0xff]
    %v338 = vld [vmem:[#allocation8 + $0x28] sm:$0xff]
    %v339 = vld [vmem:[#allocation8 + $0x30] sm:$0xff]
    %v340 = vld [vmem:[#allocation8 + $0x38] sm:$0xff]
    %v341 = vld [vmem:[#allocation8 + $0x40] sm:$0xff]
    %v342 = vld [vmem:[#allocation8 + $0x48] sm:$0xff]
    %v343 = vld [vmem:[#allocation8 + $0x50] sm:$0xff]
    %v344 = vld [vmem:[#allocation8 + $0x58] sm:$0xff]
    %v345 = vld [vmem:[#allocation8 + $0x60] sm:$0xff]
    %v346 = vld [vmem:[#allocation8 + $0x68] sm:$0xff]
    %v347 = vld [vmem:[#allocation8 + $0x70] sm:$0xff]
    %v348 = vld [vmem:[#allocation8 + $0x78] sm:$0xff]
    %v349 = vld [vmem:[%s5] sm:$0x1]
    %350 = vmatpush.msra.mxu0 %v348
    %351 = vmatpush.msra.mxu0 %v347
    %352 = vmatpush.msra.mxu0 %v346
    %353 = vmatpush.msra.mxu0 %v345
    %354 = vmatpush.msra.mxu0 %v344
    %355 = vmatpush.msra.mxu0 %v343
    %356 = vmatpush.msra.mxu0 %v342
    %357 = vmatpush.msra.mxu0 %v341
    %358 = vmatpush.msra.mxu0 %v340
    %359 = vmatpush.msra.mxu0 %v339
    %360 = vmatpush.msra.mxu0 %v338
    %361 = vmatpush.msra.mxu0 %v337
    %362 = vmatpush.msra.mxu0 %v336
    %363 = vmatpush.msra.mxu0 %v335
    %364 = vmatpush.msra.mxu0 %v334
    %365 = vmatpush.msra.mxu0 %v333
    %366 = vmatmul.f32.gmra.mxu0 %v332
    %v367 = vpop.f32.mrf.mxu0
    %v368 = vadd.f32 %v349, %v367
    %369 = vdwg.mxu0
    %vm370 = vcmp.lt.s32.totalorder %v87, 1
    %v371 = vxor.u32 %v368, 2147483648
    %v372 = vmul.f32 %v371, 1.442695
    %v373 = vpow.pop %v372
    %v374 = vadd.f32 %v373, 1.0
    %v375 = vrcp.pop %v374
    %v376 = vmul.f32 %v374, %v375
    %v377 = vsub.f32 1.0, %v376
    %v378 = vmul.f32 %v375, %v377
    %v379 = vadd.f32 %v375, %v378
    %vm380 = vweird.f32 %v374
    %vm381 = vweird.f32 %v375
    %vm382 = vmor %vm380, %vm381
    %v383 = vsel %vm382, %v375, %v379
    %v384 = vand.u32 2147483647, %v374
    %vm385 = vcmp.eq.f32.partialorder %v384, 8.507059e+37
    %v386 = vand.u32 %v374, 2147483648
    %v387 = vor.u32 1.1754944e-38, %v386
    %v388 = vsel %vm385, %v387, %v383
    %v389 = vmul.f32 1.0, %v388
    %v390 = vtanh.pop %v368
    %v391 = vsel %vm370, %v389, %v390
    %392 = vst [vmem:[#allocation10] sm:$0x1] %v391
    %v393 = vld [vmem:[#allocation2 + $0x1] sm:$0x1]
    %v394 = vld [vmem:[#allocation7] sm:$0xff]
    %v395 = vld [vmem:[#allocation7 + $0x8] sm:$0xff]
    %v396 = vld [vmem:[#allocation7 + $0x10] sm:$0xff]
    %v397 = vld [vmem:[#allocation7 + $0x18] sm:$0xff]
    %v398 = vld [vmem:[#allocation7 + $0x20] sm:$0xff]
    %v399 = vld [vmem:[#allocation7 + $0x28] sm:$0xff]
    %v400 = vld [vmem:[#allocation7 + $0x30] sm:$0xff]
    %v401 = vld [vmem:[#allocation7 + $0x38] sm:$0xff]
    %v402 = vld [vmem:[#allocation7 + $0x40] sm:$0xff]
    %v403 = vld [vmem:[#allocation7 + $0x48] sm:$0xff]
    %v404 = vld [vmem:[#allocation7 + $0x50] sm:$0xff]
    %v405 = vld [vmem:[#allocation7 + $0x58] sm:$0xff]
    %v406 = vld [vmem:[#allocation7 + $0x60] sm:$0xff]
    %v407 = vld [vmem:[#allocation7 + $0x68] sm:$0xff]
    %v408 = vld [vmem:[#allocation7 + $0x70] sm:$0xff]
    %v409 = vld [vmem:[#allocation7 + $0x78] sm:$0xff]
    %v410 = vld [vmem:[#allocation7 + $0x80] sm:$0xff]
    %v411 = vld [vmem:[#allocation7 + $0x88] sm:$0xff]
    %v412 = vld [vmem:[#allocation7 + $0x90] sm:$0xff]
    %v413 = vld [vmem:[#allocation7 + $0x98] sm:$0xff]
    %v414 = vld [vmem:[#allocation7 + $0xa0] sm:$0xff]
    %v415 = vld [vmem:[#allocation7 + $0xa8] sm:$0xff]
    %v416 = vld [vmem:[#allocation7 + $0xb0] sm:$0xff]
    %v417 = vld [vmem:[#allocation7 + $0xb8] sm:$0xff]
    %v418 = vld [vmem:[#allocation7 + $0xc0] sm:$0xff]
    %v419 = vld [vmem:[#allocation7 + $0xc8] sm:$0xff]
    %v420 = vld [vmem:[#allocation7 + $0xd0] sm:$0xff]
    %v421 = vld [vmem:[#allocation7 + $0xd8] sm:$0xff]
    %v422 = vld [vmem:[#allocation7 + $0xe0] sm:$0xff]
    %v423 = vld [vmem:[#allocation7 + $0xe8] sm:$0xff]
    %v424 = vld [vmem:[#allocation7 + $0xf0] sm:$0xff]
    %v425 = vld [vmem:[#allocation7 + $0xf8] sm:$0xff]
    %v426 = vld [vmem:[%s3] sm:$0x1]
    %427 = vmatpush.msra.mxu0 %v409
    %428 = vmatpush.msra.mxu0 %v408
    %429 = vmatpush.msra.mxu0 %v407
    %430 = vmatpush.msra.mxu0 %v406
    %431 = vmatpush.msra.mxu0 %v405
    %432 = vmatpush.msra.mxu0 %v404
    %433 = vmatpush.msra.mxu0 %v403
    %434 = vmatpush.msra.mxu0 %v402
    %435 = vmatpush.msra.mxu0 %v401
    %436 = vmatpush.msra.mxu0 %v400
    %437 = vmatpush.msra.mxu0 %v399
    %438 = vmatpush.msra.mxu0 %v398
    %439 = vmatpush.msra.mxu0 %v397
    %440 = vmatpush.msra.mxu0 %v396
    %441 = vmatpush.msra.mxu0 %v395
    %442 = vmatpush.msra.mxu0 %v394
    %443 = vmatmul.f32.gmra.mxu0 %v393
    %v444 = vpop.f32.mrf.mxu0
    %v445 = vadd.f32 %v426, %v444
    %446 = vdwg.mxu0
    %447 = vmatpush.msra.mxu0 %v425
    %448 = vmatpush.msra.mxu0 %v424
    %449 = vmatpush.msra.mxu0 %v423
    %450 = vmatpush.msra.mxu0 %v422
    %451 = vmatpush.msra.mxu0 %v421
    %452 = vmatpush.msra.mxu0 %v420
    %453 = vmatpush.msra.mxu0 %v419
    %454 = vmatpush.msra.mxu0 %v418
    %455 = vmatpush.msra.mxu0 %v417
    %456 = vmatpush.msra.mxu0 %v416
    %457 = vmatpush.msra.mxu0 %v415
    %458 = vmatpush.msra.mxu0 %v414
    %459 = vmatpush.msra.mxu0 %v413
    %460 = vmatpush.msra.mxu0 %v412
    %461 = vmatpush.msra.mxu0 %v411
    %462 = vmatpush.msra.mxu0 %v410
    %463 = vmatmul.f32.gmra.mxu0 %v212
    %v464 = vpop.f32.mrf.mxu0
    %v465 = vadd.f32 %v445, %v464
    %466 = vdwg.mxu0
    %v467 = vxor.u32 %v465, 2147483648
    %v468 = vmul.f32 %v467, 1.442695
    %v469 = vpow.pop %v468
    %v470 = vadd.f32 %v469, 1.0
    %v471 = vrcp.pop %v470
    %v472 = vmul.f32 %v470, %v471
    %v473 = vsub.f32 1.0, %v472
    %v474 = vmul.f32 %v471, %v473
    %v475 = vadd.f32 %v471, %v474
    %vm476 = vweird.f32 %v470
    %vm477 = vweird.f32 %v471
    %vm478 = vmor %vm476, %vm477
    %v479 = vsel %vm478, %v471, %v475
    %v480 = vand.u32 2147483647, %v470
    %vm481 = vcmp.eq.f32.partialorder %v480, 8.507059e+37
    %v482 = vand.u32 %v470, 2147483648
    %v483 = vor.u32 1.1754944e-38, %v482
    %v484 = vsel %vm481, %v483, %v479
    %v485 = vmul.f32 1.0, %v484
    %v486 = vtanh.pop %v465
    %v487 = vmul.f32 %v485, %v200
    %489 = vrot.lane.b32.xlu0 %v486, 64
    %v490 = vpop.permute.xlu0 %489
    %v492 = vmul.f32 %v485, %v490
    %494 = vrot.lane.b32.xlu0 %v492, 32
    %v495 = vpop.permute.xlu0 %494
    %v497 = vadd.f32 %v487, %v495
    %v498 = vtanh.pop %v497
    %500 = vrot.lane.b32.xlu0 %v498, 64
    %v501 = vpop.permute.xlu0 %500
    %v503 = vmul.f32 %v485, %v501
    %505 = vrot.lane.b32.xlu0 %v503, 32
    %v506 = vpop.permute.xlu0 %505
    %v508 = vsel %vm211, %v506, 0.0
    %v509 = vld [vmem:[%s213] sm:$0xff]
    %v510 = vld [vmem:[%s213 + $0x8] sm:$0xff]
    %v511 = vld [vmem:[%s213 + $0x10] sm:$0xff]
    %v512 = vld [vmem:[%s213 + $0x18] sm:$0xff]
    %v513 = vld [vmem:[%s213 + $0x20] sm:$0xff]
    %v514 = vld [vmem:[%s213 + $0x28] sm:$0xff]
    %v515 = vld [vmem:[%s213 + $0x30] sm:$0xff]
    %v516 = vld [vmem:[%s213 + $0x38] sm:$0xff]
    %v517 = vld [vmem:[%s213 + $0x40] sm:$0xff]
    %v518 = vld [vmem:[%s213 + $0x48] sm:$0xff]
    %v519 = vld [vmem:[%s213 + $0x50] sm:$0xff]
    %v520 = vld [vmem:[%s213 + $0x58] sm:$0xff]
    %v521 = vld [vmem:[%s213 + $0x60] sm:$0xff]
    %v522 = vld [vmem:[%s213 + $0x68] sm:$0xff]
    %v523 = vld [vmem:[%s213 + $0x70] sm:$0xff]
    %v524 = vld [vmem:[%s213 + $0x78] sm:$0xff]
    %v525 = vld [vmem:[%s213 + $0x80] sm:$0xff]
    %v526 = vld [vmem:[%s213 + $0x88] sm:$0xff]
    %v527 = vld [vmem:[%s213 + $0x90] sm:$0xff]
    %v528 = vld [vmem:[%s213 + $0x98] sm:$0xff]
    %v529 = vld [vmem:[%s213 + $0xa0] sm:$0xff]
    %v530 = vld [vmem:[%s213 + $0xa8] sm:$0xff]
    %v531 = vld [vmem:[%s213 + $0xb0] sm:$0xff]
    %v532 = vld [vmem:[%s213 + $0xb8] sm:$0xff]
    %v533 = vld [vmem:[%s213 + $0xc0] sm:$0xff]
    %v534 = vld [vmem:[%s213 + $0xc8] sm:$0xff]
    %v535 = vld [vmem:[%s213 + $0xd0] sm:$0xff]
    %v536 = vld [vmem:[%s213 + $0xd8] sm:$0xff]
    %v537 = vld [vmem:[%s213 + $0xe0] sm:$0xff]
    %v538 = vld [vmem:[%s213 + $0xe8] sm:$0xff]
    %v539 = vld [vmem:[%s213 + $0xf0] sm:$0xff]
    %v540 = vld [vmem:[%s213 + $0xf8] sm:$0xff]
    %v541 = vld [vmem:[%s3 + $0x1] sm:$0x1]
    %542 = vmatpush.msra.mxu0 %v524
    %543 = vmatpush.msra.mxu0 %v523
    %544 = vmatpush.msra.mxu0 %v522
    %545 = vmatpush.msra.mxu0 %v521
    %546 = vmatpush.msra.mxu0 %v520
    %547 = vmatpush.msra.mxu0 %v519
    %548 = vmatpush.msra.mxu0 %v518
    %549 = vmatpush.msra.mxu0 %v517
    %550 = vmatpush.msra.mxu0 %v516
    %551 = vmatpush.msra.mxu0 %v515
    %552 = vmatpush.msra.mxu0 %v514
    %553 = vmatpush.msra.mxu0 %v513
    %554 = vmatpush.msra.mxu0 %v512
    %555 = vmatpush.msra.mxu0 %v511
    %556 = vmatpush.msra.mxu0 %v510
    %557 = vmatpush.msra.mxu0 %v509
    %558 = vmatmul.f32.gmra.mxu0 %v508
    %v559 = vpop.f32.mrf.mxu0
    %v560 = vadd.f32 %v541, %v559
    %561 = vdwg.mxu0
    %562 = vmatpush.msra.mxu0 %v540
    %563 = vmatpush.msra.mxu0 %v539
    %564 = vmatpush.msra.mxu0 %v538
    %565 = vmatpush.msra.mxu0 %v537
    %566 = vmatpush.msra.mxu0 %v536
    %567 = vmatpush.msra.mxu0 %v535
    %568 = vmatpush.msra.mxu0 %v534
    %569 = vmatpush.msra.mxu0 %v533
    %570 = vmatpush.msra.mxu0 %v532
    %571 = vmatpush.msra.mxu0 %v531
    %572 = vmatpush.msra.mxu0 %v530
    %573 = vmatpush.msra.mxu0 %v529
    %574 = vmatpush.msra.mxu0 %v528
    %575 = vmatpush.msra.mxu0 %v527
    %576 = vmatpush.msra.mxu0 %v526
    %577 = vmatpush.msra.mxu0 %v525
    %578 = vmatmul.f32.gmra.mxu0 %v332
    %v579 = vpop.f32.mrf.mxu0
    %v580 = vadd.f32 %v560, %v579
    %581 = vdwg.mxu0
    %v582 = vxor.u32 %v580, 2147483648
    %v583 = vmul.f32 %v582, 1.442695
    %v584 = vpow.pop %v583
    %v585 = vadd.f32 %v584, 1.0
    %v586 = vrcp.pop %v585
    %v587 = vmul.f32 %v585, %v586
    %v588 = vsub.f32 1.0, %v587
    %v589 = vmul.f32 %v586, %v588
    %v590 = vadd.f32 %v586, %v589
    %vm591 = vweird.f32 %v585
    %vm592 = vweird.f32 %v586
    %vm593 = vmor %vm591, %vm592
    %v594 = vsel %vm593, %v586, %v590
    %v595 = vand.u32 2147483647, %v585
    %vm596 = vcmp.eq.f32.partialorder %v595, 8.507059e+37
    %v597 = vand.u32 %v585, 2147483648
    %v598 = vor.u32 1.1754944e-38, %v597
    %v599 = vsel %vm596, %v598, %v594
    %v600 = vmul.f32 1.0, %v599
    %v601 = vtanh.pop %v580
    %v602 = vmul.f32 %v600, %v321
    %604 = vrot.lane.b32.xlu0 %v601, 64
    %v605 = vpop.permute.xlu0 %604
    %v607 = vmul.f32 %v600, %v605
    %609 = vrot.lane.b32.xlu0 %v607, 32
    %v610 = vpop.permute.xlu0 %609
    %v612 = vadd.f32 %v602, %v610
    %v613 = vtanh.pop %v612
    %615 = vrot.lane.b32.xlu0 %v613, 64
    %v616 = vpop.permute.xlu0 %615
    %v618 = vmul.f32 %v600, %v616
    %620 = vrot.lane.b32.xlu0 %v618, 32
    %v621 = vpop.permute.xlu0 %620
    %v623 = vsel %vm211, %v621, 0.0
    %v624 = vld [vmem:[#allocation8] sm:$0xff]
    %v625 = vld [vmem:[#allocation8 + $0x8] sm:$0xff]
    %v626 = vld [vmem:[#allocation8 + $0x10] sm:$0xff]
    %v627 = vld [vmem:[#allocation8 + $0x18] sm:$0xff]
    %v628 = vld [vmem:[#allocation8 + $0x20] sm:$0xff]
    %v629 = vld [vmem:[#allocation8 + $0x28] sm:$0xff]
    %v630 = vld [vmem:[#allocation8 + $0x30] sm:$0xff]
    %v631 = vld [vmem:[#allocation8 + $0x38] sm:$0xff]
    %v632 = vld [vmem:[#allocation8 + $0x40] sm:$0xff]
    %v633 = vld [vmem:[#allocation8 + $0x48] sm:$0xff]
    %v634 = vld [vmem:[#allocation8 + $0x50] sm:$0xff]
    %v635 = vld [vmem:[#allocation8 + $0x58] sm:$0xff]
    %v636 = vld [vmem:[#allocation8 + $0x60] sm:$0xff]
    %v637 = vld [vmem:[#allocation8 + $0x68] sm:$0xff]
    %v638 = vld [vmem:[#allocation8 + $0x70] sm:$0xff]
    %v639 = vld [vmem:[#allocation8 + $0x78] sm:$0xff]
    %v640 = vld [vmem:[%s5] sm:$0x1]
    %641 = vmatpush.msra.mxu0 %v639
    %642 = vmatpush.msra.mxu0 %v638
    %643 = vmatpush.msra.mxu0 %v637
    %644 = vmatpush.msra.mxu0 %v636
    %645 = vmatpush.msra.mxu0 %v635
    %646 = vmatpush.msra.mxu0 %v634
    %647 = vmatpush.msra.mxu0 %v633
    %648 = vmatpush.msra.mxu0 %v632
    %649 = vmatpush.msra.mxu0 %v631
    %650 = vmatpush.msra.mxu0 %v630
    %651 = vmatpush.msra.mxu0 %v629
    %652 = vmatpush.msra.mxu0 %v628
    %653 = vmatpush.msra.mxu0 %v627
    %654 = vmatpush.msra.mxu0 %v626
    %655 = vmatpush.msra.mxu0 %v625
    %656 = vmatpush.msra.mxu0 %v624
    %657 = vmatmul.f32.gmra.mxu0 %v623
    %v658 = vpop.f32.mrf.mxu0
    %v659 = vadd.f32 %v640, %v658
    %660 = vdwg.mxu0
    %v661 = vxor.u32 %v659, 2147483648
    %v662 = vmul.f32 %v661, 1.442695
    %v663 = vpow.pop %v662
    %v664 = vadd.f32 %v663, 1.0
    %v665 = vrcp.pop %v664
    %v666 = vmul.f32 %v664, %v665
    %v667 = vsub.f32 1.0, %v666
    %v668 = vmul.f32 %v665, %v667
    %v669 = vadd.f32 %v665, %v668
    %vm670 = vweird.f32 %v664
    %vm671 = vweird.f32 %v665
    %vm672 = vmor %vm670, %vm671
    %v673 = vsel %vm672, %v665, %v669
    %v674 = vand.u32 2147483647, %v664
    %vm675 = vcmp.eq.f32.partialorder %v674, 8.507059e+37
    %v676 = vand.u32 %v664, 2147483648
    %v677 = vor.u32 1.1754944e-38, %v676
    %v678 = vsel %vm675, %v677, %v673
    %v679 = vmul.f32 1.0, %v678
    %v680 = vtanh.pop %v659
    %v681 = vsel %vm370, %v679, %v680
    %682 = vst [vmem:[#allocation10 + $0x1] sm:$0x1] %v681
    %v683 = vld [vmem:[#allocation2 + $0x2] sm:$0x1]
    %v684 = vld [vmem:[#allocation7] sm:$0xff]
    %v685 = vld [vmem:[#allocation7 + $0x8] sm:$0xff]
    %v686 = vld [vmem:[#allocation7 + $0x10] sm:$0xff]
    %v687 = vld [vmem:[#allocation7 + $0x18] sm:$0xff]
    %v688 = vld [vmem:[#allocation7 + $0x20] sm:$0xff]
    %v689 = vld [vmem:[#allocation7 + $0x28] sm:$0xff]
    %v690 = vld [vmem:[#allocation7 + $0x30] sm:$0xff]
    %v691 = vld [vmem:[#allocation7 + $0x38] sm:$0xff]
    %v692 = vld [vmem:[#allocation7 + $0x40] sm:$0xff]
    %v693 = vld [vmem:[#allocation7 + $0x48] sm:$0xff]
    %v694 = vld [vmem:[#allocation7 + $0x50] sm:$0xff]
    %v695 = vld [vmem:[#allocation7 + $0x58] sm:$0xff]
    %v696 = vld [vmem:[#allocation7 + $0x60] sm:$0xff]
    %v697 = vld [vmem:[#allocation7 + $0x68] sm:$0xff]
    %v698 = vld [vmem:[#allocation7 + $0x70] sm:$0xff]
    %v699 = vld [vmem:[#allocation7 + $0x78] sm:$0xff]
    %v700 = vld [vmem:[#allocation7 + $0x80] sm:$0xff]
    %v701 = vld [vmem:[#allocation7 + $0x88] sm:$0xff]
    %v702 = vld [vmem:[#allocation7 + $0x90] sm:$0xff]
    %v703 = vld [vmem:[#allocation7 + $0x98] sm:$0xff]
    %v704 = vld [vmem:[#allocation7 + $0xa0] sm:$0xff]
    %v705 = vld [vmem:[#allocation7 + $0xa8] sm:$0xff]
    %v706 = vld [vmem:[#allocation7 + $0xb0] sm:$0xff]
    %v707 = vld [vmem:[#allocation7 + $0xb8] sm:$0xff]
    %v708 = vld [vmem:[#allocation7 + $0xc0] sm:$0xff]
    %v709 = vld [vmem:[#allocation7 + $0xc8] sm:$0xff]
    %v710 = vld [vmem:[#allocation7 + $0xd0] sm:$0xff]
    %v711 = vld [vmem:[#allocation7 + $0xd8] sm:$0xff]
    %v712 = vld [vmem:[#allocation7 + $0xe0] sm:$0xff]
    %v713 = vld [vmem:[#allocation7 + $0xe8] sm:$0xff]
    %v714 = vld [vmem:[#allocation7 + $0xf0] sm:$0xff]
    %v715 = vld [vmem:[#allocation7 + $0xf8] sm:$0xff]
    %v716 = vld [vmem:[%s3] sm:$0x1]
    %717 = vmatpush.msra.mxu0 %v699
    %718 = vmatpush.msra.mxu0 %v698
    %719 = vmatpush.msra.mxu0 %v697
    %720 = vmatpush.msra.mxu0 %v696
    %721 = vmatpush.msra.mxu0 %v695
    %722 = vmatpush.msra.mxu0 %v694
    %723 = vmatpush.msra.mxu0 %v693
    %724 = vmatpush.msra.mxu0 %v692
    %725 = vmatpush.msra.mxu0 %v691
    %726 = vmatpush.msra.mxu0 %v690
    %727 = vmatpush.msra.mxu0 %v689
    %728 = vmatpush.msra.mxu0 %v688
    %729 = vmatpush.msra.mxu0 %v687
    %730 = vmatpush.msra.mxu0 %v686
    %731 = vmatpush.msra.mxu0 %v685
    %732 = vmatpush.msra.mxu0 %v684
    %733 = vmatmul.f32.gmra.mxu0 %v683
    %v734 = vpop.f32.mrf.mxu0
    %v735 = vadd.f32 %v716, %v734
    %736 = vdwg.mxu0
    %737 = vmatpush.msra.mxu0 %v715
    %738 = vmatpush.msra.mxu0 %v714
    %739 = vmatpush.msra.mxu0 %v713
    %740 = vmatpush.msra.mxu0 %v712
    %741 = vmatpush.msra.mxu0 %v711
    %742 = vmatpush.msra.mxu0 %v710
    %743 = vmatpush.msra.mxu0 %v709
    %744 = vmatpush.msra.mxu0 %v708
    %745 = vmatpush.msra.mxu0 %v707
    %746 = vmatpush.msra.mxu0 %v706
    %747 = vmatpush.msra.mxu0 %v705
    %748 = vmatpush.msra.mxu0 %v704
    %749 = vmatpush.msra.mxu0 %v703
    %750 = vmatpush.msra.mxu0 %v702
    %751 = vmatpush.msra.mxu0 %v701
    %752 = vmatpush.msra.mxu0 %v700
    %753 = vmatmul.f32.gmra.mxu0 %v508
    %v754 = vpop.f32.mrf.mxu0
    %v755 = vadd.f32 %v735, %v754
    %756 = vdwg.mxu0
    %v757 = vxor.u32 %v755, 2147483648
    %v758 = vmul.f32 %v757, 1.442695
    %v759 = vpow.pop %v758
    %v760 = vadd.f32 %v759, 1.0
    %v761 = vrcp.pop %v760
    %v762 = vmul.f32 %v760, %v761
    %v763 = vsub.f32 1.0, %v762
    %v764 = vmul.f32 %v761, %v763
    %v765 = vadd.f32 %v761, %v764
    %vm766 = vweird.f32 %v760
    %vm767 = vweird.f32 %v761
    %vm768 = vmor %vm766, %vm767
    %v769 = vsel %vm768, %v761, %v765
    %v770 = vand.u32 2147483647, %v760
    %vm771 = vcmp.eq.f32.partialorder %v770, 8.507059e+37
    %v772 = vand.u32 %v760, 2147483648
    %v773 = vor.u32 1.1754944e-38, %v772
    %v774 = vsel %vm771, %v773, %v769
    %v775 = vmul.f32 1.0, %v774
    %v776 = vtanh.pop %v755
    %v777 = vmul.f32 %v775, %v497
    %779 = vrot.lane.b32.xlu0 %v776, 64
    %v780 = vpop.permute.xlu0 %779
    %v782 = vmul.f32 %v775, %v780
    %784 = vrot.lane.b32.xlu0 %v782, 32
    %v785 = vpop.permute.xlu0 %784
    %v787 = vadd.f32 %v777, %v785
    %v788 = vtanh.pop %v787
    %790 = vrot.lane.b32.xlu0 %v788, 64
    %v791 = vpop.permute.xlu0 %790
    %v793 = vmul.f32 %v775, %v791
    %795 = vrot.lane.b32.xlu0 %v793, 32
    %v796 = vpop.permute.xlu0 %795
    %v798 = vsel %vm211, %v796, 0.0
    %v799 = vld [vmem:[%s213] sm:$0xff]
    %v800 = vld [vmem:[%s213 + $0x8] sm:$0xff]
    %v801 = vld [vmem:[%s213 + $0x10] sm:$0xff]
    %v802 = vld [vmem:[%s213 + $0x18] sm:$0xff]
    %v803 = vld [vmem:[%s213 + $0x20] sm:$0xff]
    %v804 = vld [vmem:[%s213 + $0x28] sm:$0xff]
    %v805 = vld [vmem:[%s213 + $0x30] sm:$0xff]
    %v806 = vld [vmem:[%s213 + $0x38] sm:$0xff]
    %v807 = vld [vmem:[%s213 + $0x40] sm:$0xff]
    %v808 = vld [vmem:[%s213 + $0x48] sm:$0xff]
    %v809 = vld [vmem:[%s213 + $0x50] sm:$0xff]
    %v810 = vld [vmem:[%s213 + $0x58] sm:$0xff]
    %v811 = vld [vmem:[%s213 + $0x60] sm:$0xff]
    %v812 = vld [vmem:[%s213 + $0x68] sm:$0xff]
    %v813 = vld [vmem:[%s213 + $0x70] sm:$0xff]
    %v814 = vld [vmem:[%s213 + $0x78] sm:$0xff]
    %v815 = vld [vmem:[%s213 + $0x80] sm:$0xff]
    %v816 = vld [vmem:[%s213 + $0x88] sm:$0xff]
    %v817 = vld [vmem:[%s213 + $0x90] sm:$0xff]
    %v818 = vld [vmem:[%s213 + $0x98] sm:$0xff]
    %v819 = vld [vmem:[%s213 + $0xa0] sm:$0xff]
    %v820 = vld [vmem:[%s213 + $0xa8] sm:$0xff]
    %v821 = vld [vmem:[%s213 + $0xb0] sm:$0xff]
    %v822 = vld [vmem:[%s213 + $0xb8] sm:$0xff]
    %v823 = vld [vmem:[%s213 + $0xc0] sm:$0xff]
    %v824 = vld [vmem:[%s213 + $0xc8] sm:$0xff]
    %v825 = vld [vmem:[%s213 + $0xd0] sm:$0xff]
    %v826 = vld [vmem:[%s213 + $0xd8] sm:$0xff]
    %v827 = vld [vmem:[%s213 + $0xe0] sm:$0xff]
    %v828 = vld [vmem:[%s213 + $0xe8] sm:$0xff]
    %v829 = vld [vmem:[%s213 + $0xf0] sm:$0xff]
    %v830 = vld [vmem:[%s213 + $0xf8] sm:$0xff]
    %v831 = vld [vmem:[%s3 + $0x1] sm:$0x1]
    %832 = vmatpush.msra.mxu0 %v814
    %833 = vmatpush.msra.mxu0 %v813
    %834 = vmatpush.msra.mxu0 %v812
    %835 = vmatpush.msra.mxu0 %v811
    %836 = vmatpush.msra.mxu0 %v810
    %837 = vmatpush.msra.mxu0 %v809
    %838 = vmatpush.msra.mxu0 %v808
    %839 = vmatpush.msra.mxu0 %v807
    %840 = vmatpush.msra.mxu0 %v806
    %841 = vmatpush.msra.mxu0 %v805
    %842 = vmatpush.msra.mxu0 %v804
    %843 = vmatpush.msra.mxu0 %v803
    %844 = vmatpush.msra.mxu0 %v802
    %845 = vmatpush.msra.mxu0 %v801
    %846 = vmatpush.msra.mxu0 %v800
    %847 = vmatpush.msra.mxu0 %v799
    %848 = vmatmul.f32.gmra.mxu0 %v798
    %v849 = vpop.f32.mrf.mxu0
    %v850 = vadd.f32 %v831, %v849
    %851 = vdwg.mxu0
    %852 = vmatpush.msra.mxu0 %v830
    %853 = vmatpush.msra.mxu0 %v829
    %854 = vmatpush.msra.mxu0 %v828
    %855 = vmatpush.msra.mxu0 %v827
    %856 = vmatpush.msra.mxu0 %v826
    %857 = vmatpush.msra.mxu0 %v825
    %858 = vmatpush.msra.mxu0 %v824
    %859 = vmatpush.msra.mxu0 %v823
    %860 = vmatpush.msra.mxu0 %v822
    %861 = vmatpush.msra.mxu0 %v821
    %862 = vmatpush.msra.mxu0 %v820
    %863 = vmatpush.msra.mxu0 %v819
    %864 = vmatpush.msra.mxu0 %v818
    %865 = vmatpush.msra.mxu0 %v817
    %866 = vmatpush.msra.mxu0 %v816
    %867 = vmatpush.msra.mxu0 %v815
    %868 = vmatmul.f32.gmra.mxu0 %v623
    %v869 = vpop.f32.mrf.mxu0
    %v870 = vadd.f32 %v850, %v869
    %871 = vdwg.mxu0
    %v872 = vxor.u32 %v870, 2147483648
    %v873 = vmul.f32 %v872, 1.442695
    %v874 = vpow.pop %v873
    %v875 = vadd.f32 %v874, 1.0
    %v876 = vrcp.pop %v875
    %v877 = vmul.f32 %v875, %v876
    %v878 = vsub.f32 1.0, %v877
    %v879 = vmul.f32 %v876, %v878
    %v880 = vadd.f32 %v876, %v879
    %vm881 = vweird.f32 %v875
    %vm882 = vweird.f32 %v876
    %vm883 = vmor %vm881, %vm882
    %v884 = vsel %vm883, %v876, %v880
    %v885 = vand.u32 2147483647, %v875
    %vm886 = vcmp.eq.f32.partialorder %v885, 8.507059e+37
    %v887 = vand.u32 %v875, 2147483648
    %v888 = vor.u32 1.1754944e-38, %v887
    %v889 = vsel %vm886, %v888, %v884
    %v890 = vmul.f32 1.0, %v889
    %v891 = vtanh.pop %v870
    %v892 = vmul.f32 %v890, %v612
    %894 = vrot.lane.b32.xlu0 %v891, 64
    %v895 = vpop.permute.xlu0 %894
    %v897 = vmul.f32 %v890, %v895
    %899 = vrot.lane.b32.xlu0 %v897, 32
    %v900 = vpop.permute.xlu0 %899
    %v902 = vadd.f32 %v892, %v900
    %v903 = vtanh.pop %v902
    %905 = vrot.lane.b32.xlu0 %v903, 64
    %v906 = vpop.permute.xlu0 %905
    %v908 = vmul.f32 %v890, %v906
    %910 = vrot.lane.b32.xlu0 %v908, 32
    %v911 = vpop.permute.xlu0 %910
    %v913 = vsel %vm211, %v911, 0.0
    %v914 = vld [vmem:[#allocation8] sm:$0xff]
    %v915 = vld [vmem:[#allocation8 + $0x8] sm:$0xff]
    %v916 = vld [vmem:[#allocation8 + $0x10] sm:$0xff]
    %v917 = vld [vmem:[#allocation8 + $0x18] sm:$0xff]
    %v918 = vld [vmem:[#allocation8 + $0x20] sm:$0xff]
    %v919 = vld [vmem:[#allocation8 + $0x28] sm:$0xff]
    %v920 = vld [vmem:[#allocation8 + $0x30] sm:$0xff]
    %v921 = vld [vmem:[#allocation8 + $0x38] sm:$0xff]
    %v922 = vld [vmem:[#allocation8 + $0x40] sm:$0xff]
    %v923 = vld [vmem:[#allocation8 + $0x48] sm:$0xff]
    %v924 = vld [vmem:[#allocation8 + $0x50] sm:$0xff]
    %v925 = vld [vmem:[#allocation8 + $0x58] sm:$0xff]
    %v926 = vld [vmem:[#allocation8 + $0x60] sm:$0xff]
    %v927 = vld [vmem:[#allocation8 + $0x68] sm:$0xff]
    %v928 = vld [vmem:[#allocation8 + $0x70] sm:$0xff]
    %v929 = vld [vmem:[#allocation8 + $0x78] sm:$0xff]
    %v930 = vld [vmem:[%s5] sm:$0x1]
    %931 = vmatpush.msra.mxu0 %v929
    %932 = vmatpush.msra.mxu0 %v928
    %933 = vmatpush.msra.mxu0 %v927
    %934 = vmatpush.msra.mxu0 %v926
    %935 = vmatpush.msra.mxu0 %v925
    %936 = vmatpush.msra.mxu0 %v924
    %937 = vmatpush.msra.mxu0 %v923
    %938 = vmatpush.msra.mxu0 %v922
    %939 = vmatpush.msra.mxu0 %v921
    %940 = vmatpush.msra.mxu0 %v920
    %941 = vmatpush.msra.mxu0 %v919
    %942 = vmatpush.msra.mxu0 %v918
    %943 = vmatpush.msra.mxu0 %v917
    %944 = vmatpush.msra.mxu0 %v916
    %945 = vmatpush.msra.mxu0 %v915
    %946 = vmatpush.msra.mxu0 %v914
    %947 = vmatmul.f32.gmra.mxu0 %v913
    %v948 = vpop.f32.mrf.mxu0
    %v949 = vadd.f32 %v930, %v948
    %950 = vdwg.mxu0
    %v951 = vxor.u32 %v949, 2147483648
    %v952 = vmul.f32 %v951, 1.442695
    %v953 = vpow.pop %v952
    %v954 = vadd.f32 %v953, 1.0
    %v955 = vrcp.pop %v954
    %v956 = vmul.f32 %v954, %v955
    %v957 = vsub.f32 1.0, %v956
    %v958 = vmul.f32 %v955, %v957
    %v959 = vadd.f32 %v955, %v958
    %vm960 = vweird.f32 %v954
    %vm961 = vweird.f32 %v955
    %vm962 = vmor %vm960, %vm961
    %v963 = vsel %vm962, %v955, %v959
    %v964 = vand.u32 2147483647, %v954
    %vm965 = vcmp.eq.f32.partialorder %v964, 8.507059e+37
    %v966 = vand.u32 %v954, 2147483648
    %v967 = vor.u32 1.1754944e-38, %v966
    %v968 = vsel %vm965, %v967, %v963
    %v969 = vmul.f32 1.0, %v968
    %v970 = vtanh.pop %v949
    %v971 = vsel %vm370, %v969, %v970
    %972 = vst [vmem:[#allocation10 + $0x2] sm:$0x1] %v971
    %v973 = vld [vmem:[#allocation2 + $0x3] sm:$0x1]
    %v974 = vld [vmem:[#allocation7] sm:$0xff]
    %v975 = vld [vmem:[#allocation7 + $0x8] sm:$0xff]
    %v976 = vld [vmem:[#allocation7 + $0x10] sm:$0xff]
    %v977 = vld [vmem:[#allocation7 + $0x18] sm:$0xff]
    %v978 = vld [vmem:[#allocation7 + $0x20] sm:$0xff]
    %v979 = vld [vmem:[#allocation7 + $0x28] sm:$0xff]
    %v980 = vld [vmem:[#allocation7 + $0x30] sm:$0xff]
    %v981 = vld [vmem:[#allocation7 + $0x38] sm:$0xff]
    %v982 = vld [vmem:[#allocation7 + $0x40] sm:$0xff]
    %v983 = vld [vmem:[#allocation7 + $0x48] sm:$0xff]
    %v984 = vld [vmem:[#allocation7 + $0x50] sm:$0xff]
    %v985 = vld [vmem:[#allocation7 + $0x58] sm:$0xff]
    %v986 = vld [vmem:[#allocation7 + $0x60] sm:$0xff]
    %v987 = vld [vmem:[#allocation7 + $0x68] sm:$0xff]
    %v988 = vld [vmem:[#allocation7 + $0x70] sm:$0xff]
    %v989 = vld [vmem:[#allocation7 + $0x78] sm:$0xff]
    %v990 = vld [vmem:[#allocation7 + $0x80] sm:$0xff]
    %v991 = vld [vmem:[#allocation7 + $0x88] sm:$0xff]
    %v992 = vld [vmem:[#allocation7 + $0x90] sm:$0xff]
    %v993 = vld [vmem:[#allocation7 + $0x98] sm:$0xff]
    %v994 = vld [vmem:[#allocation7 + $0xa0] sm:$0xff]
    %v995 = vld [vmem:[#allocation7 + $0xa8] sm:$0xff]
    %v996 = vld [vmem:[#allocation7 + $0xb0] sm:$0xff]
    %v997 = vld [vmem:[#allocation7 + $0xb8] sm:$0xff]
    %v998 = vld [vmem:[#allocation7 + $0xc0] sm:$0xff]
    %v999 = vld [vmem:[#allocation7 + $0xc8] sm:$0xff]
    %v1000 = vld [vmem:[#allocation7 + $0xd0] sm:$0xff]
    %v1001 = vld [vmem:[#allocation7 + $0xd8] sm:$0xff]
    %v1002 = vld [vmem:[#allocation7 + $0xe0] sm:$0xff]
    %v1003 = vld [vmem:[#allocation7 + $0xe8] sm:$0xff]
    %v1004 = vld [vmem:[#allocation7 + $0xf0] sm:$0xff]
    %v1005 = vld [vmem:[#allocation7 + $0xf8] sm:$0xff]
    %v1006 = vld [vmem:[%s3] sm:$0x1]
    %1007 = vmatpush.msra.mxu0 %v989
    %1008 = vmatpush.msra.mxu0 %v988
    %1009 = vmatpush.msra.mxu0 %v987
    %1010 = vmatpush.msra.mxu0 %v986
    %1011 = vmatpush.msra.mxu0 %v985
    %1012 = vmatpush.msra.mxu0 %v984
    %1013 = vmatpush.msra.mxu0 %v983
    %1014 = vmatpush.msra.mxu0 %v982
    %1015 = vmatpush.msra.mxu0 %v981
    %1016 = vmatpush.msra.mxu0 %v980
    %1017 = vmatpush.msra.mxu0 %v979
    %1018 = vmatpush.msra.mxu0 %v978
    %1019 = vmatpush.msra.mxu0 %v977
    %1020 = vmatpush.msra.mxu0 %v976
    %1021 = vmatpush.msra.mxu0 %v975
    %1022 = vmatpush.msra.mxu0 %v974
    %1023 = vmatmul.f32.gmra.mxu0 %v973
    %v1024 = vpop.f32.mrf.mxu0
    %v1025 = vadd.f32 %v1006, %v1024
    %1026 = vdwg.mxu0
    %1027 = vmatpush.msra.mxu0 %v1005
    %1028 = vmatpush.msra.mxu0 %v1004
    %1029 = vmatpush.msra.mxu0 %v1003
    %1030 = vmatpush.msra.mxu0 %v1002
    %1031 = vmatpush.msra.mxu0 %v1001
    %1032 = vmatpush.msra.mxu0 %v1000
    %1033 = vmatpush.msra.mxu0 %v999
    %1034 = vmatpush.msra.mxu0 %v998
    %1035 = vmatpush.msra.mxu0 %v997
    %1036 = vmatpush.msra.mxu0 %v996
    %1037 = vmatpush.msra.mxu0 %v995
    %1038 = vmatpush.msra.mxu0 %v994
    %1039 = vmatpush.msra.mxu0 %v993
    %1040 = vmatpush.msra.mxu0 %v992
    %1041 = vmatpush.msra.mxu0 %v991
    %1042 = vmatpush.msra.mxu0 %v990
    %1043 = vmatmul.f32.gmra.mxu0 %v798
    %v1044 = vpop.f32.mrf.mxu0
    %v1045 = vadd.f32 %v1025, %v1044
    %1046 = vdwg.mxu0
    %v1047 = vxor.u32 %v1045, 2147483648
    %v1048 = vmul.f32 %v1047, 1.442695
    %v1049 = vpow.pop %v1048
    %v1050 = vadd.f32 %v1049, 1.0
    %v1051 = vrcp.pop %v1050
    %v1052 = vmul.f32 %v1050, %v1051
    %v1053 = vsub.f32 1.0, %v1052
    %v1054 = vmul.f32 %v1051, %v1053
    %v1055 = vadd.f32 %v1051, %v1054
    %vm1056 = vweird.f32 %v1050
    %vm1057 = vweird.f32 %v1051
    %vm1058 = vmor %vm1056, %vm1057
    %v1059 = vsel %vm1058, %v1051, %v1055
    %v1060 = vand.u32 2147483647, %v1050
    %vm1061 = vcmp.eq.f32.partialorder %v1060, 8.507059e+37
    %v1062 = vand.u32 %v1050, 2147483648
    %v1063 = vor.u32 1.1754944e-38, %v1062
    %v1064 = vsel %vm1061, %v1063, %v1059
    %v1065 = vmul.f32 1.0, %v1064
    %v1066 = vtanh.pop %v1045
    %v1067 = vmul.f32 %v1065, %v787
    %1069 = vrot.lane.b32.xlu0 %v1066, 64
    %v1070 = vpop.permute.xlu0 %1069
    %v1072 = vmul.f32 %v1065, %v1070
    %1074 = vrot.lane.b32.xlu0 %v1072, 32
    %v1075 = vpop.permute.xlu0 %1074
    %v1077 = vadd.f32 %v1067, %v1075
    %v1078 = vtanh.pop %v1077
    %1080 = vrot.lane.b32.xlu0 %v1078, 64
    %v1081 = vpop.permute.xlu0 %1080
    %v1083 = vmul.f32 %v1065, %v1081
    %1085 = vrot.lane.b32.xlu0 %v1083, 32
    %v1086 = vpop.permute.xlu0 %1085
    %v1088 = vsel %vm211, %v1086, 0.0
    %v1089 = vld [vmem:[%s213] sm:$0xff]
    %v1090 = vld [vmem:[%s213 + $0x8] sm:$0xff]
    %v1091 = vld [vmem:[%s213 + $0x10] sm:$0xff]
    %v1092 = vld [vmem:[%s213 + $0x18] sm:$0xff]
    %v1093 = vld [vmem:[%s213 + $0x20] sm:$0xff]
    %v1094 = vld [vmem:[%s213 + $0x28] sm:$0xff]
    %v1095 = vld [vmem:[%s213 + $0x30] sm:$0xff]
    %v1096 = vld [vmem:[%s213 + $0x38] sm:$0xff]
    %v1097 = vld [vmem:[%s213 + $0x40] sm:$0xff]
    %v1098 = vld [vmem:[%s213 + $0x48] sm:$0xff]
    %v1099 = vld [vmem:[%s213 + $0x50] sm:$0xff]
    %v1100 = vld [vmem:[%s213 + $0x58] sm:$0xff]
    %v1101 = vld [vmem:[%s213 + $0x60] sm:$0xff]
    %v1102 = vld [vmem:[%s213 + $0x68] sm:$0xff]
    %v1103 = vld [vmem:[%s213 + $0x70] sm:$0xff]
    %v1104 = vld [vmem:[%s213 + $0x78] sm:$0xff]
    %v1105 = vld [vmem:[%s213 + $0x80] sm:$0xff]
    %v1106 = vld [vmem:[%s213 + $0x88] sm:$0xff]
    %v1107 = vld [vmem:[%s213 + $0x90] sm:$0xff]
    %v1108 = vld [vmem:[%s213 + $0x98] sm:$0xff]
    %v1109 = vld [vmem:[%s213 + $0xa0] sm:$0xff]
    %v1110 = vld [vmem:[%s213 + $0xa8] sm:$0xff]
    %v1111 = vld [vmem:[%s213 + $0xb0] sm:$0xff]
    %v1112 = vld [vmem:[%s213 + $0xb8] sm:$0xff]
    %v1113 = vld [vmem:[%s213 + $0xc0] sm:$0xff]
    %v1114 = vld [vmem:[%s213 + $0xc8] sm:$0xff]
    %v1115 = vld [vmem:[%s213 + $0xd0] sm:$0xff]
    %v1116 = vld [vmem:[%s213 + $0xd8] sm:$0xff]
    %v1117 = vld [vmem:[%s213 + $0xe0] sm:$0xff]
    %v1118 = vld [vmem:[%s213 + $0xe8] sm:$0xff]
    %v1119 = vld [vmem:[%s213 + $0xf0] sm:$0xff]
    %v1120 = vld [vmem:[%s213 + $0xf8] sm:$0xff]
    %v1121 = vld [vmem:[%s3 + $0x1] sm:$0x1]
    %1122 = vmatpush.msra.mxu0 %v1104
    %1123 = vmatpush.msra.mxu0 %v1103
    %1124 = vmatpush.msra.mxu0 %v1102
    %1125 = vmatpush.msra.mxu0 %v1101
    %1126 = vmatpush.msra.mxu0 %v1100
    %1127 = vmatpush.msra.mxu0 %v1099
    %1128 = vmatpush.msra.mxu0 %v1098
    %1129 = vmatpush.msra.mxu0 %v1097
    %1130 = vmatpush.msra.mxu0 %v1096
    %1131 = vmatpush.msra.mxu0 %v1095
    %1132 = vmatpush.msra.mxu0 %v1094
    %1133 = vmatpush.msra.mxu0 %v1093
    %1134 = vmatpush.msra.mxu0 %v1092
    %1135 = vmatpush.msra.mxu0 %v1091
    %1136 = vmatpush.msra.mxu0 %v1090
    %1137 = vmatpush.msra.mxu0 %v1089
    %1138 = vmatmul.f32.gmra.mxu0 %v1088
    %v1139 = vpop.f32.mrf.mxu0
    %v1140 = vadd.f32 %v1121, %v1139
    %1141 = vdwg.mxu0
    %1142 = vmatpush.msra.mxu0 %v1120
    %1143 = vmatpush.msra.mxu0 %v1119
    %1144 = vmatpush.msra.mxu0 %v1118
    %1145 = vmatpush.msra.mxu0 %v1117
    %1146 = vmatpush.msra.mxu0 %v1116
    %1147 = vmatpush.msra.mxu0 %v1115
    %1148 = vmatpush.msra.mxu0 %v1114
    %1149 = vmatpush.msra.mxu0 %v1113
    %1150 = vmatpush.msra.mxu0 %v1112
    %1151 = vmatpush.msra.mxu0 %v1111
    %1152 = vmatpush.msra.mxu0 %v1110
    %1153 = vmatpush.msra.mxu0 %v1109
    %1154 = vmatpush.msra.mxu0 %v1108
    %1155 = vmatpush.msra.mxu0 %v1107
    %1156 = vmatpush.msra.mxu0 %v1106
    %1157 = vmatpush.msra.mxu0 %v1105
    %1158 = vmatmul.f32.gmra.mxu0 %v913
    %v1159 = vpop.f32.mrf.mxu0
    %v1160 = vadd.f32 %v1140, %v1159
    %1161 = vdwg.mxu0
    %v1162 = vxor.u32 %v1160, 2147483648
    %v1163 = vmul.f32 %v1162, 1.442695
    %v1164 = vpow.pop %v1163
    %v1165 = vadd.f32 %v1164, 1.0
    %v1166 = vrcp.pop %v1165
    %v1167 = vmul.f32 %v1165, %v1166
    %v1168 = vsub.f32 1.0, %v1167
    %v1169 = vmul.f32 %v1166, %v1168
    %v1170 = vadd.f32 %v1166, %v1169
    %vm1171 = vweird.f32 %v1165
    %vm1172 = vweird.f32 %v1166
    %vm1173 = vmor %vm1171, %vm1172
    %v1174 = vsel %vm1173, %v1166, %v1170
    %v1175 = vand.u32 2147483647, %v1165
    %vm1176 = vcmp.eq.f32.partialorder %v1175, 8.507059e+37
    %v1177 = vand.u32 %v1165, 2147483648
    %v1178 = vor.u32 1.1754944e-38, %v1177
    %v1179 = vsel %vm1176, %v1178, %v1174
    %v1180 = vmul.f32 1.0, %v1179
    %v1181 = vtanh.pop %v1160
    %v1182 = vmul.f32 %v1180, %v902
    %1184 = vrot.lane.b32.xlu0 %v1181, 64
    %v1185 = vpop.permute.xlu0 %1184
    %v1187 = vmul.f32 %v1180, %v1185
    %1189 = vrot.lane.b32.xlu0 %v1187, 32
    %v1190 = vpop.permute.xlu0 %1189
    %v1192 = vadd.f32 %v1182, %v1190
    %v1193 = vtanh.pop %v1192
    %1195 = vrot.lane.b32.xlu0 %v1193, 64
    %v1196 = vpop.permute.xlu0 %1195
    %v1198 = vmul.f32 %v1180, %v1196
    %1200 = vrot.lane.b32.xlu0 %v1198, 32
    %v1201 = vpop.permute.xlu0 %1200
    %v1203 = vsel %vm211, %v1201, 0.0
    %v1204 = vld [vmem:[#allocation8] sm:$0xff]
    %v1205 = vld [vmem:[#allocation8 + $0x8] sm:$0xff]
    %v1206 = vld [vmem:[#allocation8 + $0x10] sm:$0xff]
    %v1207 = vld [vmem:[#allocation8 + $0x18] sm:$0xff]
    %v1208 = vld [vmem:[#allocation8 + $0x20] sm:$0xff]
    %v1209 = vld [vmem:[#allocation8 + $0x28] sm:$0xff]
    %v1210 = vld [vmem:[#allocation8 + $0x30] sm:$0xff]
    %v1211 = vld [vmem:[#allocation8 + $0x38] sm:$0xff]
    %v1212 = vld [vmem:[#allocation8 + $0x40] sm:$0xff]
    %v1213 = vld [vmem:[#allocation8 + $0x48] sm:$0xff]
    %v1214 = vld [vmem:[#allocation8 + $0x50] sm:$0xff]
    %v1215 = vld [vmem:[#allocation8 + $0x58] sm:$0xff]
    %v1216 = vld [vmem:[#allocation8 + $0x60] sm:$0xff]
    %v1217 = vld [vmem:[#allocation8 + $0x68] sm:$0xff]
    %v1218 = vld [vmem:[#allocation8 + $0x70] sm:$0xff]
    %v1219 = vld [vmem:[#allocation8 + $0x78] sm:$0xff]
    %v1220 = vld [vmem:[%s5] sm:$0x1]
    %1221 = vmatpush.msra.mxu0 %v1219
    %1222 = vmatpush.msra.mxu0 %v1218
    %1223 = vmatpush.msra.mxu0 %v1217
    %1224 = vmatpush.msra.mxu0 %v1216
    %1225 = vmatpush.msra.mxu0 %v1215
    %1226 = vmatpush.msra.mxu0 %v1214
    %1227 = vmatpush.msra.mxu0 %v1213
    %1228 = vmatpush.msra.mxu0 %v1212
    %1229 = vmatpush.msra.mxu0 %v1211
    %1230 = vmatpush.msra.mxu0 %v1210
    %1231 = vmatpush.msra.mxu0 %v1209
    %1232 = vmatpush.msra.mxu0 %v1208
    %1233 = vmatpush.msra.mxu0 %v1207
    %1234 = vmatpush.msra.mxu0 %v1206
    %1235 = vmatpush.msra.mxu0 %v1205
    %1236 = vmatpush.msra.mxu0 %v1204
    %1237 = vmatmul.f32.gmra.mxu0 %v1203
    %v1238 = vpop.f32.mrf.mxu0
    %v1239 = vadd.f32 %v1220, %v1238
    %1240 = vdwg.mxu0
    %v1241 = vxor.u32 %v1239, 2147483648
    %v1242 = vmul.f32 %v1241, 1.442695
    %v1243 = vpow.pop %v1242
    %v1244 = vadd.f32 %v1243, 1.0
    %v1245 = vrcp.pop %v1244
    %v1246 = vmul.f32 %v1244, %v1245
    %v1247 = vsub.f32 1.0, %v1246
    %v1248 = vmul.f32 %v1245, %v1247
    %v1249 = vadd.f32 %v1245, %v1248
    %vm1250 = vweird.f32 %v1244
    %vm1251 = vweird.f32 %v1245
    %vm1252 = vmor %vm1250, %vm1251
    %v1253 = vsel %vm1252, %v1245, %v1249
    %v1254 = vand.u32 2147483647, %v1244
    %vm1255 = vcmp.eq.f32.partialorder %v1254, 8.507059e+37
    %v1256 = vand.u32 %v1244, 2147483648
    %v1257 = vor.u32 1.1754944e-38, %v1256
    %v1258 = vsel %vm1255, %v1257, %v1253
    %v1259 = vmul.f32 1.0, %v1258
    %v1260 = vtanh.pop %v1239
    %v1261 = vsel %vm370, %v1259, %v1260
    %1262 = vst [vmem:[#allocation10 + $0x3] sm:$0x1] %v1261
    %v1263 = vld [vmem:[#allocation2 + $0x4] sm:$0x1]
    %v1264 = vld [vmem:[#allocation7] sm:$0xff]
    %v1265 = vld [vmem:[#allocation7 + $0x8] sm:$0xff]
    %v1266 = vld [vmem:[#allocation7 + $0x10] sm:$0xff]
    %v1267 = vld [vmem:[#allocation7 + $0x18] sm:$0xff]
    %v1268 = vld [vmem:[#allocation7 + $0x20] sm:$0xff]
    %v1269 = vld [vmem:[#allocation7 + $0x28] sm:$0xff]
    %v1270 = vld [vmem:[#allocation7 + $0x30] sm:$0xff]
    %v1271 = vld [vmem:[#allocation7 + $0x38] sm:$0xff]
    %v1272 = vld [vmem:[#allocation7 + $0x40] sm:$0xff]
    %v1273 = vld [vmem:[#allocation7 + $0x48] sm:$0xff]
    %v1274 = vld [vmem:[#allocation7 + $0x50] sm:$0xff]
    %v1275 = vld [vmem:[#allocation7 + $0x58] sm:$0xff]
    %v1276 = vld [vmem:[#allocation7 + $0x60] sm:$0xff]
    %v1277 = vld [vmem:[#allocation7 + $0x68] sm:$0xff]
    %v1278 = vld [vmem:[#allocation7 + $0x70] sm:$0xff]
    %v1279 = vld [vmem:[#allocation7 + $0x78] sm:$0xff]
    %v1280 = vld [vmem:[#allocation7 + $0x80] sm:$0xff]
    %v1281 = vld [vmem:[#allocation7 + $0x88] sm:$0xff]
    %v1282 = vld [vmem:[#allocation7 + $0x90] sm:$0xff]
    %v1283 = vld [vmem:[#allocation7 + $0x98] sm:$0xff]
    %v1284 = vld [vmem:[#allocation7 + $0xa0] sm:$0xff]
    %v1285 = vld [vmem:[#allocation7 + $0xa8] sm:$0xff]
    %v1286 = vld [vmem:[#allocation7 + $0xb0] sm:$0xff]
    %v1287 = vld [vmem:[#allocation7 + $0xb8] sm:$0xff]
    %v1288 = vld [vmem:[#allocation7 + $0xc0] sm:$0xff]
    %v1289 = vld [vmem:[#allocation7 + $0xc8] sm:$0xff]
    %v1290 = vld [vmem:[#allocation7 + $0xd0] sm:$0xff]
    %v1291 = vld [vmem:[#allocation7 + $0xd8] sm:$0xff]
    %v1292 = vld [vmem:[#allocation7 + $0xe0] sm:$0xff]
    %v1293 = vld [vmem:[#allocation7 + $0xe8] sm:$0xff]
    %v1294 = vld [vmem:[#allocation7 + $0xf0] sm:$0xff]
    %v1295 = vld [vmem:[#allocation7 + $0xf8] sm:$0xff]
    %v1296 = vld [vmem:[%s3] sm:$0x1]
    %1297 = vmatpush.msra.mxu0 %v1279
    %1298 = vmatpush.msra.mxu0 %v1278
    %1299 = vmatpush.msra.mxu0 %v1277
    %1300 = vmatpush.msra.mxu0 %v1276
    %1301 = vmatpush.msra.mxu0 %v1275
    %1302 = vmatpush.msra.mxu0 %v1274
    %1303 = vmatpush.msra.mxu0 %v1273
    %1304 = vmatpush.msra.mxu0 %v1272
    %1305 = vmatpush.msra.mxu0 %v1271
    %1306 = vmatpush.msra.mxu0 %v1270
    %1307 = vmatpush.msra.mxu0 %v1269
    %1308 = vmatpush.msra.mxu0 %v1268
    %1309 = vmatpush.msra.mxu0 %v1267
    %1310 = vmatpush.msra.mxu0 %v1266
    %1311 = vmatpush.msra.mxu0 %v1265
    %1312 = vmatpush.msra.mxu0 %v1264
    %1313 = vmatmul.f32.gmra.mxu0 %v1263
    %v1314 = vpop.f32.mrf.mxu0
    %v1315 = vadd.f32 %v1296, %v1314
    %1316 = vdwg.mxu0
    %1317 = vmatpush.msra.mxu0 %v1295
    %1318 = vmatpush.msra.mxu0 %v1294
    %1319 = vmatpush.msra.mxu0 %v1293
    %1320 = vmatpush.msra.mxu0 %v1292
    %1321 = vmatpush.msra.mxu0 %v1291
    %1322 = vmatpush.msra.mxu0 %v1290
    %1323 = vmatpush.msra.mxu0 %v1289
    %1324 = vmatpush.msra.mxu0 %v1288
    %1325 = vmatpush.msra.mxu0 %v1287
    %1326 = vmatpush.msra.mxu0 %v1286
    %1327 = vmatpush.msra.mxu0 %v1285
    %1328 = vmatpush.msra.mxu0 %v1284
    %1329 = vmatpush.msra.mxu0 %v1283
    %1330 = vmatpush.msra.mxu0 %v1282
    %1331 = vmatpush.msra.mxu0 %v1281
    %1332 = vmatpush.msra.mxu0 %v1280
    %1333 = vmatmul.f32.gmra.mxu0 %v1088
    %v1334 = vpop.f32.mrf.mxu0
    %v1335 = vadd.f32 %v1315, %v1334
    %1336 = vdwg.mxu0
    %v1337 = vxor.u32 %v1335, 2147483648
    %v1338 = vmul.f32 %v1337, 1.442695
    %v1339 = vpow.pop %v1338
    %v1340 = vadd.f32 %v1339, 1.0
    %v1341 = vrcp.pop %v1340
    %v1342 = vmul.f32 %v1340, %v1341
    %v1343 = vsub.f32 1.0, %v1342
    %v1344 = vmul.f32 %v1341, %v1343
    %v1345 = vadd.f32 %v1341, %v1344
    %vm1346 = vweird.f32 %v1340
    %vm1347 = vweird.f32 %v1341
    %vm1348 = vmor %vm1346, %vm1347
    %v1349 = vsel %vm1348, %v1341, %v1345
    %v1350 = vand.u32 2147483647, %v1340
    %vm1351 = vcmp.eq.f32.partialorder %v1350, 8.507059e+37
    %v1352 = vand.u32 %v1340, 2147483648
    %v1353 = vor.u32 1.1754944e-38, %v1352
    %v1354 = vsel %vm1351, %v1353, %v1349
    %v1355 = vmul.f32 1.0, %v1354
    %v1356 = vtanh.pop %v1335
    %v1357 = vmul.f32 %v1355, %v1077
    %1359 = vrot.lane.b32.xlu0 %v1356, 64
    %v1360 = vpop.permute.xlu0 %1359
    %v1362 = vmul.f32 %v1355, %v1360
    %1364 = vrot.lane.b32.xlu0 %v1362, 32
    %v1365 = vpop.permute.xlu0 %1364
    %v1367 = vadd.f32 %v1357, %v1365
    %v1368 = vtanh.pop %v1367
    %1370 = vrot.lane.b32.xlu0 %v1368, 64
    %v1371 = vpop.permute.xlu0 %1370
    %v1373 = vmul.f32 %v1355, %v1371
    %1375 = vrot.lane.b32.xlu0 %v1373, 32
    %v1376 = vpop.permute.xlu0 %1375
    %v1378 = vsel %vm211, %v1376, 0.0
    %v1379 = vld [vmem:[%s213] sm:$0xff]
    %v1380 = vld [vmem:[%s213 + $0x8] sm:$0xff]
    %v1381 = vld [vmem:[%s213 + $0x10] sm:$0xff]
    %v1382 = vld [vmem:[%s213 + $0x18] sm:$0xff]
    %v1383 = vld [vmem:[%s213 + $0x20] sm:$0xff]
    %v1384 = vld [vmem:[%s213 + $0x28] sm:$0xff]
    %v1385 = vld [vmem:[%s213 + $0x30] sm:$0xff]
    %v1386 = vld [vmem:[%s213 + $0x38] sm:$0xff]
    %v1387 = vld [vmem:[%s213 + $0x40] sm:$0xff]
    %v1388 = vld [vmem:[%s213 + $0x48] sm:$0xff]
    %v1389 = vld [vmem:[%s213 + $0x50] sm:$0xff]
    %v1390 = vld [vmem:[%s213 + $0x58] sm:$0xff]
    %v1391 = vld [vmem:[%s213 + $0x60] sm:$0xff]
    %v1392 = vld [vmem:[%s213 + $0x68] sm:$0xff]
    %v1393 = vld [vmem:[%s213 + $0x70] sm:$0xff]
    %v1394 = vld [vmem:[%s213 + $0x78] sm:$0xff]
    %v1395 = vld [vmem:[%s213 + $0x80] sm:$0xff]
    %v1396 = vld [vmem:[%s213 + $0x88] sm:$0xff]
    %v1397 = vld [vmem:[%s213 + $0x90] sm:$0xff]
    %v1398 = vld [vmem:[%s213 + $0x98] sm:$0xff]
    %v1399 = vld [vmem:[%s213 + $0xa0] sm:$0xff]
    %v1400 = vld [vmem:[%s213 + $0xa8] sm:$0xff]
    %v1401 = vld [vmem:[%s213 + $0xb0] sm:$0xff]
    %v1402 = vld [vmem:[%s213 + $0xb8] sm:$0xff]
    %v1403 = vld [vmem:[%s213 + $0xc0] sm:$0xff]
    %v1404 = vld [vmem:[%s213 + $0xc8] sm:$0xff]
    %v1405 = vld [vmem:[%s213 + $0xd0] sm:$0xff]
    %v1406 = vld [vmem:[%s213 + $0xd8] sm:$0xff]
    %v1407 = vld [vmem:[%s213 + $0xe0] sm:$0xff]
    %v1408 = vld [vmem:[%s213 + $0xe8] sm:$0xff]
    %v1409 = vld [vmem:[%s213 + $0xf0] sm:$0xff]
    %v1410 = vld [vmem:[%s213 + $0xf8] sm:$0xff]
    %v1411 = vld [vmem:[%s3 + $0x1] sm:$0x1]
    %1412 = vmatpush.msra.mxu0 %v1394
    %1413 = vmatpush.msra.mxu0 %v1393
    %1414 = vmatpush.msra.mxu0 %v1392
    %1415 = vmatpush.msra.mxu0 %v1391
    %1416 = vmatpush.msra.mxu0 %v1390
    %1417 = vmatpush.msra.mxu0 %v1389
    %1418 = vmatpush.msra.mxu0 %v1388
    %1419 = vmatpush.msra.mxu0 %v1387
    %1420 = vmatpush.msra.mxu0 %v1386
    %1421 = vmatpush.msra.mxu0 %v1385
    %1422 = vmatpush.msra.mxu0 %v1384
    %1423 = vmatpush.msra.mxu0 %v1383
    %1424 = vmatpush.msra.mxu0 %v1382
    %1425 = vmatpush.msra.mxu0 %v1381
    %1426 = vmatpush.msra.mxu0 %v1380
    %1427 = vmatpush.msra.mxu0 %v1379
    %1428 = vmatmul.f32.gmra.mxu0 %v1378
    %v1429 = vpop.f32.mrf.mxu0
    %v1430 = vadd.f32 %v1411, %v1429
    %1431 = vdwg.mxu0
    %1432 = vmatpush.msra.mxu0 %v1410
    %1433 = vmatpush.msra.mxu0 %v1409
    %1434 = vmatpush.msra.mxu0 %v1408
    %1435 = vmatpush.msra.mxu0 %v1407
    %1436 = vmatpush.msra.mxu0 %v1406
    %1437 = vmatpush.msra.mxu0 %v1405
    %1438 = vmatpush.msra.mxu0 %v1404
    %1439 = vmatpush.msra.mxu0 %v1403
    %1440 = vmatpush.msra.mxu0 %v1402
    %1441 = vmatpush.msra.mxu0 %v1401
    %1442 = vmatpush.msra.mxu0 %v1400
    %1443 = vmatpush.msra.mxu0 %v1399
    %1444 = vmatpush.msra.mxu0 %v1398
    %1445 = vmatpush.msra.mxu0 %v1397
    %1446 = vmatpush.msra.mxu0 %v1396
    %1447 = vmatpush.msra.mxu0 %v1395
    %1448 = vmatmul.f32.gmra.mxu0 %v1203
    %v1449 = vpop.f32.mrf.mxu0
    %v1450 = vadd.f32 %v1430, %v1449
    %1451 = vdwg.mxu0
    %v1452 = vxor.u32 %v1450, 2147483648
    %v1453 = vmul.f32 %v1452, 1.442695
    %v1454 = vpow.pop %v1453
    %v1455 = vadd.f32 %v1454, 1.0
    %v1456 = vrcp.pop %v1455
    %v1457 = vmul.f32 %v1455, %v1456
    %v1458 = vsub.f32 1.0, %v1457
    %v1459 = vmul.f32 %v1456, %v1458
    %v1460 = vadd.f32 %v1456, %v1459
    %vm1461 = vweird.f32 %v1455
    %vm1462 = vweird.f32 %v1456
    %vm1463 = vmor %vm1461, %vm1462
    %v1464 = vsel %vm1463, %v1456, %v1460
    %v1465 = vand.u32 2147483647, %v1455
    %vm1466 = vcmp.eq.f32.partialorder %v1465, 8.507059e+37
    %v1467 = vand.u32 %v1455, 2147483648
    %v1468 = vor.u32 1.1754944e-38, %v1467
    %v1469 = vsel %vm1466, %v1468, %v1464
    %v1470 = vmul.f32 1.0, %v1469
    %v1471 = vtanh.pop %v1450
    %v1472 = vmul.f32 %v1470, %v1192
    %1474 = vrot.lane.b32.xlu0 %v1471, 64
    %v1475 = vpop.permute.xlu0 %1474
    %v1477 = vmul.f32 %v1470, %v1475
    %1479 = vrot.lane.b32.xlu0 %v1477, 32
    %v1480 = vpop.permute.xlu0 %1479
    %v1482 = vadd.f32 %v1472, %v1480
    %v1483 = vtanh.pop %v1482
    %1485 = vrot.lane.b32.xlu0 %v1483, 64
    %v1486 = vpop.permute.xlu0 %1485
    %v1488 = vmul.f32 %v1470, %v1486
    %1490 = vrot.lane.b32.xlu0 %v1488, 32
    %v1491 = vpop.permute.xlu0 %1490
    %v1493 = vsel %vm211, %v1491, 0.0
    %v1494 = vld [vmem:[#allocation8] sm:$0xff]
    %v1495 = vld [vmem:[#allocation8 + $0x8] sm:$0xff]
    %v1496 = vld [vmem:[#allocation8 + $0x10] sm:$0xff]
    %v1497 = vld [vmem:[#allocation8 + $0x18] sm:$0xff]
    %v1498 = vld [vmem:[#allocation8 + $0x20] sm:$0xff]
    %v1499 = vld [vmem:[#allocation8 + $0x28] sm:$0xff]
    %v1500 = vld [vmem:[#allocation8 + $0x30] sm:$0xff]
    %v1501 = vld [vmem:[#allocation8 + $0x38] sm:$0xff]
    %v1502 = vld [vmem:[#allocation8 + $0x40] sm:$0xff]
    %v1503 = vld [vmem:[#allocation8 + $0x48] sm:$0xff]
    %v1504 = vld [vmem:[#allocation8 + $0x50] sm:$0xff]
    %v1505 = vld [vmem:[#allocation8 + $0x58] sm:$0xff]
    %v1506 = vld [vmem:[#allocation8 + $0x60] sm:$0xff]
    %v1507 = vld [vmem:[#allocation8 + $0x68] sm:$0xff]
    %v1508 = vld [vmem:[#allocation8 + $0x70] sm:$0xff]
    %v1509 = vld [vmem:[#allocation8 + $0x78] sm:$0xff]
    %v1510 = vld [vmem:[%s5] sm:$0x1]
    %1511 = vmatpush.msra.mxu0 %v1509
    %1512 = vmatpush.msra.mxu0 %v1508
    %1513 = vmatpush.msra.mxu0 %v1507
    %1514 = vmatpush.msra.mxu0 %v1506
    %1515 = vmatpush.msra.mxu0 %v1505
    %1516 = vmatpush.msra.mxu0 %v1504
    %1517 = vmatpush.msra.mxu0 %v1503
    %1518 = vmatpush.msra.mxu0 %v1502
    %1519 = vmatpush.msra.mxu0 %v1501
    %1520 = vmatpush.msra.mxu0 %v1500
    %1521 = vmatpush.msra.mxu0 %v1499
    %1522 = vmatpush.msra.mxu0 %v1498
    %1523 = vmatpush.msra.mxu0 %v1497
    %1524 = vmatpush.msra.mxu0 %v1496
    %1525 = vmatpush.msra.mxu0 %v1495
    %1526 = vmatpush.msra.mxu0 %v1494
    %1527 = vmatmul.f32.gmra.mxu0 %v1493
    %v1528 = vpop.f32.mrf.mxu0
    %v1529 = vadd.f32 %v1510, %v1528
    %1530 = vdwg.mxu0
    %v1531 = vxor.u32 %v1529, 2147483648
    %v1532 = vmul.f32 %v1531, 1.442695
    %v1533 = vpow.pop %v1532
    %v1534 = vadd.f32 %v1533, 1.0
    %v1535 = vrcp.pop %v1534
    %v1536 = vmul.f32 %v1534, %v1535
    %v1537 = vsub.f32 1.0, %v1536
    %v1538 = vmul.f32 %v1535, %v1537
    %v1539 = vadd.f32 %v1535, %v1538
    %vm1540 = vweird.f32 %v1534
    %vm1541 = vweird.f32 %v1535
    %vm1542 = vmor %vm1540, %vm1541
    %v1543 = vsel %vm1542, %v1535, %v1539
    %v1544 = vand.u32 2147483647, %v1534
    %vm1545 = vcmp.eq.f32.partialorder %v1544, 8.507059e+37
    %v1546 = vand.u32 %v1534, 2147483648
    %v1547 = vor.u32 1.1754944e-38, %v1546
    %v1548 = vsel %vm1545, %v1547, %v1543
    %v1549 = vmul.f32 1.0, %v1548
    %v1550 = vtanh.pop %v1529
    %v1551 = vsel %vm370, %v1549, %v1550
    %1552 = vst [vmem:[#allocation10 + $0x4] sm:$0x1] %v1551
    %v1553 = vld [vmem:[#allocation2 + $0x5] sm:$0x1]
    %v1554 = vld [vmem:[#allocation7] sm:$0xff]
    %v1555 = vld [vmem:[#allocation7 + $0x8] sm:$0xff]
    %v1556 = vld [vmem:[#allocation7 + $0x10] sm:$0xff]
    %v1557 = vld [vmem:[#allocation7 + $0x18] sm:$0xff]
    %v1558 = vld [vmem:[#allocation7 + $0x20] sm:$0xff]
    %v1559 = vld [vmem:[#allocation7 + $0x28] sm:$0xff]
    %v1560 = vld [vmem:[#allocation7 + $0x30] sm:$0xff]
    %v1561 = vld [vmem:[#allocation7 + $0x38] sm:$0xff]
    %v1562 = vld [vmem:[#allocation7 + $0x40] sm:$0xff]
    %v1563 = vld [vmem:[#allocation7 + $0x48] sm:$0xff]
    %v1564 = vld [vmem:[#allocation7 + $0x50] sm:$0xff]
    %v1565 = vld [vmem:[#allocation7 + $0x58] sm:$0xff]
    %v1566 = vld [vmem:[#allocation7 + $0x60] sm:$0xff]
    %v1567 = vld [vmem:[#allocation7 + $0x68] sm:$0xff]
    %v1568 = vld [vmem:[#allocation7 + $0x70] sm:$0xff]
    %v1569 = vld [vmem:[#allocation7 + $0x78] sm:$0xff]
    %v1570 = vld [vmem:[#allocation7 + $0x80] sm:$0xff]
    %v1571 = vld [vmem:[#allocation7 + $0x88] sm:$0xff]
    %v1572 = vld [vmem:[#allocation7 + $0x90] sm:$0xff]
    %v1573 = vld [vmem:[#allocation7 + $0x98] sm:$0xff]
    %v1574 = vld [vmem:[#allocation7 + $0xa0] sm:$0xff]
    %v1575 = vld [vmem:[#allocation7 + $0xa8] sm:$0xff]
    %v1576 = vld [vmem:[#allocation7 + $0xb0] sm:$0xff]
    %v1577 = vld [vmem:[#allocation7 + $0xb8] sm:$0xff]
    %v1578 = vld [vmem:[#allocation7 + $0xc0] sm:$0xff]
    %v1579 = vld [vmem:[#allocation7 + $0xc8] sm:$0xff]
    %v1580 = vld [vmem:[#allocation7 + $0xd0] sm:$0xff]
    %v1581 = vld [vmem:[#allocation7 + $0xd8] sm:$0xff]
    %v1582 = vld [vmem:[#allocation7 + $0xe0] sm:$0xff]
    %v1583 = vld [vmem:[#allocation7 + $0xe8] sm:$0xff]
    %v1584 = vld [vmem:[#allocation7 + $0xf0] sm:$0xff]
    %v1585 = vld [vmem:[#allocation7 + $0xf8] sm:$0xff]
    %v1586 = vld [vmem:[%s3] sm:$0x1]
    %1587 = vmatpush.msra.mxu0 %v1569
    %1588 = vmatpush.msra.mxu0 %v1568
    %1589 = vmatpush.msra.mxu0 %v1567
    %1590 = vmatpush.msra.mxu0 %v1566
    %1591 = vmatpush.msra.mxu0 %v1565
    %1592 = vmatpush.msra.mxu0 %v1564
    %1593 = vmatpush.msra.mxu0 %v1563
    %1594 = vmatpush.msra.mxu0 %v1562
    %1595 = vmatpush.msra.mxu0 %v1561
    %1596 = vmatpush.msra.mxu0 %v1560
    %1597 = vmatpush.msra.mxu0 %v1559
    %1598 = vmatpush.msra.mxu0 %v1558
    %1599 = vmatpush.msra.mxu0 %v1557
    %1600 = vmatpush.msra.mxu0 %v1556
    %1601 = vmatpush.msra.mxu0 %v1555
    %1602 = vmatpush.msra.mxu0 %v1554
    %1603 = vmatmul.f32.gmra.mxu0 %v1553
    %v1604 = vpop.f32.mrf.mxu0
    %v1605 = vadd.f32 %v1586, %v1604
    %1606 = vdwg.mxu0
    %1607 = vmatpush.msra.mxu0 %v1585
    %1608 = vmatpush.msra.mxu0 %v1584
    %1609 = vmatpush.msra.mxu0 %v1583
    %1610 = vmatpush.msra.mxu0 %v1582
    %1611 = vmatpush.msra.mxu0 %v1581
    %1612 = vmatpush.msra.mxu0 %v1580
    %1613 = vmatpush.msra.mxu0 %v1579
    %1614 = vmatpush.msra.mxu0 %v1578
    %1615 = vmatpush.msra.mxu0 %v1577
    %1616 = vmatpush.msra.mxu0 %v1576
    %1617 = vmatpush.msra.mxu0 %v1575
    %1618 = vmatpush.msra.mxu0 %v1574
    %1619 = vmatpush.msra.mxu0 %v1573
    %1620 = vmatpush.msra.mxu0 %v1572
    %1621 = vmatpush.msra.mxu0 %v1571
    %1622 = vmatpush.msra.mxu0 %v1570
    %1623 = vmatmul.f32.gmra.mxu0 %v1378
    %v1624 = vpop.f32.mrf.mxu0
    %v1625 = vadd.f32 %v1605, %v1624
    %1626 = vdwg.mxu0
    %v1627 = vxor.u32 %v1625, 2147483648
    %v1628 = vmul.f32 %v1627, 1.442695
    %v1629 = vpow.pop %v1628
    %v1630 = vadd.f32 %v1629, 1.0
    %v1631 = vrcp.pop %v1630
    %v1632 = vmul.f32 %v1630, %v1631
    %v1633 = vsub.f32 1.0, %v1632
    %v1634 = vmul.f32 %v1631, %v1633
    %v1635 = vadd.f32 %v1631, %v1634
    %vm1636 = vweird.f32 %v1630
    %vm1637 = vweird.f32 %v1631
    %vm1638 = vmor %vm1636, %vm1637
    %v1639 = vsel %vm1638, %v1631, %v1635
    %v1640 = vand.u32 2147483647, %v1630
    %vm1641 = vcmp.eq.f32.partialorder %v1640, 8.507059e+37
    %v1642 = vand.u32 %v1630, 2147483648
    %v1643 = vor.u32 1.1754944e-38, %v1642
    %v1644 = vsel %vm1641, %v1643, %v1639
    %v1645 = vmul.f32 1.0, %v1644
    %v1646 = vtanh.pop %v1625
    %v1647 = vmul.f32 %v1645, %v1367
    %1649 = vrot.lane.b32.xlu0 %v1646, 64
    %v1650 = vpop.permute.xlu0 %1649
    %v1652 = vmul.f32 %v1645, %v1650
    %1654 = vrot.lane.b32.xlu0 %v1652, 32
    %v1655 = vpop.permute.xlu0 %1654
    %v1657 = vadd.f32 %v1647, %v1655
    %v1658 = vtanh.pop %v1657
    %1660 = vrot.lane.b32.xlu0 %v1658, 64
    %v1661 = vpop.permute.xlu0 %1660
    %v1663 = vmul.f32 %v1645, %v1661
    %1665 = vrot.lane.b32.xlu0 %v1663, 32
    %v1666 = vpop.permute.xlu0 %1665
    %v1668 = vsel %vm211, %v1666, 0.0
    %v1669 = vld [vmem:[%s213] sm:$0xff]
    %v1670 = vld [vmem:[%s213 + $0x8] sm:$0xff]
    %v1671 = vld [vmem:[%s213 + $0x10] sm:$0xff]
    %v1672 = vld [vmem:[%s213 + $0x18] sm:$0xff]
    %v1673 = vld [vmem:[%s213 + $0x20] sm:$0xff]
    %v1674 = vld [vmem:[%s213 + $0x28] sm:$0xff]
    %v1675 = vld [vmem:[%s213 + $0x30] sm:$0xff]
    %v1676 = vld [vmem:[%s213 + $0x38] sm:$0xff]
    %v1677 = vld [vmem:[%s213 + $0x40] sm:$0xff]
    %v1678 = vld [vmem:[%s213 + $0x48] sm:$0xff]
    %v1679 = vld [vmem:[%s213 + $0x50] sm:$0xff]
    %v1680 = vld [vmem:[%s213 + $0x58] sm:$0xff]
    %v1681 = vld [vmem:[%s213 + $0x60] sm:$0xff]
    %v1682 = vld [vmem:[%s213 + $0x68] sm:$0xff]
    %v1683 = vld [vmem:[%s213 + $0x70] sm:$0xff]
    %v1684 = vld [vmem:[%s213 + $0x78] sm:$0xff]
    %v1685 = vld [vmem:[%s213 + $0x80] sm:$0xff]
    %v1686 = vld [vmem:[%s213 + $0x88] sm:$0xff]
    %v1687 = vld [vmem:[%s213 + $0x90] sm:$0xff]
    %v1688 = vld [vmem:[%s213 + $0x98] sm:$0xff]
    %v1689 = vld [vmem:[%s213 + $0xa0] sm:$0xff]
    %v1690 = vld [vmem:[%s213 + $0xa8] sm:$0xff]
    %v1691 = vld [vmem:[%s213 + $0xb0] sm:$0xff]
    %v1692 = vld [vmem:[%s213 + $0xb8] sm:$0xff]
    %v1693 = vld [vmem:[%s213 + $0xc0] sm:$0xff]
    %v1694 = vld [vmem:[%s213 + $0xc8] sm:$0xff]
    %v1695 = vld [vmem:[%s213 + $0xd0] sm:$0xff]
    %v1696 = vld [vmem:[%s213 + $0xd8] sm:$0xff]
    %v1697 = vld [vmem:[%s213 + $0xe0] sm:$0xff]
    %v1698 = vld [vmem:[%s213 + $0xe8] sm:$0xff]
    %v1699 = vld [vmem:[%s213 + $0xf0] sm:$0xff]
    %v1700 = vld [vmem:[%s213 + $0xf8] sm:$0xff]
    %v1701 = vld [vmem:[%s3 + $0x1] sm:$0x1]
    %1702 = vmatpush.msra.mxu0 %v1684
    %1703 = vmatpush.msra.mxu0 %v1683
    %1704 = vmatpush.msra.mxu0 %v1682
    %1705 = vmatpush.msra.mxu0 %v1681
    %1706 = vmatpush.msra.mxu0 %v1680
    %1707 = vmatpush.msra.mxu0 %v1679
    %1708 = vmatpush.msra.mxu0 %v1678
    %1709 = vmatpush.msra.mxu0 %v1677
    %1710 = vmatpush.msra.mxu0 %v1676
    %1711 = vmatpush.msra.mxu0 %v1675
    %1712 = vmatpush.msra.mxu0 %v1674
    %1713 = vmatpush.msra.mxu0 %v1673
    %1714 = vmatpush.msra.mxu0 %v1672
    %1715 = vmatpush.msra.mxu0 %v1671
    %1716 = vmatpush.msra.mxu0 %v1670
    %1717 = vmatpush.msra.mxu0 %v1669
    %1718 = vmatmul.f32.gmra.mxu0 %v1668
    %v1719 = vpop.f32.mrf.mxu0
    %v1720 = vadd.f32 %v1701, %v1719
    %1721 = vdwg.mxu0
    %1722 = vmatpush.msra.mxu0 %v1700
    %1723 = vmatpush.msra.mxu0 %v1699
    %1724 = vmatpush.msra.mxu0 %v1698
    %1725 = vmatpush.msra.mxu0 %v1697
    %1726 = vmatpush.msra.mxu0 %v1696
    %1727 = vmatpush.msra.mxu0 %v1695
    %1728 = vmatpush.msra.mxu0 %v1694
    %1729 = vmatpush.msra.mxu0 %v1693
    %1730 = vmatpush.msra.mxu0 %v1692
    %1731 = vmatpush.msra.mxu0 %v1691
    %1732 = vmatpush.msra.mxu0 %v1690
    %1733 = vmatpush.msra.mxu0 %v1689
    %1734 = vmatpush.msra.mxu0 %v1688
    %1735 = vmatpush.msra.mxu0 %v1687
    %1736 = vmatpush.msra.mxu0 %v1686
    %1737 = vmatpush.msra.mxu0 %v1685
    %1738 = vmatmul.f32.gmra.mxu0 %v1493
    %v1739 = vpop.f32.mrf.mxu0
    %v1740 = vadd.f32 %v1720, %v1739
    %1741 = vdwg.mxu0
    %v1742 = vxor.u32 %v1740, 2147483648
    %v1743 = vmul.f32 %v1742, 1.442695
    %v1744 = vpow.pop %v1743
    %v1745 = vadd.f32 %v1744, 1.0
    %v1746 = vrcp.pop %v1745
    %v1747 = vmul.f32 %v1745, %v1746
    %v1748 = vsub.f32 1.0, %v1747
    %v1749 = vmul.f32 %v1746, %v1748
    %v1750 = vadd.f32 %v1746, %v1749
    %vm1751 = vweird.f32 %v1745
    %vm1752 = vweird.f32 %v1746
    %vm1753 = vmor %vm1751, %vm1752
    %v1754 = vsel %vm1753, %v1746, %v1750
    %v1755 = vand.u32 2147483647, %v1745
    %vm1756 = vcmp.eq.f32.partialorder %v1755, 8.507059e+37
    %v1757 = vand.u32 %v1745, 2147483648
    %v1758 = vor.u32 1.1754944e-38, %v1757
    %v1759 = vsel %vm1756, %v1758, %v1754
    %v1760 = vmul.f32 1.0, %v1759
    %v1761 = vtanh.pop %v1740
    %v1762 = vmul.f32 %v1760, %v1482
    %1764 = vrot.lane.b32.xlu0 %v1761, 64
    %v1765 = vpop.permute.xlu0 %1764
    %v1767 = vmul.f32 %v1760, %v1765
    %1769 = vrot.lane.b32.xlu0 %v1767, 32
    %v1770 = vpop.permute.xlu0 %1769
    %v1772 = vadd.f32 %v1762, %v1770
    %v1773 = vtanh.pop %v1772
    %1775 = vrot.lane.b32.xlu0 %v1773, 64
    %v1776 = vpop.permute.xlu0 %1775
    %v1778 = vmul.f32 %v1760, %v1776
    %1780 = vrot.lane.b32.xlu0 %v1778, 32
    %v1781 = vpop.permute.xlu0 %1780
    %v1783 = vsel %vm211, %v1781, 0.0
    %v1784 = vld [vmem:[#allocation8] sm:$0xff]
    %v1785 = vld [vmem:[#allocation8 + $0x8] sm:$0xff]
    %v1786 = vld [vmem:[#allocation8 + $0x10] sm:$0xff]
    %v1787 = vld [vmem:[#allocation8 + $0x18] sm:$0xff]
    %v1788 = vld [vmem:[#allocation8 + $0x20] sm:$0xff]
    %v1789 = vld [vmem:[#allocation8 + $0x28] sm:$0xff]
    %v1790 = vld [vmem:[#allocation8 + $0x30] sm:$0xff]
    %v1791 = vld [vmem:[#allocation8 + $0x38] sm:$0xff]
    %v1792 = vld [vmem:[#allocation8 + $0x40] sm:$0xff]
    %v1793 = vld [vmem:[#allocation8 + $0x48] sm:$0xff]
    %v1794 = vld [vmem:[#allocation8 + $0x50] sm:$0xff]
    %v1795 = vld [vmem:[#allocation8 + $0x58] sm:$0xff]
    %v1796 = vld [vmem:[#allocation8 + $0x60] sm:$0xff]
    %v1797 = vld [vmem:[#allocation8 + $0x68] sm:$0xff]
    %v1798 = vld [vmem:[#allocation8 + $0x70] sm:$0xff]
    %v1799 = vld [vmem:[#allocation8 + $0x78] sm:$0xff]
    %v1800 = vld [vmem:[%s5] sm:$0x1]
    %1801 = vmatpush.msra.mxu0 %v1799
    %1802 = vmatpush.msra.mxu0 %v1798
    %1803 = vmatpush.msra.mxu0 %v1797
    %1804 = vmatpush.msra.mxu0 %v1796
    %1805 = vmatpush.msra.mxu0 %v1795
    %1806 = vmatpush.msra.mxu0 %v1794
    %1807 = vmatpush.msra.mxu0 %v1793
    %1808 = vmatpush.msra.mxu0 %v1792
    %1809 = vmatpush.msra.mxu0 %v1791
    %1810 = vmatpush.msra.mxu0 %v1790
    %1811 = vmatpush.msra.mxu0 %v1789
    %1812 = vmatpush.msra.mxu0 %v1788
    %1813 = vmatpush.msra.mxu0 %v1787
    %1814 = vmatpush.msra.mxu0 %v1786
    %1815 = vmatpush.msra.mxu0 %v1785
    %1816 = vmatpush.msra.mxu0 %v1784
    %1817 = vmatmul.f32.gmra.mxu0 %v1783
    %v1818 = vpop.f32.mrf.mxu0
    %v1819 = vadd.f32 %v1800, %v1818
    %1820 = vdwg.mxu0
    %v1821 = vxor.u32 %v1819, 2147483648
    %v1822 = vmul.f32 %v1821, 1.442695
    %v1823 = vpow.pop %v1822
    %v1824 = vadd.f32 %v1823, 1.0
    %v1825 = vrcp.pop %v1824
    %v1826 = vmul.f32 %v1824, %v1825
    %v1827 = vsub.f32 1.0, %v1826
    %v1828 = vmul.f32 %v1825, %v1827
    %v1829 = vadd.f32 %v1825, %v1828
    %vm1830 = vweird.f32 %v1824
    %vm1831 = vweird.f32 %v1825
    %vm1832 = vmor %vm1830, %vm1831
    %v1833 = vsel %vm1832, %v1825, %v1829
    %v1834 = vand.u32 2147483647, %v1824
    %vm1835 = vcmp.eq.f32.partialorder %v1834, 8.507059e+37
    %v1836 = vand.u32 %v1824, 2147483648
    %v1837 = vor.u32 1.1754944e-38, %v1836
    %v1838 = vsel %vm1835, %v1837, %v1833
    %v1839 = vmul.f32 1.0, %v1838
    %v1840 = vtanh.pop %v1819
    %v1841 = vsel %vm370, %v1839, %v1840
    %1842 = vst [vmem:[#allocation10 + $0x5] sm:$0x1] %v1841
    %v1843 = vld [vmem:[#allocation2 + $0x6] sm:$0x1]
    %v1844 = vld [vmem:[#allocation7] sm:$0xff]
    %v1845 = vld [vmem:[#allocation7 + $0x8] sm:$0xff]
    %v1846 = vld [vmem:[#allocation7 + $0x10] sm:$0xff]
    %v1847 = vld [vmem:[#allocation7 + $0x18] sm:$0xff]
    %v1848 = vld [vmem:[#allocation7 + $0x20] sm:$0xff]
    %v1849 = vld [vmem:[#allocation7 + $0x28] sm:$0xff]
    %v1850 = vld [vmem:[#allocation7 + $0x30] sm:$0xff]
    %v1851 = vld [vmem:[#allocation7 + $0x38] sm:$0xff]
    %v1852 = vld [vmem:[#allocation7 + $0x40] sm:$0xff]
    %v1853 = vld [vmem:[#allocation7 + $0x48] sm:$0xff]
    %v1854 = vld [vmem:[#allocation7 + $0x50] sm:$0xff]
    %v1855 = vld [vmem:[#allocation7 + $0x58] sm:$0xff]
    %v1856 = vld [vmem:[#allocation7 + $0x60] sm:$0xff]
    %v1857 = vld [vmem:[#allocation7 + $0x68] sm:$0xff]
    %v1858 = vld [vmem:[#allocation7 + $0x70] sm:$0xff]
    %v1859 = vld [vmem:[#allocation7 + $0x78] sm:$0xff]
    %v1860 = vld [vmem:[#allocation7 + $0x80] sm:$0xff]
    %v1861 = vld [vmem:[#allocation7 + $0x88] sm:$0xff]
    %v1862 = vld [vmem:[#allocation7 + $0x90] sm:$0xff]
    %v1863 = vld [vmem:[#allocation7 + $0x98] sm:$0xff]
    %v1864 = vld [vmem:[#allocation7 + $0xa0] sm:$0xff]
    %v1865 = vld [vmem:[#allocation7 + $0xa8] sm:$0xff]
    %v1866 = vld [vmem:[#allocation7 + $0xb0] sm:$0xff]
    %v1867 = vld [vmem:[#allocation7 + $0xb8] sm:$0xff]
    %v1868 = vld [vmem:[#allocation7 + $0xc0] sm:$0xff]
    %v1869 = vld [vmem:[#allocation7 + $0xc8] sm:$0xff]
    %v1870 = vld [vmem:[#allocation7 + $0xd0] sm:$0xff]
    %v1871 = vld [vmem:[#allocation7 + $0xd8] sm:$0xff]
    %v1872 = vld [vmem:[#allocation7 + $0xe0] sm:$0xff]
    %v1873 = vld [vmem:[#allocation7 + $0xe8] sm:$0xff]
    %v1874 = vld [vmem:[#allocation7 + $0xf0] sm:$0xff]
    %v1875 = vld [vmem:[#allocation7 + $0xf8] sm:$0xff]
    %v1876 = vld [vmem:[%s3] sm:$0x1]
    %1877 = vmatpush.msra.mxu0 %v1859
    %1878 = vmatpush.msra.mxu0 %v1858
    %1879 = vmatpush.msra.mxu0 %v1857
    %1880 = vmatpush.msra.mxu0 %v1856
    %1881 = vmatpush.msra.mxu0 %v1855
    %1882 = vmatpush.msra.mxu0 %v1854
    %1883 = vmatpush.msra.mxu0 %v1853
    %1884 = vmatpush.msra.mxu0 %v1852
    %1885 = vmatpush.msra.mxu0 %v1851
    %1886 = vmatpush.msra.mxu0 %v1850
    %1887 = vmatpush.msra.mxu0 %v1849
    %1888 = vmatpush.msra.mxu0 %v1848
    %1889 = vmatpush.msra.mxu0 %v1847
    %1890 = vmatpush.msra.mxu0 %v1846
    %1891 = vmatpush.msra.mxu0 %v1845
    %1892 = vmatpush.msra.mxu0 %v1844
    %1893 = vmatmul.f32.gmra.mxu0 %v1843
    %v1894 = vpop.f32.mrf.mxu0
    %v1895 = vadd.f32 %v1876, %v1894
    %1896 = vdwg.mxu0
    %1897 = vmatpush.msra.mxu0 %v1875
    %1898 = vmatpush.msra.mxu0 %v1874
    %1899 = vmatpush.msra.mxu0 %v1873
    %1900 = vmatpush.msra.mxu0 %v1872
    %1901 = vmatpush.msra.mxu0 %v1871
    %1902 = vmatpush.msra.mxu0 %v1870
    %1903 = vmatpush.msra.mxu0 %v1869
    %1904 = vmatpush.msra.mxu0 %v1868
    %1905 = vmatpush.msra.mxu0 %v1867
    %1906 = vmatpush.msra.mxu0 %v1866
    %1907 = vmatpush.msra.mxu0 %v1865
    %1908 = vmatpush.msra.mxu0 %v1864
    %1909 = vmatpush.msra.mxu0 %v1863
    %1910 = vmatpush.msra.mxu0 %v1862
    %1911 = vmatpush.msra.mxu0 %v1861
    %1912 = vmatpush.msra.mxu0 %v1860
    %1913 = vmatmul.f32.gmra.mxu0 %v1668
    %v1914 = vpop.f32.mrf.mxu0
    %v1915 = vadd.f32 %v1895, %v1914
    %1916 = vdwg.mxu0
    %v1917 = vxor.u32 %v1915, 2147483648
    %v1918 = vmul.f32 %v1917, 1.442695
    %v1919 = vpow.pop %v1918
    %v1920 = vadd.f32 %v1919, 1.0
    %v1921 = vrcp.pop %v1920
    %v1922 = vmul.f32 %v1920, %v1921
    %v1923 = vsub.f32 1.0, %v1922
    %v1924 = vmul.f32 %v1921, %v1923
    %v1925 = vadd.f32 %v1921, %v1924
    %vm1926 = vweird.f32 %v1920
    %vm1927 = vweird.f32 %v1921
    %vm1928 = vmor %vm1926, %vm1927
    %v1929 = vsel %vm1928, %v1921, %v1925
    %v1930 = vand.u32 2147483647, %v1920
    %vm1931 = vcmp.eq.f32.partialorder %v1930, 8.507059e+37
    %v1932 = vand.u32 %v1920, 2147483648
    %v1933 = vor.u32 1.1754944e-38, %v1932
    %v1934 = vsel %vm1931, %v1933, %v1929
    %v1935 = vmul.f32 1.0, %v1934
    %v1936 = vtanh.pop %v1915
    %v1937 = vmul.f32 %v1935, %v1657
    %1939 = vrot.lane.b32.xlu0 %v1936, 64
    %v1940 = vpop.permute.xlu0 %1939
    %v1942 = vmul.f32 %v1935, %v1940
    %1944 = vrot.lane.b32.xlu0 %v1942, 32
    %v1945 = vpop.permute.xlu0 %1944
    %v1947 = vadd.f32 %v1937, %v1945
    %v1948 = vtanh.pop %v1947
    %1950 = vrot.lane.b32.xlu0 %v1948, 64
    %v1951 = vpop.permute.xlu0 %1950
    %v1953 = vmul.f32 %v1935, %v1951
    %1955 = vrot.lane.b32.xlu0 %v1953, 32
    %v1956 = vpop.permute.xlu0 %1955
    %v1958 = vsel %vm211, %v1956, 0.0
    %v1959 = vld [vmem:[%s213] sm:$0xff]
    %v1960 = vld [vmem:[%s213 + $0x8] sm:$0xff]
    %v1961 = vld [vmem:[%s213 + $0x10] sm:$0xff]
    %v1962 = vld [vmem:[%s213 + $0x18] sm:$0xff]
    %v1963 = vld [vmem:[%s213 + $0x20] sm:$0xff]
    %v1964 = vld [vmem:[%s213 + $0x28] sm:$0xff]
    %v1965 = vld [vmem:[%s213 + $0x30] sm:$0xff]
    %v1966 = vld [vmem:[%s213 + $0x38] sm:$0xff]
    %v1967 = vld [vmem:[%s213 + $0x40] sm:$0xff]
    %v1968 = vld [vmem:[%s213 + $0x48] sm:$0xff]
    %v1969 = vld [vmem:[%s213 + $0x50] sm:$0xff]
    %v1970 = vld [vmem:[%s213 + $0x58] sm:$0xff]
    %v1971 = vld [vmem:[%s213 + $0x60] sm:$0xff]
    %v1972 = vld [vmem:[%s213 + $0x68] sm:$0xff]
    %v1973 = vld [vmem:[%s213 + $0x70] sm:$0xff]
    %v1974 = vld [vmem:[%s213 + $0x78] sm:$0xff]
    %v1975 = vld [vmem:[%s213 + $0x80] sm:$0xff]
    %v1976 = vld [vmem:[%s213 + $0x88] sm:$0xff]
    %v1977 = vld [vmem:[%s213 + $0x90] sm:$0xff]
    %v1978 = vld [vmem:[%s213 + $0x98] sm:$0xff]
    %v1979 = vld [vmem:[%s213 + $0xa0] sm:$0xff]
    %v1980 = vld [vmem:[%s213 + $0xa8] sm:$0xff]
    %v1981 = vld [vmem:[%s213 + $0xb0] sm:$0xff]
    %v1982 = vld [vmem:[%s213 + $0xb8] sm:$0xff]
    %v1983 = vld [vmem:[%s213 + $0xc0] sm:$0xff]
    %v1984 = vld [vmem:[%s213 + $0xc8] sm:$0xff]
    %v1985 = vld [vmem:[%s213 + $0xd0] sm:$0xff]
    %v1986 = vld [vmem:[%s213 + $0xd8] sm:$0xff]
    %v1987 = vld [vmem:[%s213 + $0xe0] sm:$0xff]
    %v1988 = vld [vmem:[%s213 + $0xe8] sm:$0xff]
    %v1989 = vld [vmem:[%s213 + $0xf0] sm:$0xff]
    %v1990 = vld [vmem:[%s213 + $0xf8] sm:$0xff]
    %v1991 = vld [vmem:[%s3 + $0x1] sm:$0x1]
    %1992 = vmatpush.msra.mxu0 %v1974
    %1993 = vmatpush.msra.mxu0 %v1973
    %1994 = vmatpush.msra.mxu0 %v1972
    %1995 = vmatpush.msra.mxu0 %v1971
    %1996 = vmatpush.msra.mxu0 %v1970
    %1997 = vmatpush.msra.mxu0 %v1969
    %1998 = vmatpush.msra.mxu0 %v1968
    %1999 = vmatpush.msra.mxu0 %v1967
    %2000 = vmatpush.msra.mxu0 %v1966
    %2001 = vmatpush.msra.mxu0 %v1965
    %2002 = vmatpush.msra.mxu0 %v1964
    %2003 = vmatpush.msra.mxu0 %v1963
    %2004 = vmatpush.msra.mxu0 %v1962
    %2005 = vmatpush.msra.mxu0 %v1961
    %2006 = vmatpush.msra.mxu0 %v1960
    %2007 = vmatpush.msra.mxu0 %v1959
    %2008 = vmatmul.f32.gmra.mxu0 %v1958
    %v2009 = vpop.f32.mrf.mxu0
    %v2010 = vadd.f32 %v1991, %v2009
    %2011 = vdwg.mxu0
    %2012 = vmatpush.msra.mxu0 %v1990
    %2013 = vmatpush.msra.mxu0 %v1989
    %2014 = vmatpush.msra.mxu0 %v1988
    %2015 = vmatpush.msra.mxu0 %v1987
    %2016 = vmatpush.msra.mxu0 %v1986
    %2017 = vmatpush.msra.mxu0 %v1985
    %2018 = vmatpush.msra.mxu0 %v1984
    %2019 = vmatpush.msra.mxu0 %v1983
    %2020 = vmatpush.msra.mxu0 %v1982
    %2021 = vmatpush.msra.mxu0 %v1981
    %2022 = vmatpush.msra.mxu0 %v1980
    %2023 = vmatpush.msra.mxu0 %v1979
    %2024 = vmatpush.msra.mxu0 %v1978
    %2025 = vmatpush.msra.mxu0 %v1977
    %2026 = vmatpush.msra.mxu0 %v1976
    %2027 = vmatpush.msra.mxu0 %v1975
    %2028 = vmatmul.f32.gmra.mxu0 %v1783
    %v2029 = vpop.f32.mrf.mxu0
    %v2030 = vadd.f32 %v2010, %v2029
    %2031 = vdwg.mxu0
    %v2032 = vxor.u32 %v2030, 2147483648
    %v2033 = vmul.f32 %v2032, 1.442695
    %v2034 = vpow.pop %v2033
    %v2035 = vadd.f32 %v2034, 1.0
    %v2036 = vrcp.pop %v2035
    %v2037 = vmul.f32 %v2035, %v2036
    %v2038 = vsub.f32 1.0, %v2037
    %v2039 = vmul.f32 %v2036, %v2038
    %v2040 = vadd.f32 %v2036, %v2039
    %vm2041 = vweird.f32 %v2035
    %vm2042 = vweird.f32 %v2036
    %vm2043 = vmor %vm2041, %vm2042
    %v2044 = vsel %vm2043, %v2036, %v2040
    %v2045 = vand.u32 2147483647, %v2035
    %vm2046 = vcmp.eq.f32.partialorder %v2045, 8.507059e+37
    %v2047 = vand.u32 %v2035, 2147483648
    %v2048 = vor.u32 1.1754944e-38, %v2047
    %v2049 = vsel %vm2046, %v2048, %v2044
    %v2050 = vmul.f32 1.0, %v2049
    %v2051 = vtanh.pop %v2030
    %v2052 = vmul.f32 %v2050, %v1772
    %2054 = vrot.lane.b32.xlu0 %v2051, 64
    %v2055 = vpop.permute.xlu0 %2054
    %v2057 = vmul.f32 %v2050, %v2055
    %2059 = vrot.lane.b32.xlu0 %v2057, 32
    %v2060 = vpop.permute.xlu0 %2059
    %v2062 = vadd.f32 %v2052, %v2060
    %v2063 = vtanh.pop %v2062
    %2065 = vrot.lane.b32.xlu0 %v2063, 64
    %v2066 = vpop.permute.xlu0 %2065
    %v2068 = vmul.f32 %v2050, %v2066
    %2070 = vrot.lane.b32.xlu0 %v2068, 32
    %v2071 = vpop.permute.xlu0 %2070
    %v2073 = vsel %vm211, %v2071, 0.0
    %v2074 = vld [vmem:[#allocation8] sm:$0xff]
    %v2075 = vld [vmem:[#allocation8 + $0x8] sm:$0xff]
    %v2076 = vld [vmem:[#allocation8 + $0x10] sm:$0xff]
    %v2077 = vld [vmem:[#allocation8 + $0x18] sm:$0xff]
    %v2078 = vld [vmem:[#allocation8 + $0x20] sm:$0xff]
    %v2079 = vld [vmem:[#allocation8 + $0x28] sm:$0xff]
    %v2080 = vld [vmem:[#allocation8 + $0x30] sm:$0xff]
    %v2081 = vld [vmem:[#allocation8 + $0x38] sm:$0xff]
    %v2082 = vld [vmem:[#allocation8 + $0x40] sm:$0xff]
    %v2083 = vld [vmem:[#allocation8 + $0x48] sm:$0xff]
    %v2084 = vld [vmem:[#allocation8 + $0x50] sm:$0xff]
    %v2085 = vld [vmem:[#allocation8 + $0x58] sm:$0xff]
    %v2086 = vld [vmem:[#allocation8 + $0x60] sm:$0xff]
    %v2087 = vld [vmem:[#allocation8 + $0x68] sm:$0xff]
    %v2088 = vld [vmem:[#allocation8 + $0x70] sm:$0xff]
    %v2089 = vld [vmem:[#allocation8 + $0x78] sm:$0xff]
    %v2090 = vld [vmem:[%s5] sm:$0x1]
    %2091 = vmatpush.msra.mxu0 %v2089
    %2092 = vmatpush.msra.mxu0 %v2088
    %2093 = vmatpush.msra.mxu0 %v2087
    %2094 = vmatpush.msra.mxu0 %v2086
    %2095 = vmatpush.msra.mxu0 %v2085
    %2096 = vmatpush.msra.mxu0 %v2084
    %2097 = vmatpush.msra.mxu0 %v2083
    %2098 = vmatpush.msra.mxu0 %v2082
    %2099 = vmatpush.msra.mxu0 %v2081
    %2100 = vmatpush.msra.mxu0 %v2080
    %2101 = vmatpush.msra.mxu0 %v2079
    %2102 = vmatpush.msra.mxu0 %v2078
    %2103 = vmatpush.msra.mxu0 %v2077
    %2104 = vmatpush.msra.mxu0 %v2076
    %2105 = vmatpush.msra.mxu0 %v2075
    %2106 = vmatpush.msra.mxu0 %v2074
    %2107 = vmatmul.f32.gmra.mxu0 %v2073
    %v2108 = vpop.f32.mrf.mxu0
    %v2109 = vadd.f32 %v2090, %v2108
    %2110 = vdwg.mxu0
    %v2111 = vxor.u32 %v2109, 2147483648
    %v2112 = vmul.f32 %v2111, 1.442695
    %v2113 = vpow.pop %v2112
    %v2114 = vadd.f32 %v2113, 1.0
    %v2115 = vrcp.pop %v2114
    %v2116 = vmul.f32 %v2114, %v2115
    %v2117 = vsub.f32 1.0, %v2116
    %v2118 = vmul.f32 %v2115, %v2117
    %v2119 = vadd.f32 %v2115, %v2118
    %vm2120 = vweird.f32 %v2114
    %vm2121 = vweird.f32 %v2115
    %vm2122 = vmor %vm2120, %vm2121
    %v2123 = vsel %vm2122, %v2115, %v2119
    %v2124 = vand.u32 2147483647, %v2114
    %vm2125 = vcmp.eq.f32.partialorder %v2124, 8.507059e+37
    %v2126 = vand.u32 %v2114, 2147483648
    %v2127 = vor.u32 1.1754944e-38, %v2126
    %v2128 = vsel %vm2125, %v2127, %v2123
    %v2129 = vmul.f32 1.0, %v2128
    %v2130 = vtanh.pop %v2109
    %v2131 = vsel %vm370, %v2129, %v2130
    %2132 = vst [vmem:[#allocation10 + $0x6] sm:$0x1] %v2131
    %v2133 = vld [vmem:[#allocation2 + $0x7] sm:$0x1]
    %v2134 = vld [vmem:[#allocation7] sm:$0xff]
    %v2135 = vld [vmem:[#allocation7 + $0x8] sm:$0xff]
    %v2136 = vld [vmem:[#allocation7 + $0x10] sm:$0xff]
    %v2137 = vld [vmem:[#allocation7 + $0x18] sm:$0xff]
    %v2138 = vld [vmem:[#allocation7 + $0x20] sm:$0xff]
    %v2139 = vld [vmem:[#allocation7 + $0x28] sm:$0xff]
    %v2140 = vld [vmem:[#allocation7 + $0x30] sm:$0xff]
    %v2141 = vld [vmem:[#allocation7 + $0x38] sm:$0xff]
    %v2142 = vld [vmem:[#allocation7 + $0x40] sm:$0xff]
    %v2143 = vld [vmem:[#allocation7 + $0x48] sm:$0xff]
    %v2144 = vld [vmem:[#allocation7 + $0x50] sm:$0xff]
    %v2145 = vld [vmem:[#allocation7 + $0x58] sm:$0xff]
    %v2146 = vld [vmem:[#allocation7 + $0x60] sm:$0xff]
    %v2147 = vld [vmem:[#allocation7 + $0x68] sm:$0xff]
    %v2148 = vld [vmem:[#allocation7 + $0x70] sm:$0xff]
    %v2149 = vld [vmem:[#allocation7 + $0x78] sm:$0xff]
    %v2150 = vld [vmem:[#allocation7 + $0x80] sm:$0xff]
    %v2151 = vld [vmem:[#allocation7 + $0x88] sm:$0xff]
    %v2152 = vld [vmem:[#allocation7 + $0x90] sm:$0xff]
    %v2153 = vld [vmem:[#allocation7 + $0x98] sm:$0xff]
    %v2154 = vld [vmem:[#allocation7 + $0xa0] sm:$0xff]
    %v2155 = vld [vmem:[#allocation7 + $0xa8] sm:$0xff]
    %v2156 = vld [vmem:[#allocation7 + $0xb0] sm:$0xff]
    %v2157 = vld [vmem:[#allocation7 + $0xb8] sm:$0xff]
    %v2158 = vld [vmem:[#allocation7 + $0xc0] sm:$0xff]
    %v2159 = vld [vmem:[#allocation7 + $0xc8] sm:$0xff]
    %v2160 = vld [vmem:[#allocation7 + $0xd0] sm:$0xff]
    %v2161 = vld [vmem:[#allocation7 + $0xd8] sm:$0xff]
    %v2162 = vld [vmem:[#allocation7 + $0xe0] sm:$0xff]
    %v2163 = vld [vmem:[#allocation7 + $0xe8] sm:$0xff]
    %v2164 = vld [vmem:[#allocation7 + $0xf0] sm:$0xff]
    %v2165 = vld [vmem:[#allocation7 + $0xf8] sm:$0xff]
    %v2166 = vld [vmem:[%s3] sm:$0x1]
    %2167 = vmatpush.msra.mxu0 %v2149
    %2168 = vmatpush.msra.mxu0 %v2148
    %2169 = vmatpush.msra.mxu0 %v2147
    %2170 = vmatpush.msra.mxu0 %v2146
    %2171 = vmatpush.msra.mxu0 %v2145
    %2172 = vmatpush.msra.mxu0 %v2144
    %2173 = vmatpush.msra.mxu0 %v2143
    %2174 = vmatpush.msra.mxu0 %v2142
    %2175 = vmatpush.msra.mxu0 %v2141
    %2176 = vmatpush.msra.mxu0 %v2140
    %2177 = vmatpush.msra.mxu0 %v2139
    %2178 = vmatpush.msra.mxu0 %v2138
    %2179 = vmatpush.msra.mxu0 %v2137
    %2180 = vmatpush.msra.mxu0 %v2136
    %2181 = vmatpush.msra.mxu0 %v2135
    %2182 = vmatpush.msra.mxu0 %v2134
    %2183 = vmatmul.f32.gmra.mxu0 %v2133
    %v2184 = vpop.f32.mrf.mxu0
    %v2185 = vadd.f32 %v2166, %v2184
    %2186 = vdwg.mxu0
    %2187 = vmatpush.msra.mxu0 %v2165
    %2188 = vmatpush.msra.mxu0 %v2164
    %2189 = vmatpush.msra.mxu0 %v2163
    %2190 = vmatpush.msra.mxu0 %v2162
    %2191 = vmatpush.msra.mxu0 %v2161
    %2192 = vmatpush.msra.mxu0 %v2160
    %2193 = vmatpush.msra.mxu0 %v2159
    %2194 = vmatpush.msra.mxu0 %v2158
    %2195 = vmatpush.msra.mxu0 %v2157
    %2196 = vmatpush.msra.mxu0 %v2156
    %2197 = vmatpush.msra.mxu0 %v2155
    %2198 = vmatpush.msra.mxu0 %v2154
    %2199 = vmatpush.msra.mxu0 %v2153
    %2200 = vmatpush.msra.mxu0 %v2152
    %2201 = vmatpush.msra.mxu0 %v2151
    %2202 = vmatpush.msra.mxu0 %v2150
    %2203 = vmatmul.f32.gmra.mxu0 %v1958
    %v2204 = vpop.f32.mrf.mxu0
    %v2205 = vadd.f32 %v2185, %v2204
    %2206 = vdwg.mxu0
    %v2207 = vxor.u32 %v2205, 2147483648
    %v2208 = vmul.f32 %v2207, 1.442695
    %v2209 = vpow.pop %v2208
    %v2210 = vadd.f32 %v2209, 1.0
    %v2211 = vrcp.pop %v2210
    %v2212 = vmul.f32 %v2210, %v2211
    %v2213 = vsub.f32 1.0, %v2212
    %v2214 = vmul.f32 %v2211, %v2213
    %v2215 = vadd.f32 %v2211, %v2214
    %vm2216 = vweird.f32 %v2210
    %vm2217 = vweird.f32 %v2211
    %vm2218 = vmor %vm2216, %vm2217
    %v2219 = vsel %vm2218, %v2211, %v2215
    %v2220 = vand.u32 2147483647, %v2210
    %vm2221 = vcmp.eq.f32.partialorder %v2220, 8.507059e+37
    %v2222 = vand.u32 %v2210, 2147483648
    %v2223 = vor.u32 1.1754944e-38, %v2222
    %v2224 = vsel %vm2221, %v2223, %v2219
    %v2225 = vmul.f32 1.0, %v2224
    %v2226 = vtanh.pop %v2205
    %v2227 = vmul.f32 %v2225, %v1947
    %2229 = vrot.lane.b32.xlu0 %v2226, 64
    %v2230 = vpop.permute.xlu0 %2229
    %v2232 = vmul.f32 %v2225, %v2230
    %2234 = vrot.lane.b32.xlu0 %v2232, 32
    %v2235 = vpop.permute.xlu0 %2234
    %v2237 = vadd.f32 %v2227, %v2235
    %v2238 = vtanh.pop %v2237
    %2240 = vrot.lane.b32.xlu0 %v2238, 64
    %v2241 = vpop.permute.xlu0 %2240
    %v2243 = vmul.f32 %v2225, %v2241
    %2245 = vrot.lane.b32.xlu0 %v2243, 32
    %v2246 = vpop.permute.xlu0 %2245
    %v2248 = vsel %vm211, %v2246, 0.0
    %v2249 = vld [vmem:[%s213] sm:$0xff]
    %v2250 = vld [vmem:[%s213 + $0x8] sm:$0xff]
    %v2251 = vld [vmem:[%s213 + $0x10] sm:$0xff]
    %v2252 = vld [vmem:[%s213 + $0x18] sm:$0xff]
    %v2253 = vld [vmem:[%s213 + $0x20] sm:$0xff]
    %v2254 = vld [vmem:[%s213 + $0x28] sm:$0xff]
    %v2255 = vld [vmem:[%s213 + $0x30] sm:$0xff]
    %v2256 = vld [vmem:[%s213 + $0x38] sm:$0xff]
    %v2257 = vld [vmem:[%s213 + $0x40] sm:$0xff]
    %v2258 = vld [vmem:[%s213 + $0x48] sm:$0xff]
    %v2259 = vld [vmem:[%s213 + $0x50] sm:$0xff]
    %v2260 = vld [vmem:[%s213 + $0x58] sm:$0xff]
    %v2261 = vld [vmem:[%s213 + $0x60] sm:$0xff]
    %v2262 = vld [vmem:[%s213 + $0x68] sm:$0xff]
    %v2263 = vld [vmem:[%s213 + $0x70] sm:$0xff]
    %v2264 = vld [vmem:[%s213 + $0x78] sm:$0xff]
    %v2265 = vld [vmem:[%s213 + $0x80] sm:$0xff]
    %v2266 = vld [vmem:[%s213 + $0x88] sm:$0xff]
    %v2267 = vld [vmem:[%s213 + $0x90] sm:$0xff]
    %v2268 = vld [vmem:[%s213 + $0x98] sm:$0xff]
    %v2269 = vld [vmem:[%s213 + $0xa0] sm:$0xff]
    %v2270 = vld [vmem:[%s213 + $0xa8] sm:$0xff]
    %v2271 = vld [vmem:[%s213 + $0xb0] sm:$0xff]
    %v2272 = vld [vmem:[%s213 + $0xb8] sm:$0xff]
    %v2273 = vld [vmem:[%s213 + $0xc0] sm:$0xff]
    %v2274 = vld [vmem:[%s213 + $0xc8] sm:$0xff]
    %v2275 = vld [vmem:[%s213 + $0xd0] sm:$0xff]
    %v2276 = vld [vmem:[%s213 + $0xd8] sm:$0xff]
    %v2277 = vld [vmem:[%s213 + $0xe0] sm:$0xff]
    %v2278 = vld [vmem:[%s213 + $0xe8] sm:$0xff]
    %v2279 = vld [vmem:[%s213 + $0xf0] sm:$0xff]
    %v2280 = vld [vmem:[%s213 + $0xf8] sm:$0xff]
    %v2281 = vld [vmem:[%s3 + $0x1] sm:$0x1]
    %2282 = vmatpush.msra.mxu0 %v2264
    %2283 = vmatpush.msra.mxu0 %v2263
    %2284 = vmatpush.msra.mxu0 %v2262
    %2285 = vmatpush.msra.mxu0 %v2261
    %2286 = vmatpush.msra.mxu0 %v2260
    %2287 = vmatpush.msra.mxu0 %v2259
    %2288 = vmatpush.msra.mxu0 %v2258
    %2289 = vmatpush.msra.mxu0 %v2257
    %2290 = vmatpush.msra.mxu0 %v2256
    %2291 = vmatpush.msra.mxu0 %v2255
    %2292 = vmatpush.msra.mxu0 %v2254
    %2293 = vmatpush.msra.mxu0 %v2253
    %2294 = vmatpush.msra.mxu0 %v2252
    %2295 = vmatpush.msra.mxu0 %v2251
    %2296 = vmatpush.msra.mxu0 %v2250
    %2297 = vmatpush.msra.mxu0 %v2249
    %2298 = vmatmul.f32.gmra.mxu0 %v2248
    %v2299 = vpop.f32.mrf.mxu0
    %v2300 = vadd.f32 %v2281, %v2299
    %2301 = vdwg.mxu0
    %2302 = vmatpush.msra.mxu0 %v2280
    %2303 = vmatpush.msra.mxu0 %v2279
    %2304 = vmatpush.msra.mxu0 %v2278
    %2305 = vmatpush.msra.mxu0 %v2277
    %2306 = vmatpush.msra.mxu0 %v2276
    %2307 = vmatpush.msra.mxu0 %v2275
    %2308 = vmatpush.msra.mxu0 %v2274
    %2309 = vmatpush.msra.mxu0 %v2273
    %2310 = vmatpush.msra.mxu0 %v2272
    %2311 = vmatpush.msra.mxu0 %v2271
    %2312 = vmatpush.msra.mxu0 %v2270
    %2313 = vmatpush.msra.mxu0 %v2269
    %2314 = vmatpush.msra.mxu0 %v2268
    %2315 = vmatpush.msra.mxu0 %v2267
    %2316 = vmatpush.msra.mxu0 %v2266
    %2317 = vmatpush.msra.mxu0 %v2265
    %2318 = vmatmul.f32.gmra.mxu0 %v2073
    %v2319 = vpop.f32.mrf.mxu0
    %v2320 = vadd.f32 %v2300, %v2319
    %2321 = vdwg.mxu0
    %v2322 = vxor.u32 %v2320, 2147483648
    %v2323 = vmul.f32 %v2322, 1.442695
    %v2324 = vpow.pop %v2323
    %v2325 = vadd.f32 %v2324, 1.0
    %v2326 = vrcp.pop %v2325
    %v2327 = vmul.f32 %v2325, %v2326
    %v2328 = vsub.f32 1.0, %v2327
    %v2329 = vmul.f32 %v2326, %v2328
    %v2330 = vadd.f32 %v2326, %v2329
    %vm2331 = vweird.f32 %v2325
    %vm2332 = vweird.f32 %v2326
    %vm2333 = vmor %vm2331, %vm2332
    %v2334 = vsel %vm2333, %v2326, %v2330
    %v2335 = vand.u32 2147483647, %v2325
    %vm2336 = vcmp.eq.f32.partialorder %v2335, 8.507059e+37
    %v2337 = vand.u32 %v2325, 2147483648
    %v2338 = vor.u32 1.1754944e-38, %v2337
    %v2339 = vsel %vm2336, %v2338, %v2334
    %v2340 = vmul.f32 1.0, %v2339
    %v2341 = vtanh.pop %v2320
    %v2342 = vmul.f32 %v2340, %v2062
    %2344 = vrot.lane.b32.xlu0 %v2341, 64
    %v2345 = vpop.permute.xlu0 %2344
    %v2347 = vmul.f32 %v2340, %v2345
    %2349 = vrot.lane.b32.xlu0 %v2347, 32
    %v2350 = vpop.permute.xlu0 %2349
    %v2352 = vadd.f32 %v2342, %v2350
    %v2353 = vtanh.pop %v2352
    %2355 = vrot.lane.b32.xlu0 %v2353, 64
    %v2356 = vpop.permute.xlu0 %2355
    %v2358 = vmul.f32 %v2340, %v2356
    %2360 = vrot.lane.b32.xlu0 %v2358, 32
    %v2361 = vpop.permute.xlu0 %2360
    %v2363 = vsel %vm211, %v2361, 0.0
    %v2364 = vld [vmem:[#allocation8] sm:$0xff]
    %v2365 = vld [vmem:[#allocation8 + $0x8] sm:$0xff]
    %v2366 = vld [vmem:[#allocation8 + $0x10] sm:$0xff]
    %v2367 = vld [vmem:[#allocation8 + $0x18] sm:$0xff]
    %v2368 = vld [vmem:[#allocation8 + $0x20] sm:$0xff]
    %v2369 = vld [vmem:[#allocation8 + $0x28] sm:$0xff]
    %v2370 = vld [vmem:[#allocation8 + $0x30] sm:$0xff]
    %v2371 = vld [vmem:[#allocation8 + $0x38] sm:$0xff]
    %v2372 = vld [vmem:[#allocation8 + $0x40] sm:$0xff]
    %v2373 = vld [vmem:[#allocation8 + $0x48] sm:$0xff]
    %v2374 = vld [vmem:[#allocation8 + $0x50] sm:$0xff]
    %v2375 = vld [vmem:[#allocation8 + $0x58] sm:$0xff]
    %v2376 = vld [vmem:[#allocation8 + $0x60] sm:$0xff]
    %v2377 = vld [vmem:[#allocation8 + $0x68] sm:$0xff]
    %v2378 = vld [vmem:[#allocation8 + $0x70] sm:$0xff]
    %v2379 = vld [vmem:[#allocation8 + $0x78] sm:$0xff]
    %v2380 = vld [vmem:[%s5] sm:$0x1]
    %2381 = vmatpush.msra.mxu0 %v2379
    %2382 = vmatpush.msra.mxu0 %v2378
    %2383 = vmatpush.msra.mxu0 %v2377
    %2384 = vmatpush.msra.mxu0 %v2376
    %2385 = vmatpush.msra.mxu0 %v2375
    %2386 = vmatpush.msra.mxu0 %v2374
    %2387 = vmatpush.msra.mxu0 %v2373
    %2388 = vmatpush.msra.mxu0 %v2372
    %2389 = vmatpush.msra.mxu0 %v2371
    %2390 = vmatpush.msra.mxu0 %v2370
    %2391 = vmatpush.msra.mxu0 %v2369
    %2392 = vmatpush.msra.mxu0 %v2368
    %2393 = vmatpush.msra.mxu0 %v2367
    %2394 = vmatpush.msra.mxu0 %v2366
    %2395 = vmatpush.msra.mxu0 %v2365
    %2396 = vmatpush.msra.mxu0 %v2364
    %2397 = vmatmul.f32.gmra.mxu0 %v2363
    %v2398 = vpop.f32.mrf.mxu0
    %v2399 = vadd.f32 %v2380, %v2398
    %2400 = vdwg.mxu0
    %v2401 = vxor.u32 %v2399, 2147483648
    %v2402 = vmul.f32 %v2401, 1.442695
    %v2403 = vpow.pop %v2402
    %v2404 = vadd.f32 %v2403, 1.0
    %v2405 = vrcp.pop %v2404
    %v2406 = vmul.f32 %v2404, %v2405
    %v2407 = vsub.f32 1.0, %v2406
    %v2408 = vmul.f32 %v2405, %v2407
    %v2409 = vadd.f32 %v2405, %v2408
    %vm2410 = vweird.f32 %v2404
    %vm2411 = vweird.f32 %v2405
    %vm2412 = vmor %vm2410, %vm2411
    %v2413 = vsel %vm2412, %v2405, %v2409
    %v2414 = vand.u32 2147483647, %v2404
    %vm2415 = vcmp.eq.f32.partialorder %v2414, 8.507059e+37
    %v2416 = vand.u32 %v2404, 2147483648
    %v2417 = vor.u32 1.1754944e-38, %v2416
    %v2418 = vsel %vm2415, %v2417, %v2413
    %v2419 = vmul.f32 1.0, %v2418
    %v2420 = vtanh.pop %v2399
    %v2421 = vsel %vm370, %v2419, %v2420
    %2422 = vst [vmem:[#allocation10 + $0x7] sm:$0x1] %v2421
    %2423 = vst [vmem:[#allocation11] sm:$0x1] %v2248
    %2425 = vrot.lane.b32.xlu0 %v2237, 96
    %v2426 = vpop.permute.xlu0 %2425
    %v2428 = vsel %vm211, %v2426, 0.0
    %2429 = vst [vmem:[#allocation11 + $0x2] sm:$0x1] %v2428
    %2430 = vst [vmem:[#allocation11 + $0x1] sm:$0x1] %v2363
    %2432 = vrot.lane.b32.xlu0 %v2352, 96
    %v2433 = vpop.permute.xlu0 %2432
    %v2435 = vsel %vm211, %v2433, 0.0
    %2436 = vst [vmem:[#allocation11 + $0x3] sm:$0x1] %v2435
    // Predicated region
    $region42: #{tpu_custom_call.1} parent=1 // pred_check
      _
    $region43: #{tpu_custom_call.1} parent=1 // pred_check_branch
      %2438 = sbr.rel (0) target = $region45
    $region44: #{tpu_custom_call.1} parent=1 // pred_region
      %2440 = vsyncadd [#allocation4], 0
      %s2442 = sshll.u32 [#allocation10], 4
      %s2443 = int_to_ptr.vmem [resolvable:$true] %s2442
      %s2444 = sshll.u32 %s6, 4
      %s2445 = int_to_ptr.hbm [resolvable:$true] %s2444
      %2447 = dma.vmem_to_hbm [thread:$0]  %s2443, 128, %s2445, [#allocation4]
    $region45: #{tpu_custom_call.1} parent=1 // pred_fallthru
      _
    // Predicated region
    $region46: #{tpu_custom_call.1} parent=1 // pred_check
      _
    $region47: #{tpu_custom_call.1} parent=1 // pred_check_branch
      %2449 = sbr.rel (0) target = $region49
    $region48: #{tpu_custom_call.1} parent=1 // pred_region
      %2451 = vsyncadd [#allocation12], 0
      %s2453 = sshll.u32 [#allocation11], 4
      %s2454 = int_to_ptr.vmem [resolvable:$true] %s2453
      %s2455 = sshll.u32 %s7, 4
      %s2456 = int_to_ptr.hbm [resolvable:$true] %s2455
      %2458 = dma.vmem_to_hbm [thread:$0]  %s2454, 64, %s2456, [#allocation12]
    $region49: #{tpu_custom_call.1} parent=1 // pred_fallthru
      _
    // Predicated region
    $region50: #{tpu_custom_call.1} parent=1 // pred_check
      _
    $region51: #{tpu_custom_call.1} parent=1 // pred_check_branch
      %2460 = sbr.rel (0) target = $region53
    $region52: #{tpu_custom_call.1} parent=1 // pred_region
      %2462 = dma.done [#allocation4], 128
    $region53: #{tpu_custom_call.1} parent=1 // pred_fallthru
      _
    // Predicated region
    $region54: #{tpu_custom_call.1} parent=1 // pred_check
      _
    $region55: #{tpu_custom_call.1} parent=1 // pred_check_branch
      %2464 = sbr.rel (0) target = $region57
    $region56: #{tpu_custom_call.1} parent=1 // pred_region
      %2466 = dma.done [#allocation12], 64
    $region57: #{tpu_custom_call.1} parent=1 // pred_fallthru
      _
    %2467 = vsyncpa [#allocation3], 1
    %2468 = vsyncpa [#allocation6], 1
    %2469 = vsyncpa [#allocation9], 1
    %2470 = vsyncpa [#allocation4], 1
    %2471 = vsyncpa [#allocation12], 1

</llo_original>
